<compile_context>
chip_gen: v5e
topology: v5e:2x2
jax: 0.10.0
libtpu: 0.0.40
codegen_flags: <defaults>
</compile_context>

<pallas_src>
import jax
import jax.numpy as jnp
from jax.experimental import pallas as pl
from jax.experimental.pallas import tpu as pltpu

_VMEM_LIMIT = 32 * 1024 * 1024  # safe on v7x (64 MiB physical), plenty on v5e/v6e


# ----------------------------------------------------------------------------
# helpers
# ----------------------------------------------------------------------------
def _largest_divisor(n, cap, align=1):
    """Largest divisor of n that is <= cap and a multiple of `align` (fallback: n)."""
    cap = min(n, cap)
    for d in range(cap, 0, -1):
        if n % d == 0 and d % align == 0:
            return d
    return n


def _build_band(w, Wout):
    """(3,3,Cin,Cout) conv weights -> (3, (Wout+2)*Cin, Wout*Cout) banded matrices.

    band[dy][(w+dx)*Cin + ci, w*Cout + co] = w[dy, dx, ci, co]  (zero elsewhere), so
    z[h, w*Cout+co] = sum_dy  xpad_rows[h+dy] @ band[dy]   reproduces the 3x3 conv
    directly in the lane-dense (H, W*C) layout with both K and N lane-dense.
    """
    _, _, Cin, Cout = w.shape
    eye = jnp.eye(Wout, dtype=w.dtype)
    bands = []
    for dy in range(3):
        acc = jnp.zeros(((Wout + 2) * Cin, Wout * Cout), w.dtype)
        for dx in range(3):
            blk = jnp.einsum('wv,io->wivo', eye, w[dy, dx]).reshape(Wout * Cin, Wout * Cout)
            acc = acc.at[dx * Cin: dx * Cin + Wout * Cin, :].add(blk)
        bands.append(acc)
    return jnp.stack(bands, axis=0).astype(jnp.bfloat16)


def _build_pool_select(Wout, C):
    """0/1 lane-selection matrices for 2x2 W-pool in (H, W*C) layout.

    sel[0] picks lane blocks at even w, sel[1] at odd w:
      (H, W*C) @ sel[s]  ->  (H, (W//2)*C) holding x[:, (2k+s)*C : (2k+s+1)*C].
    """
    half = (Wout // 2) * C
    eye = jnp.eye(half, dtype=jnp.float32).reshape(Wout // 2, C, half)
    zero = jnp.zeros_like(eye)
    s_even = jnp.stack([eye, zero], axis=1).reshape(Wout * C, half)
    s_odd = jnp.stack([zero, eye], axis=1).reshape(Wout * C, half)
    return jnp.stack([s_even, s_odd], axis=0).astype(jnp.bfloat16)


# ----------------------------------------------------------------------------
# fused VGG block: (3x3 conv + bias [-> tap] -> ReLU) x nconv [-> 2x2 maxpool]
# ----------------------------------------------------------------------------
def _make_block_kernel(H, W, convs, tap_flags, emit_pool, emit_relu_out):
    nconv = len(convs)
    n_out = sum(tap_flags) + (1 if (emit_pool or emit_relu_out) else 0)

    def kernel(*refs):
        idx = 0
        x_ref = refs[idx]; idx += 1
        band_refs, bias_refs = [], []
        for _ in range(nconv):
            band_refs.append(refs[idx]); bias_refs.append(refs[idx + 1]); idx += 2
        psel_ref = None
        if emit_pool:
            psel_ref = refs[idx]; idx += 1
        out_refs = refs[idx: idx + n_out]; idx += n_out
        halo_refs = refs[idx:]

        h = x_ref[0]                                            # (H, W*Cin0) bf16
        oi = 0
        for ci, (Cin, Cout) in enumerate(convs):
            xp = halo_refs[ci]                                  # (H+2, (W+2)*Cin) bf16
            WpC = (W + 2) * Cin
            # zero ONLY the 1-px border strips each step (interior fully overwritten;
            # never gate this on program_id==0 -- megacore-parallel grids would leave
            # the other core's scratch border uninitialized).
            xp[0:1, :] = jnp.zeros((1, WpC), xp.dtype)
            xp[H + 1:H + 2, :] = jnp.zeros((1, WpC), xp.dtype)
            xp[:, 0:Cin] = jnp.zeros((H + 2, Cin), xp.dtype)
            xp[:, (W + 1) * Cin:WpC] = jnp.zeros((H + 2, Cin), xp.dtype)
            xp[1:H + 1, Cin:(W + 1) * Cin] = h.astype(xp.dtype)

            # 3 banded MXU matmuls (K = (W+2)*Cin, N = W*Cout, both lane-dense),
            # f32 accumulation; one per dy row shift of the halo scratch.
            z = jnp.dot(xp[0:H, :], band_refs[ci][0], preferred_element_type=jnp.float32)
            z = z + jnp.dot(xp[1:H + 1, :], band_refs[ci][1], preferred_element_type=jnp.float32)
            z = z + jnp.dot(xp[2:H + 2, :], band_refs[ci][2], preferred_element_type=jnp.float32)
            z = z + bias_refs[ci][...]                          # (1, W*Cout) broadcast

            if tap_flags[ci]:                                   # pre-activation tap
                out_refs[oi][...] = z.astype(out_refs[oi].dtype).reshape(1, H, W * Cout)
                oi += 1
            h = jnp.maximum(z, 0.0).astype(jnp.bfloat16)        # ReLU for next stage

        if emit_pool:
            Cl = convs[-1][1]
            hr = h.reshape(H // 2, 2, W * Cl)
            y = jnp.maximum(hr[:, 0, :], hr[:, 1, :])           # H-pool on sublanes
            pe = jnp.dot(y, psel_ref[0], preferred_element_type=jnp.float32)
            po = jnp.dot(y, psel_ref[1], preferred_element_type=jnp.float32)
            p = jnp.maximum(pe, po)                             # W-pool via lane select
            out_refs[oi][...] = p.astype(out_refs[oi].dtype).reshape(1, H // 2, (W // 2) * Cl)
        elif emit_relu_out:
            out_refs[oi][...] = h.reshape(1, H, W * convs[-1][1])

    return kernel


def _vgg_block(x, H, W, layer_params, tap_flags, emit_pool, emit_relu_out):
    """Run one fused VGG block on lane-dense (N, H, W*Cin) bf16 input."""
    N2 = x.shape[0]
    convs = [(w.shape[2], w.shape[3]) for w, _ in layer_params]
    if emit_pool:
        # TODO(synk): torch MaxPool2d floor-mode for odd H/W is not handled.
        assert H % 2 == 0 and W % 2 == 0

    inputs = [x]
    in_specs = [pl.BlockSpec((1, H, W * convs[0][0]), lambda n: (n, 0, 0))]
    for (w, b), (Cin, Cout) in zip(layer_params, convs):
        band = _build_band(w, W)                                  # (3,(W+2)*Cin,W*Cout) bf16
        brow = jnp.tile(b, W).reshape(1, W * Cout).astype(jnp.float32)
        inputs += [band, brow]
        in_specs += [pl.BlockSpec(band.shape, lambda n: (0, 0, 0)),
                     pl.BlockSpec(brow.shape, lambda n: (0, 0))]
    if emit_pool:
        Cl = convs[-1][1]
        psel = _build_pool_select(W, Cl)                          # (2, W*Cl, (W//2)*Cl) bf16
        inputs.append(psel)
        in_specs.append(pl.BlockSpec(psel.shape, lambda n: (0, 0, 0)))

    out_shapes, out_specs = [], []
    for (Cin, Cout), t in zip(convs, tap_flags):
        if t:
            out_shapes.append(jax.ShapeDtypeStruct((N2, H, W * Cout), jnp.bfloat16))
            out_specs.append(pl.BlockSpec((1, H, W * Cout), lambda n: (n, 0, 0)))
    if emit_pool:
        Cl = convs[-1][1]
        out_shapes.append(jax.ShapeDtypeStruct((N2, H // 2, (W // 2) * Cl), jnp.bfloat16))
        out_specs.append(pl.BlockSpec((1, H // 2, (W // 2) * Cl), lambda n: (n, 0, 0)))
    elif emit_relu_out:
        Cl = convs[-1][1]
        out_shapes.append(jax.ShapeDtypeStruct((N2, H, W * Cl), jnp.bfloat16))
        out_specs.append(pl.BlockSpec((1, H, W * Cl), lambda n: (n, 0, 0)))

    scratch = [pltpu.VMEM((H + 2, (W + 2) * Cin), jnp.bfloat16) for Cin, _ in convs]

    outs = pl.pallas_call(
        _make_block_kernel(H, W, convs, tap_flags, emit_pool, emit_relu_out),
        out_shape=tuple(out_shapes),
        grid=(N2,),
        in_specs=in_specs,
        out_specs=tuple(out_specs),
        scratch_shapes=scratch,
        compiler_params=pltpu.CompilerParams(
            dimension_semantics=("parallel",),
            vmem_limit_bytes=_VMEM_LIMIT),
    )(*inputs)
    if not isinstance(outs, (tuple, list)):
        outs = (outs,)
    return outs


# ----------------------------------------------------------------------------
# Gram matrix: batched, tiled over the H*W contraction, accumulating output
# ----------------------------------------------------------------------------
def gram_mat(feat, H, W, C):
    """gram[b,i,j] = sum_{hw} f[b,hw,i] f[b,hw,j] / (C*H*W), from (B, H, W*C) features."""
    B = feat.shape[0]
    HW = H * W
    f = feat.reshape(B, HW, C)             # contiguous reshape of the lane-dense layout
    align = 16 if f.dtype == jnp.bfloat16 else 8
    tk = _largest_divisor(HW, 2048, align=align)
    nk = HW // tk
    inv = 1.0 / float(C * H * W)

    def kernel(f_ref, o_ref):
        @pl.when(pl.program_id(1) == 0)
        def _():
            o_ref[...] = jnp.zeros_like(o_ref)
        chunk = f_ref[0]                   # (tk, C) bf16 MXU operands, f32 accumulation
        # TODO(synk): for real VGG widths (C >= 128) feed chunks pre-transposed to avoid
        #             the per-chunk contraction-on-dim-0 transpose.
        g = jax.lax.dot_general(chunk, chunk, (((0,), (0,)), ((), ())),
                                preferred_element_type=jnp.float32)
        o_ref[...] += g.reshape(1, C, C)

    out = pl.pallas_call(
        kernel,
        out_shape=jax.ShapeDtypeStruct((B, C, C), jnp.float32),
        grid=(B, nk),
        in_specs=[pl.BlockSpec((1, tk, C), lambda b, k: (b, k, 0))],
        out_specs=pl.BlockSpec((1, C, C), lambda b, k: (b, 0, 0)),
        compiler_params=pltpu.CompilerParams(
            dimension_semantics=("parallel", "arbitrary"),
            vmem_limit_bytes=_VMEM_LIMIT),
    )(f)
    return out * inv                        # scale once in the wrapper, not per chunk


# ----------------------------------------------------------------------------
# Streaming |a-b| / (a-b)^2 reduction over the stacked (x | gt) feature tensor
# ----------------------------------------------------------------------------
def _paired_reduce(feat, n, mode):
    """Sum of |feat[:n]-feat[n:]| ('abs') or (feat[:n]-feat[n:])**2 ('sq').

    feat: (2n, R, L) with items 0..n-1 = x features, n..2n-1 = gt features.  Per-batch
    partials go to distinct (1,1,128) output blocks (batch axis 'parallel' -> shards
    across v7x's two TensorCores) and are summed in the wrapper.
    """
    _, R, L = feat.shape
    align = 16 if feat.dtype == jnp.bfloat16 else 8
    tr = _largest_divisor(R, 256, align=align)
    nr = R // tr

    def kernel(a_ref, b_ref, o_ref):
        @pl.when(pl.program_id(1) == 0)
        def _():
            o_ref[...] = jnp.zeros_like(o_ref)
        d = a_ref[...].astype(jnp.float32) - b_ref[...].astype(jnp.float32)
        s = jnp.sum(jnp.abs(d)) if mode == "abs" else jnp.sum(d * d)
        o_ref[...] += s                     # scalar broadcast into the lane-dense block

    out = pl.pallas_call(
        kernel,
        out_shape=jax.ShapeDtypeStruct((n, 1, 128), jnp.float32),
        grid=(n, nr),
        in_specs=[pl.BlockSpec((1, tr, L), lambda i, j: (i, j, 0)),
                  pl.BlockSpec((1, tr, L), lambda i, j: (i + n, j, 0))],
        out_specs=pl.BlockSpec((1, 1, 128), lambda i, j: (i, 0, 0)),
        compiler_params=pltpu.CompilerParams(
            dimension_semantics=("parallel", "arbitrary"),
            vmem_limit_bytes=_VMEM_LIMIT),
    )(feat, feat)
    return jnp.sum(out[:, 0, 0])


# ----------------------------------------------------------------------------
# Synthetic VGG-style feature extractor (deterministic weights, no checkpoint)
# ----------------------------------------------------------------------------
VGG_MEAN = jnp.array([0.485, 0.456, 0.406], jnp.float32)
VGG_STD = jnp.array([0.229, 0.224, 0.225], jnp.float32)


class VGGFeatureExtractorLite:
    """Deterministic VGG19-like stand-in: fused blocks of 3x3 conv + ReLU + 2x2 maxpool.

    # TODO(synk): pretrained torchvision VGG19 weights cannot be loaded here; this
    # deterministic VGG-lite replaces VGGFeatureExtractor ('convX_Y' taps are
    # pre-activation conv outputs, matching basicsr semantics).
    """

    _BLOCKS = [
        ("block1", [("conv1_1", 3, 8), ("conv1_2", 8, 8)], True),
        ("block2", [("conv2_1", 8, 16), ("conv2_2", 16, 16)], False),
    ]

    def __init__(self, layer_name_list, use_input_norm=True, range_norm=False):
        self.layer_name_list = list(layer_name_list)
        self.use_input_norm = use_input_norm
        self.range_norm = range_norm
        self.params = {}
        key = jax.random.PRNGKey(42)
        for _, convs, _ in self._BLOCKS:
            for name, cin, cout in convs:
                key, kw, kb = jax.random.split(key, 3)
                self.params[name] = (
                    0.1 * jax.random.normal(kw, (3, 3, cin, cout), jnp.float32),
                    0.01 * jax.random.normal(kb, (cout,), jnp.float32),
                )

    def __call__(self, x_nhwc):
        N, H, W, _ = x_nhwc.shape
        h = x_nhwc
        if self.range_norm:
            h = (h + 1.0) / 2.0
        if self.use_input_norm:
            h = (h - VGG_MEAN) / VGG_STD
        # lane-dense (N, H, W*C) bf16 layout for all feature maps
        h = h.reshape(N, H, W * 3).astype(jnp.bfloat16)

        feats = {}        # name -> (features (N, H, W*C) bf16, H, W, C)
        remaining = set(self.layer_name_list)
        curH, curW = H, W
        for _, convs, has_pool in self._BLOCKS:
            if not remaining:
                break
            names = [c[0] for c in convs]
            tap_flags = [nm in remaining for nm in names]
            remaining_after = remaining - set(names)
            need_out = bool(remaining_after)
            layer_params = [self.params[nm] for nm in names]

            outs = _vgg_block(h, curH, curW, layer_params, tap_flags,
                              emit_pool=has_pool and need_out,
                              emit_relu_out=(not has_pool) and need_out)
            oi = 0
            for (nm, _, cout), t in zip(convs, tap_flags):
                if t:
                    feats[nm] = (outs[oi], curH, curW, cout)
                    oi += 1
            if need_out:
                h = outs[oi]
                if has_pool:
                    curH, curW = curH // 2, curW // 2
            remaining = remaining_after
        return feats


# ----------------------------------------------------------------------------
# PerceptualLoss (mirrors the PyTorch module's forward semantics)
# ----------------------------------------------------------------------------
class PerceptualLoss:
    def __init__(self, layer_weights, vgg_type='vgg19', use_input_norm=True,
                 range_norm=False, perceptual_weight=1.0, style_weight=0.0,
                 criterion='l1'):
        self.perceptual_weight = perceptual_weight
        self.style_weight = style_weight
        self.layer_weights = layer_weights
        self.vgg = VGGFeatureExtractorLite(list(layer_weights.keys()),
                                           use_input_norm=use_input_norm,
                                           range_norm=range_norm)
        self.criterion_type = criterion
        if criterion not in ('l1', 'l2', 'fro'):
            raise NotImplementedError(f'{criterion} criterion has not been supported.')

    def _crit(self, pair, n):
        """Criterion between the first and second halves of a stacked (2n, R, L) tensor."""
        if self.criterion_type == 'l1':
            return _paired_reduce(pair, n, "abs") / (pair.size // 2)
        if self.criterion_type == 'l2':
            return _paired_reduce(pair, n, "sq") / (pair.size // 2)
        return jnp.sqrt(_paired_reduce(pair, n, "sq"))   # 'fro'

    def __call__(self, x, gt):
        # x, gt: (n, c, h, w) in PyTorch NCHW layout.
        if x.shape[1] == 1:
            x = jnp.tile(x, (1, 3, 1, 1))
        if gt.shape[1] == 1:
            gt = jnp.tile(gt, (1, 3, 1, 1))
        n = x.shape[0]
        # Single batched VGG pass over [x ; stop_grad(gt)]: one feature extraction
        # instead of two and 2n grid items to keep both v7x TensorCores busy.
        both = jnp.concatenate([x, jax.lax.stop_gradient(gt)], axis=0)
        both = jnp.transpose(both, (0, 2, 3, 1)).astype(jnp.float32)      # NHWC
        feats = self.vgg(both)

        if self.perceptual_weight > 0:
            percep_loss = jnp.float32(0.0)
            for k, (fk, _, _, _) in feats.items():
                percep_loss = percep_loss + self._crit(fk, n) * self.layer_weights[k]
            percep_loss = percep_loss * self.perceptual_weight
        else:
            percep_loss = None

        if self.style_weight > 0:
            style_loss = jnp.float32(0.0)
            for k, (fk, fh, fw, fc) in feats.items():
                g = gram_mat(fk, fh, fw, fc)        # (2n, C, C): x and gt grams together
                style_loss = style_loss + self._crit(g, n) * self.layer_weights[k]
            style_loss = style_loss * self.style_weight
        else:
            style_loss = None

        return percep_loss, style_loss


if __name__ == "__main__":
    key = jax.random.PRNGKey(0)
    kx, kg = jax.random.split(key)
    x = jax.random.uniform(kx, (2, 3, 16, 16), jnp.float32)
    gt = jax.random.uniform(kg, (2, 3, 16, 16), jnp.float32)

    loss_fn = PerceptualLoss(layer_weights={'conv1_2': 0.5, 'conv2_2': 1.0},
                             use_input_norm=True, range_norm=False,
                             perceptual_weight=1.0, style_weight=1.0,
                             criterion='l1')
    percep, style = jax.jit(lambda a, b: loss_fn(a, b))(x, gt)
    jax.block_until_ready((percep, style))
    print("KERNEL_OK")
</pallas_src>

<mosaic_0001>
module attributes {stable_mosaic.version = 11 : i64} {
  func.func @kernel(%arg0: i32, %arg1: memref<1x16x48xbf16, #tpu.memory_space<vmem>>, %arg2: memref<3x54x128xbf16, #tpu.memory_space<vmem>>, %arg3: memref<1x128xf32, #tpu.memory_space<vmem>>, %arg4: memref<3x144x128xbf16, #tpu.memory_space<vmem>>, %arg5: memref<1x128xf32, #tpu.memory_space<vmem>>, %arg6: memref<2x128x64xbf16, #tpu.memory_space<vmem>>, %arg7: memref<1x16x128xbf16, #tpu.memory_space<vmem>>, %arg8: memref<1x8x64xbf16, #tpu.memory_space<vmem>>, %arg9: memref<18x54xbf16, #tpu.memory_space<vmem>>, %arg10: memref<18x144xbf16, #tpu.memory_space<vmem>>) attributes {dimension_semantics = [#tpu.dimension_semantics<parallel>], iteration_bounds = array<i64: 4>, scalar_prefetch = 0 : i64, scratch_operands = 2 : i64, tpu.core_type = #tpu.core_type<tc>, window_params = [{transform_indices = @transform_0, window_bounds = array<i64: 1, 16, 48>}, {pipeline_mode = #tpu.pipeline_mode<synchronous>, transform_indices = @transform_1, window_bounds = array<i64: 3, 54, 128>}, {pipeline_mode = #tpu.pipeline_mode<synchronous>, transform_indices = @transform_2, window_bounds = array<i64: 1, 128>}, {pipeline_mode = #tpu.pipeline_mode<synchronous>, transform_indices = @transform_3, window_bounds = array<i64: 3, 144, 128>}, {pipeline_mode = #tpu.pipeline_mode<synchronous>, transform_indices = @transform_4, window_bounds = array<i64: 1, 128>}, {pipeline_mode = #tpu.pipeline_mode<synchronous>, transform_indices = @transform_5, window_bounds = array<i64: 2, 128, 64>}, {transform_indices = @transform_6, window_bounds = array<i64: 1, 16, 128>}, {transform_indices = @transform_7, window_bounds = array<i64: 1, 8, 64>}]} {
    %c0 = arith.constant 0 : index
    %c0_0 = arith.constant 0 : index
    %c0_1 = arith.constant 0 : index
    %0 = vector.load %arg1[%c0, %c0_0, %c0_1] : memref<1x16x48xbf16, #tpu.memory_space<vmem>>, vector<1x16x48xbf16>
    %1 = vector.shape_cast %0 : vector<1x16x48xbf16> to vector<16x48xbf16>
    %cst = arith.constant 0.000000e+00 : bf16
    %2 = vector.broadcast %cst : bf16 to vector<1x54xbf16>
    %c0_2 = arith.constant 0 : index
    %c0_3 = arith.constant 0 : index
    %3 = vector.load %arg9[%c0_2, %c0_3] : memref<18x54xbf16, #tpu.memory_space<vmem>>, vector<1x54xbf16>
    tpu.vector_store %arg9[%c0_2, %c0_3], %2 {strides = array<i32>} : memref<18x54xbf16, #tpu.memory_space<vmem>>, vector<1x54xbf16>,
    %cst_4 = arith.constant 0.000000e+00 : bf16
    %4 = vector.broadcast %cst_4 : bf16 to vector<1x54xbf16>
    %c17 = arith.constant 17 : index
    %c0_5 = arith.constant 0 : index
    %5 = vector.load %arg9[%c17, %c0_5] : memref<18x54xbf16, #tpu.memory_space<vmem>>, vector<1x54xbf16>
    tpu.vector_store %arg9[%c17, %c0_5], %4 {strides = array<i32>} : memref<18x54xbf16, #tpu.memory_space<vmem>>, vector<1x54xbf16>,
    %cst_6 = arith.constant 0.000000e+00 : bf16
    %6 = vector.broadcast %cst_6 : bf16 to vector<18x3xbf16>
    %c0_7 = arith.constant 0 : index
    %c0_8 = arith.constant 0 : index
    %7 = vector.load %arg9[%c0_7, %c0_8] : memref<18x54xbf16, #tpu.memory_space<vmem>>, vector<18x3xbf16>
    tpu.vector_store %arg9[%c0_7, %c0_8], %6 {strides = array<i32>} : memref<18x54xbf16, #tpu.memory_space<vmem>>, vector<18x3xbf16>,
    %cst_9 = arith.constant 0.000000e+00 : bf16
    %8 = vector.broadcast %cst_9 : bf16 to vector<18x3xbf16>
    %c0_10 = arith.constant 0 : index
    %c51 = arith.constant 51 : index
    %9 = vector.load %arg9[%c0_10, %c51] : memref<18x54xbf16, #tpu.memory_space<vmem>>, vector<18x3xbf16>
    tpu.vector_store %arg9[%c0_10, %c51], %8 {strides = array<i32>} : memref<18x54xbf16, #tpu.memory_space<vmem>>, vector<18x3xbf16>,
    %c1 = arith.constant 1 : index
    %c3 = arith.constant 3 : index
    %10 = vector.load %arg9[%c1, %c3] : memref<18x54xbf16, #tpu.memory_space<vmem>>, vector<16x48xbf16>
    tpu.vector_store %arg9[%c1, %c3], %1 {strides = array<i32>} : memref<18x54xbf16, #tpu.memory_space<vmem>>, vector<16x48xbf16>,
    %c0_11 = arith.constant 0 : index
    %c0_12 = arith.constant 0 : index
    %11 = vector.load %arg9[%c0_11, %c0_12] : memref<18x54xbf16, #tpu.memory_space<vmem>>, vector<16x54xbf16>
    %c0_13 = arith.constant 0 : index
    %c0_14 = arith.constant 0 : index
    %c0_15 = arith.constant 0 : index
    %12 = vector.load %arg2[%c0_13, %c0_14, %c0_15] : memref<3x54x128xbf16, #tpu.memory_space<vmem>>, vector<1x54x128xbf16>
    %13 = vector.shape_cast %12 : vector<1x54x128xbf16> to vector<54x128xbf16>
    %cst_16 = arith.constant dense<0.000000e+00> : vector<16x128xf32>
    %14 = tpu.matmul %11, %13, %cst_16 {dimension_numbers = #tpu.dot_dimension_numbers<[1], [0], [0], [1], [0, 0, 1, 1], [], []>} : vector<16x54xbf16>, vector<54x128xbf16>, vector<16x128xf32> -> vector<16x128xf32>
    %c1_17 = arith.constant 1 : index
    %c0_18 = arith.constant 0 : index
    %15 = vector.load %arg9[%c1_17, %c0_18] : memref<18x54xbf16, #tpu.memory_space<vmem>>, vector<16x54xbf16>
    %c1_19 = arith.constant 1 : index
    %c0_20 = arith.constant 0 : index
    %c0_21 = arith.constant 0 : index
    %16 = vector.load %arg2[%c1_19, %c0_20, %c0_21] : memref<3x54x128xbf16, #tpu.memory_space<vmem>>, vector<1x54x128xbf16>
    %17 = vector.shape_cast %16 : vector<1x54x128xbf16> to vector<54x128xbf16>
    %cst_22 = arith.constant dense<0.000000e+00> : vector<16x128xf32>
    %18 = tpu.matmul %15, %17, %cst_22 {dimension_numbers = #tpu.dot_dimension_numbers<[1], [0], [0], [1], [0, 0, 1, 1], [], []>} : vector<16x54xbf16>, vector<54x128xbf16>, vector<16x128xf32> -> vector<16x128xf32>
    %19 = arith.addf %14, %18 : vector<16x128xf32>
    %c2 = arith.constant 2 : index
    %c0_23 = arith.constant 0 : index
    %20 = vector.load %arg9[%c2, %c0_23] : memref<18x54xbf16, #tpu.memory_space<vmem>>, vector<16x54xbf16>
    %c2_24 = arith.constant 2 : index
    %c0_25 = arith.constant 0 : index
    %c0_26 = arith.constant 0 : index
    %21 = vector.load %arg2[%c2_24, %c0_25, %c0_26] : memref<3x54x128xbf16, #tpu.memory_space<vmem>>, vector<1x54x128xbf16>
    %22 = vector.shape_cast %21 : vector<1x54x128xbf16> to vector<54x128xbf16>
    %cst_27 = arith.constant dense<0.000000e+00> : vector<16x128xf32>
    %23 = tpu.matmul %20, %22, %cst_27 {dimension_numbers = #tpu.dot_dimension_numbers<[1], [0], [0], [1], [0, 0, 1, 1], [], []>} : vector<16x54xbf16>, vector<54x128xbf16>, vector<16x128xf32> -> vector<16x128xf32>
    %24 = arith.addf %19, %23 : vector<16x128xf32>
    %c0_28 = arith.constant 0 : index
    %c0_29 = arith.constant 0 : index
    %25 = vector.load %arg3[%c0_28, %c0_29] : memref<1x128xf32, #tpu.memory_space<vmem>>, vector<1x128xf32>
    %26 = vector.broadcast %25 : vector<1x128xf32> to vector<16x128xf32>
    %27 = arith.addf %24, %26 : vector<16x128xf32>
    %cst_30 = arith.constant 0.000000e+00 : f32
    %28 = vector.broadcast %cst_30 : f32 to vector<16x128xf32>
    %29 = arith.maximumf %27, %28 : vector<16x128xf32>
    %30 = arith.truncf %29 : vector<16x128xf32> to vector<16x128xbf16>
    %cst_31 = arith.constant 0.000000e+00 : bf16
    %31 = vector.broadcast %cst_31 : bf16 to vector<1x144xbf16>
    %c0_32 = arith.constant 0 : index
    %c0_33 = arith.constant 0 : index
    %32 = vector.load %arg10[%c0_32, %c0_33] : memref<18x144xbf16, #tpu.memory_space<vmem>>, vector<1x144xbf16>
    tpu.vector_store %arg10[%c0_32, %c0_33], %31 {strides = array<i32>} : memref<18x144xbf16, #tpu.memory_space<vmem>>, vector<1x144xbf16>,
    %cst_34 = arith.constant 0.000000e+00 : bf16
    %33 = vector.broadcast %cst_34 : bf16 to vector<1x144xbf16>
    %c17_35 = arith.constant 17 : index
    %c0_36 = arith.constant 0 : index
    %34 = vector.load %arg10[%c17_35, %c0_36] : memref<18x144xbf16, #tpu.memory_space<vmem>>, vector<1x144xbf16>
    tpu.vector_store %arg10[%c17_35, %c0_36], %33 {strides = array<i32>} : memref<18x144xbf16, #tpu.memory_space<vmem>>, vector<1x144xbf16>,
    %cst_37 = arith.constant 0.000000e+00 : bf16
    %35 = vector.broadcast %cst_37 : bf16 to vector<18x8xbf16>
    %c0_38 = arith.constant 0 : index
    %c0_39 = arith.constant 0 : index
    %36 = vector.load %arg10[%c0_38, %c0_39] : memref<18x144xbf16, #tpu.memory_space<vmem>>, vector<18x8xbf16>
    tpu.vector_store %arg10[%c0_38, %c0_39], %35 {strides = array<i32>} : memref<18x144xbf16, #tpu.memory_space<vmem>>, vector<18x8xbf16>,
    %cst_40 = arith.constant 0.000000e+00 : bf16
    %37 = vector.broadcast %cst_40 : bf16 to vector<18x8xbf16>
    %c0_41 = arith.constant 0 : index
    %c136 = arith.constant 136 : index
    %38 = vector.load %arg10[%c0_41, %c136] : memref<18x144xbf16, #tpu.memory_space<vmem>>, vector<18x8xbf16>
    tpu.vector_store %arg10[%c0_41, %c136], %37 {strides = array<i32>} : memref<18x144xbf16, #tpu.memory_space<vmem>>, vector<18x8xbf16>,
    %c1_42 = arith.constant 1 : index
    %c8 = arith.constant 8 : index
    %39 = vector.load %arg10[%c1_42, %c8] : memref<18x144xbf16, #tpu.memory_space<vmem>>, vector<16x128xbf16>
    tpu.vector_store %arg10[%c1_42, %c8], %30 {strides = array<i32>} : memref<18x144xbf16, #tpu.memory_space<vmem>>, vector<16x128xbf16>,
    %c0_43 = arith.constant 0 : index
    %c0_44 = arith.constant 0 : index
    %40 = vector.load %arg10[%c0_43, %c0_44] : memref<18x144xbf16, #tpu.memory_space<vmem>>, vector<16x144xbf16>
    %c0_45 = arith.constant 0 : index
    %c0_46 = arith.constant 0 : index
    %c0_47 = arith.constant 0 : index
    %41 = vector.load %arg4[%c0_45, %c0_46, %c0_47] : memref<3x144x128xbf16, #tpu.memory_space<vmem>>, vector<1x144x128xbf16>
    %42 = vector.shape_cast %41 : vector<1x144x128xbf16> to vector<144x128xbf16>
    %cst_48 = arith.constant dense<0.000000e+00> : vector<16x128xf32>
    %43 = tpu.matmul %40, %42, %cst_48 {dimension_numbers = #tpu.dot_dimension_numbers<[1], [0], [0], [1], [0, 0, 1, 1], [], []>} : vector<16x144xbf16>, vector<144x128xbf16>, vector<16x128xf32> -> vector<16x128xf32>
    %c1_49 = arith.constant 1 : index
    %c0_50 = arith.constant 0 : index
    %44 = vector.load %arg10[%c1_49, %c0_50] : memref<18x144xbf16, #tpu.memory_space<vmem>>, vector<16x144xbf16>
    %c1_51 = arith.constant 1 : index
    %c0_52 = arith.constant 0 : index
    %c0_53 = arith.constant 0 : index
    %45 = vector.load %arg4[%c1_51, %c0_52, %c0_53] : memref<3x144x128xbf16, #tpu.memory_space<vmem>>, vector<1x144x128xbf16>
    %46 = vector.shape_cast %45 : vector<1x144x128xbf16> to vector<144x128xbf16>
    %cst_54 = arith.constant dense<0.000000e+00> : vector<16x128xf32>
    %47 = tpu.matmul %44, %46, %cst_54 {dimension_numbers = #tpu.dot_dimension_numbers<[1], [0], [0], [1], [0, 0, 1, 1], [], []>} : vector<16x144xbf16>, vector<144x128xbf16>, vector<16x128xf32> -> vector<16x128xf32>
    %48 = arith.addf %43, %47 : vector<16x128xf32>
    %c2_55 = arith.constant 2 : index
    %c0_56 = arith.constant 0 : index
    %49 = vector.load %arg10[%c2_55, %c0_56] : memref<18x144xbf16, #tpu.memory_space<vmem>>, vector<16x144xbf16>
    %c2_57 = arith.constant 2 : index
    %c0_58 = arith.constant 0 : index
    %c0_59 = arith.constant 0 : index
    %50 = vector.load %arg4[%c2_57, %c0_58, %c0_59] : memref<3x144x128xbf16, #tpu.memory_space<vmem>>, vector<1x144x128xbf16>
    %51 = vector.shape_cast %50 : vector<1x144x128xbf16> to vector<144x128xbf16>
    %cst_60 = arith.constant dense<0.000000e+00> : vector<16x128xf32>
    %52 = tpu.matmul %49, %51, %cst_60 {dimension_numbers = #tpu.dot_dimension_numbers<[1], [0], [0], [1], [0, 0, 1, 1], [], []>} : vector<16x144xbf16>, vector<144x128xbf16>, vector<16x128xf32> -> vector<16x128xf32>
    %53 = arith.addf %48, %52 : vector<16x128xf32>
    %c0_61 = arith.constant 0 : index
    %c0_62 = arith.constant 0 : index
    %54 = vector.load %arg5[%c0_61, %c0_62] : memref<1x128xf32, #tpu.memory_space<vmem>>, vector<1x128xf32>
    %55 = vector.broadcast %54 : vector<1x128xf32> to vector<16x128xf32>
    %56 = arith.addf %53, %55 : vector<16x128xf32>
    %57 = arith.truncf %56 : vector<16x128xf32> to vector<16x128xbf16>
    %58 = vector.shape_cast %57 : vector<16x128xbf16> to vector<1x16x128xbf16>
    %c0_63 = arith.constant 0 : index
    %c0_64 = arith.constant 0 : index
    %c0_65 = arith.constant 0 : index
    %59 = vector.load %arg7[%c0_63, %c0_64, %c0_65] : memref<1x16x128xbf16, #tpu.memory_space<vmem>>, vector<1x16x128xbf16>
    tpu.vector_store %arg7[%c0_63, %c0_64, %c0_65], %58 {strides = array<i32>} : memref<1x16x128xbf16, #tpu.memory_space<vmem>>, vector<1x16x128xbf16>,
    %cst_66 = arith.constant 0.000000e+00 : f32
    %60 = vector.broadcast %cst_66 : f32 to vector<16x128xf32>
    %61 = arith.maximumf %56, %60 : vector<16x128xf32>
    %62 = arith.truncf %61 : vector<16x128xf32> to vector<16x128xbf16>
    %63 = vector.shape_cast %62 : vector<16x128xbf16> to vector<8x2x128xbf16>
    %64 = vector.extract_strided_slice %63 {offsets = [0, 0, 0], sizes = [8, 1, 128], strides = [1, 1, 1]} : vector<8x2x128xbf16> to vector<8x1x128xbf16>
    %65 = vector.shape_cast %64 : vector<8x1x128xbf16> to vector<8x128xbf16>
    %66 = vector.extract_strided_slice %63 {offsets = [0, 1, 0], sizes = [8, 1, 128], strides = [1, 1, 1]} : vector<8x2x128xbf16> to vector<8x1x128xbf16>
    %67 = vector.shape_cast %66 : vector<8x1x128xbf16> to vector<8x128xbf16>
    %68 = arith.maximumf %65, %67 : vector<8x128xbf16>
    %c0_67 = arith.constant 0 : index
    %c0_68 = arith.constant 0 : index
    %c0_69 = arith.constant 0 : index
    %69 = vector.load %arg6[%c0_67, %c0_68, %c0_69] : memref<2x128x64xbf16, #tpu.memory_space<vmem>>, vector<1x128x64xbf16>
    %70 = vector.shape_cast %69 : vector<1x128x64xbf16> to vector<128x64xbf16>
    %cst_70 = arith.constant dense<0.000000e+00> : vector<8x64xf32>
    %71 = tpu.matmul %68, %70, %cst_70 {dimension_numbers = #tpu.dot_dimension_numbers<[1], [0], [0], [1], [0, 0, 1, 1], [], []>} : vector<8x128xbf16>, vector<128x64xbf16>, vector<8x64xf32> -> vector<8x64xf32>
    %c1_71 = arith.constant 1 : index
    %c0_72 = arith.constant 0 : index
    %c0_73 = arith.constant 0 : index
    %72 = vector.load %arg6[%c1_71, %c0_72, %c0_73] : memref<2x128x64xbf16, #tpu.memory_space<vmem>>, vector<1x128x64xbf16>
    %73 = vector.shape_cast %72 : vector<1x128x64xbf16> to vector<128x64xbf16>
    %cst_74 = arith.constant dense<0.000000e+00> : vector<8x64xf32>
    %74 = tpu.matmul %68, %73, %cst_74 {dimension_numbers = #tpu.dot_dimension_numbers<[1], [0], [0], [1], [0, 0, 1, 1], [], []>} : vector<8x128xbf16>, vector<128x64xbf16>, vector<8x64xf32> -> vector<8x64xf32>
    %75 = arith.maximumf %71, %74 : vector<8x64xf32>
    %76 = arith.truncf %75 : vector<8x64xf32> to vector<8x64xbf16>
    %77 = vector.shape_cast %76 : vector<8x64xbf16> to vector<1x8x64xbf16>
    %c0_75 = arith.constant 0 : index
    %c0_76 = arith.constant 0 : index
    %c0_77 = arith.constant 0 : index
    %78 = vector.load %arg8[%c0_75, %c0_76, %c0_77] : memref<1x8x64xbf16, #tpu.memory_space<vmem>>, vector<1x8x64xbf16>
    tpu.vector_store %arg8[%c0_75, %c0_76, %c0_77], %77 {strides = array<i32>} : memref<1x8x64xbf16, #tpu.memory_space<vmem>>, vector<1x8x64xbf16>,
    return
  }
  func.func @transform_0(%arg0: i32) -> (i32, i32, i32) {
    %c0_i32 = arith.constant 0 : i32
    %c0_i32_0 = arith.constant 0 : i32
    %c0_i32_1 = arith.constant 0 : i32
    return %arg0, %c0_i32, %c0_i32_0 : i32, i32, i32
  }
  func.func @transform_1(%arg0: i32) -> (i32, i32, i32) {
    %c0_i32 = arith.constant 0 : i32
    %c0_i32_0 = arith.constant 0 : i32
    %c0_i32_1 = arith.constant 0 : i32
    %c0_i32_2 = arith.constant 0 : i32
    return %c0_i32, %c0_i32_0, %c0_i32_1 : i32, i32, i32
  }
  func.func @transform_2(%arg0: i32) -> (i32, i32) {
    %c0_i32 = arith.constant 0 : i32
    %c0_i32_0 = arith.constant 0 : i32
    %c0_i32_1 = arith.constant 0 : i32
    return %c0_i32, %c0_i32_0 : i32, i32
  }
  func.func @transform_3(%arg0: i32) -> (i32, i32, i32) {
    %c0_i32 = arith.constant 0 : i32
    %c0_i32_0 = arith.constant 0 : i32
    %c0_i32_1 = arith.constant 0 : i32
    %c0_i32_2 = arith.constant 0 : i32
    return %c0_i32, %c0_i32_0, %c0_i32_1 : i32, i32, i32
  }
  func.func @transform_4(%arg0: i32) -> (i32, i32) {
    %c0_i32 = arith.constant 0 : i32
    %c0_i32_0 = arith.constant 0 : i32
    %c0_i32_1 = arith.constant 0 : i32
    return %c0_i32, %c0_i32_0 : i32, i32
  }
  func.func @transform_5(%arg0: i32) -> (i32, i32, i32) {
    %c0_i32 = arith.constant 0 : i32
    %c0_i32_0 = arith.constant 0 : i32
    %c0_i32_1 = arith.constant 0 : i32
    %c0_i32_2 = arith.constant 0 : i32
    return %c0_i32, %c0_i32_0, %c0_i32_1 : i32, i32, i32
  }
  func.func @transform_6(%arg0: i32) -> (i32, i32, i32) {
    %c0_i32 = arith.constant 0 : i32
    %c0_i32_0 = arith.constant 0 : i32
    %c0_i32_1 = arith.constant 0 : i32
    return %arg0, %c0_i32, %c0_i32_0 : i32, i32, i32
  }
  func.func @transform_7(%arg0: i32) -> (i32, i32, i32) {
    %c0_i32 = arith.constant 0 : i32
    %c0_i32_0 = arith.constant 0 : i32
    %c0_i32_1 = arith.constant 0 : i32
    return %arg0, %c0_i32, %c0_i32_0 : i32, i32, i32
  }
}

module attributes {stable_mosaic.version = 11 : i64} {
  func.func @kernel(%arg0: i32, %arg1: memref<1x8x64xbf16, #tpu.memory_space<vmem>>, %arg2: memref<3x80x128xbf16, #tpu.memory_space<vmem>>, %arg3: memref<1x128xf32, #tpu.memory_space<vmem>>, %arg4: memref<3x160x128xbf16, #tpu.memory_space<vmem>>, %arg5: memref<1x128xf32, #tpu.memory_space<vmem>>, %arg6: memref<1x8x128xbf16, #tpu.memory_space<vmem>>, %arg7: memref<10x80xbf16, #tpu.memory_space<vmem>>, %arg8: memref<10x160xbf16, #tpu.memory_space<vmem>>) attributes {dimension_semantics = [#tpu.dimension_semantics<parallel>], iteration_bounds = array<i64: 4>, scalar_prefetch = 0 : i64, scratch_operands = 2 : i64, tpu.core_type = #tpu.core_type<tc>, window_params = [{transform_indices = @transform_0, window_bounds = array<i64: 1, 8, 64>}, {pipeline_mode = #tpu.pipeline_mode<synchronous>, transform_indices = @transform_1, window_bounds = array<i64: 3, 80, 128>}, {pipeline_mode = #tpu.pipeline_mode<synchronous>, transform_indices = @transform_2, window_bounds = array<i64: 1, 128>}, {pipeline_mode = #tpu.pipeline_mode<synchronous>, transform_indices = @transform_3, window_bounds = array<i64: 3, 160, 128>}, {pipeline_mode = #tpu.pipeline_mode<synchronous>, transform_indices = @transform_4, window_bounds = array<i64: 1, 128>}, {transform_indices = @transform_5, window_bounds = array<i64: 1, 8, 128>}]} {
    %c0 = arith.constant 0 : index
    %c0_0 = arith.constant 0 : index
    %c0_1 = arith.constant 0 : index
    %0 = vector.load %arg1[%c0, %c0_0, %c0_1] : memref<1x8x64xbf16, #tpu.memory_space<vmem>>, vector<1x8x64xbf16>
    %1 = vector.shape_cast %0 : vector<1x8x64xbf16> to vector<8x64xbf16>
    %cst = arith.constant 0.000000e+00 : bf16
    %2 = vector.broadcast %cst : bf16 to vector<1x80xbf16>
    %c0_2 = arith.constant 0 : index
    %c0_3 = arith.constant 0 : index
    %3 = vector.load %arg7[%c0_2, %c0_3] : memref<10x80xbf16, #tpu.memory_space<vmem>>, vector<1x80xbf16>
    tpu.vector_store %arg7[%c0_2, %c0_3], %2 {strides = array<i32>} : memref<10x80xbf16, #tpu.memory_space<vmem>>, vector<1x80xbf16>,
    %cst_4 = arith.constant 0.000000e+00 : bf16
    %4 = vector.broadcast %cst_4 : bf16 to vector<1x80xbf16>
    %c9 = arith.constant 9 : index
    %c0_5 = arith.constant 0 : index
    %5 = vector.load %arg7[%c9, %c0_5] : memref<10x80xbf16, #tpu.memory_space<vmem>>, vector<1x80xbf16>
    tpu.vector_store %arg7[%c9, %c0_5], %4 {strides = array<i32>} : memref<10x80xbf16, #tpu.memory_space<vmem>>, vector<1x80xbf16>,
    %cst_6 = arith.constant 0.000000e+00 : bf16
    %6 = vector.broadcast %cst_6 : bf16 to vector<10x8xbf16>
    %c0_7 = arith.constant 0 : index
    %c0_8 = arith.constant 0 : index
    %7 = vector.load %arg7[%c0_7, %c0_8] : memref<10x80xbf16, #tpu.memory_space<vmem>>, vector<10x8xbf16>
    tpu.vector_store %arg7[%c0_7, %c0_8], %6 {strides = array<i32>} : memref<10x80xbf16, #tpu.memory_space<vmem>>, vector<10x8xbf16>,
    %cst_9 = arith.constant 0.000000e+00 : bf16
    %8 = vector.broadcast %cst_9 : bf16 to vector<10x8xbf16>
    %c0_10 = arith.constant 0 : index
    %c72 = arith.constant 72 : index
    %9 = vector.load %arg7[%c0_10, %c72] : memref<10x80xbf16, #tpu.memory_space<vmem>>, vector<10x8xbf16>
    tpu.vector_store %arg7[%c0_10, %c72], %8 {strides = array<i32>} : memref<10x80xbf16, #tpu.memory_space<vmem>>, vector<10x8xbf16>,
    %c1 = arith.constant 1 : index
    %c8 = arith.constant 8 : index
    %10 = vector.load %arg7[%c1, %c8] : memref<10x80xbf16, #tpu.memory_space<vmem>>, vector<8x64xbf16>
    tpu.vector_store %arg7[%c1, %c8], %1 {strides = array<i32>} : memref<10x80xbf16, #tpu.memory_space<vmem>>, vector<8x64xbf16>,
    %c0_11 = arith.constant 0 : index
    %c0_12 = arith.constant 0 : index
    %11 = vector.load %arg7[%c0_11, %c0_12] : memref<10x80xbf16, #tpu.memory_space<vmem>>, vector<8x80xbf16>
    %c0_13 = arith.constant 0 : index
    %c0_14 = arith.constant 0 : index
    %c0_15 = arith.constant 0 : index
    %12 = vector.load %arg2[%c0_13, %c0_14, %c0_15] : memref<3x80x128xbf16, #tpu.memory_space<vmem>>, vector<1x80x128xbf16>
    %13 = vector.shape_cast %12 : vector<1x80x128xbf16> to vector<80x128xbf16>
    %cst_16 = arith.constant dense<0.000000e+00> : vector<8x128xf32>
    %14 = tpu.matmul %11, %13, %cst_16 {dimension_numbers = #tpu.dot_dimension_numbers<[1], [0], [0], [1], [0, 0, 1, 1], [], []>} : vector<8x80xbf16>, vector<80x128xbf16>, vector<8x128xf32> -> vector<8x128xf32>
    %c1_17 = arith.constant 1 : index
    %c0_18 = arith.constant 0 : index
    %15 = vector.load %arg7[%c1_17, %c0_18] : memref<10x80xbf16, #tpu.memory_space<vmem>>, vector<8x80xbf16>
    %c1_19 = arith.constant 1 : index
    %c0_20 = arith.constant 0 : index
    %c0_21 = arith.constant 0 : index
    %16 = vector.load %arg2[%c1_19, %c0_20, %c0_21] : memref<3x80x128xbf16, #tpu.memory_space<vmem>>, vector<1x80x128xbf16>
    %17 = vector.shape_cast %16 : vector<1x80x128xbf16> to vector<80x128xbf16>
    %cst_22 = arith.constant dense<0.000000e+00> : vector<8x128xf32>
    %18 = tpu.matmul %15, %17, %cst_22 {dimension_numbers = #tpu.dot_dimension_numbers<[1], [0], [0], [1], [0, 0, 1, 1], [], []>} : vector<8x80xbf16>, vector<80x128xbf16>, vector<8x128xf32> -> vector<8x128xf32>
    %19 = arith.addf %14, %18 : vector<8x128xf32>
    %c2 = arith.constant 2 : index
    %c0_23 = arith.constant 0 : index
    %20 = vector.load %arg7[%c2, %c0_23] : memref<10x80xbf16, #tpu.memory_space<vmem>>, vector<8x80xbf16>
    %c2_24 = arith.constant 2 : index
    %c0_25 = arith.constant 0 : index
    %c0_26 = arith.constant 0 : index
    %21 = vector.load %arg2[%c2_24, %c0_25, %c0_26] : memref<3x80x128xbf16, #tpu.memory_space<vmem>>, vector<1x80x128xbf16>
    %22 = vector.shape_cast %21 : vector<1x80x128xbf16> to vector<80x128xbf16>
    %cst_27 = arith.constant dense<0.000000e+00> : vector<8x128xf32>
    %23 = tpu.matmul %20, %22, %cst_27 {dimension_numbers = #tpu.dot_dimension_numbers<[1], [0], [0], [1], [0, 0, 1, 1], [], []>} : vector<8x80xbf16>, vector<80x128xbf16>, vector<8x128xf32> -> vector<8x128xf32>
    %24 = arith.addf %19, %23 : vector<8x128xf32>
    %c0_28 = arith.constant 0 : index
    %c0_29 = arith.constant 0 : index
    %25 = vector.load %arg3[%c0_28, %c0_29] : memref<1x128xf32, #tpu.memory_space<vmem>>, vector<1x128xf32>
    %26 = vector.broadcast %25 : vector<1x128xf32> to vector<8x128xf32>
    %27 = arith.addf %24, %26 : vector<8x128xf32>
    %cst_30 = arith.constant 0.000000e+00 : f32
    %28 = vector.broadcast %cst_30 : f32 to vector<8x128xf32>
    %29 = arith.maximumf %27, %28 : vector<8x128xf32>
    %30 = arith.truncf %29 : vector<8x128xf32> to vector<8x128xbf16>
    %cst_31 = arith.constant 0.000000e+00 : bf16
    %31 = vector.broadcast %cst_31 : bf16 to vector<1x160xbf16>
    %c0_32 = arith.constant 0 : index
    %c0_33 = arith.constant 0 : index
    %32 = vector.load %arg8[%c0_32, %c0_33] : memref<10x160xbf16, #tpu.memory_space<vmem>>, vector<1x160xbf16>
    tpu.vector_store %arg8[%c0_32, %c0_33], %31 {strides = array<i32>} : memref<10x160xbf16, #tpu.memory_space<vmem>>, vector<1x160xbf16>,
    %cst_34 = arith.constant 0.000000e+00 : bf16
    %33 = vector.broadcast %cst_34 : bf16 to vector<1x160xbf16>
    %c9_35 = arith.constant 9 : index
    %c0_36 = arith.constant 0 : index
    %34 = vector.load %arg8[%c9_35, %c0_36] : memref<10x160xbf16, #tpu.memory_space<vmem>>, vector<1x160xbf16>
    tpu.vector_store %arg8[%c9_35, %c0_36], %33 {strides = array<i32>} : memref<10x160xbf16, #tpu.memory_space<vmem>>, vector<1x160xbf16>,
    %cst_37 = arith.constant 0.000000e+00 : bf16
    %35 = vector.broadcast %cst_37 : bf16 to vector<10x16xbf16>
    %c0_38 = arith.constant 0 : index
    %c0_39 = arith.constant 0 : index
    %36 = vector.load %arg8[%c0_38, %c0_39] : memref<10x160xbf16, #tpu.memory_space<vmem>>, vector<10x16xbf16>
    tpu.vector_store %arg8[%c0_38, %c0_39], %35 {strides = array<i32>} : memref<10x160xbf16, #tpu.memory_space<vmem>>, vector<10x16xbf16>,
    %cst_40 = arith.constant 0.000000e+00 : bf16
    %37 = vector.broadcast %cst_40 : bf16 to vector<10x16xbf16>
    %c0_41 = arith.constant 0 : index
    %c144 = arith.constant 144 : index
    %38 = vector.load %arg8[%c0_41, %c144] : memref<10x160xbf16, #tpu.memory_space<vmem>>, vector<10x16xbf16>
    tpu.vector_store %arg8[%c0_41, %c144], %37 {strides = array<i32>} : memref<10x160xbf16, #tpu.memory_space<vmem>>, vector<10x16xbf16>,
    %c1_42 = arith.constant 1 : index
    %c16 = arith.constant 16 : index
    %39 = vector.load %arg8[%c1_42, %c16] : memref<10x160xbf16, #tpu.memory_space<vmem>>, vector<8x128xbf16>
    tpu.vector_store %arg8[%c1_42, %c16], %30 {strides = array<i32>} : memref<10x160xbf16, #tpu.memory_space<vmem>>, vector<8x128xbf16>,
    %c0_43 = arith.constant 0 : index
    %c0_44 = arith.constant 0 : index
    %40 = vector.load %arg8[%c0_43, %c0_44] : memref<10x160xbf16, #tpu.memory_space<vmem>>, vector<8x160xbf16>
    %c0_45 = arith.constant 0 : index
    %c0_46 = arith.constant 0 : index
    %c0_47 = arith.constant 0 : index
    %41 = vector.load %arg4[%c0_45, %c0_46, %c0_47] : memref<3x160x128xbf16, #tpu.memory_space<vmem>>, vector<1x160x128xbf16>
    %42 = vector.shape_cast %41 : vector<1x160x128xbf16> to vector<160x128xbf16>
    %cst_48 = arith.constant dense<0.000000e+00> : vector<8x128xf32>
    %43 = tpu.matmul %40, %42, %cst_48 {dimension_numbers = #tpu.dot_dimension_numbers<[1], [0], [0], [1], [0, 0, 1, 1], [], []>} : vector<8x160xbf16>, vector<160x128xbf16>, vector<8x128xf32> -> vector<8x128xf32>
    %c1_49 = arith.constant 1 : index
    %c0_50 = arith.constant 0 : index
    %44 = vector.load %arg8[%c1_49, %c0_50] : memref<10x160xbf16, #tpu.memory_space<vmem>>, vector<8x160xbf16>
    %c1_51 = arith.constant 1 : index
    %c0_52 = arith.constant 0 : index
    %c0_53 = arith.constant 0 : index
    %45 = vector.load %arg4[%c1_51, %c0_52, %c0_53] : memref<3x160x128xbf16, #tpu.memory_space<vmem>>, vector<1x160x128xbf16>
    %46 = vector.shape_cast %45 : vector<1x160x128xbf16> to vector<160x128xbf16>
    %cst_54 = arith.constant dense<0.000000e+00> : vector<8x128xf32>
    %47 = tpu.matmul %44, %46, %cst_54 {dimension_numbers = #tpu.dot_dimension_numbers<[1], [0], [0], [1], [0, 0, 1, 1], [], []>} : vector<8x160xbf16>, vector<160x128xbf16>, vector<8x128xf32> -> vector<8x128xf32>
    %48 = arith.addf %43, %47 : vector<8x128xf32>
    %c2_55 = arith.constant 2 : index
    %c0_56 = arith.constant 0 : index
    %49 = vector.load %arg8[%c2_55, %c0_56] : memref<10x160xbf16, #tpu.memory_space<vmem>>, vector<8x160xbf16>
    %c2_57 = arith.constant 2 : index
    %c0_58 = arith.constant 0 : index
    %c0_59 = arith.constant 0 : index
    %50 = vector.load %arg4[%c2_57, %c0_58, %c0_59] : memref<3x160x128xbf16, #tpu.memory_space<vmem>>, vector<1x160x128xbf16>
    %51 = vector.shape_cast %50 : vector<1x160x128xbf16> to vector<160x128xbf16>
    %cst_60 = arith.constant dense<0.000000e+00> : vector<8x128xf32>
    %52 = tpu.matmul %49, %51, %cst_60 {dimension_numbers = #tpu.dot_dimension_numbers<[1], [0], [0], [1], [0, 0, 1, 1], [], []>} : vector<8x160xbf16>, vector<160x128xbf16>, vector<8x128xf32> -> vector<8x128xf32>
    %53 = arith.addf %48, %52 : vector<8x128xf32>
    %c0_61 = arith.constant 0 : index
    %c0_62 = arith.constant 0 : index
    %54 = vector.load %arg5[%c0_61, %c0_62] : memref<1x128xf32, #tpu.memory_space<vmem>>, vector<1x128xf32>
    %55 = vector.broadcast %54 : vector<1x128xf32> to vector<8x128xf32>
    %56 = arith.addf %53, %55 : vector<8x128xf32>
    %57 = arith.truncf %56 : vector<8x128xf32> to vector<8x128xbf16>
    %58 = vector.shape_cast %57 : vector<8x128xbf16> to vector<1x8x128xbf16>
    %c0_63 = arith.constant 0 : index
    %c0_64 = arith.constant 0 : index
    %c0_65 = arith.constant 0 : index
    %59 = vector.load %arg6[%c0_63, %c0_64, %c0_65] : memref<1x8x128xbf16, #tpu.memory_space<vmem>>, vector<1x8x128xbf16>
    tpu.vector_store %arg6[%c0_63, %c0_64, %c0_65], %58 {strides = array<i32>} : memref<1x8x128xbf16, #tpu.memory_space<vmem>>, vector<1x8x128xbf16>,
    return
  }
  func.func @transform_0(%arg0: i32) -> (i32, i32, i32) {
    %c0_i32 = arith.constant 0 : i32
    %c0_i32_0 = arith.constant 0 : i32
    %c0_i32_1 = arith.constant 0 : i32
    return %arg0, %c0_i32, %c0_i32_0 : i32, i32, i32
  }
  func.func @transform_1(%arg0: i32) -> (i32, i32, i32) {
    %c0_i32 = arith.constant 0 : i32
    %c0_i32_0 = arith.constant 0 : i32
    %c0_i32_1 = arith.constant 0 : i32
    %c0_i32_2 = arith.constant 0 : i32
    return %c0_i32, %c0_i32_0, %c0_i32_1 : i32, i32, i32
  }
  func.func @transform_2(%arg0: i32) -> (i32, i32) {
    %c0_i32 = arith.constant 0 : i32
    %c0_i32_0 = arith.constant 0 : i32
    %c0_i32_1 = arith.constant 0 : i32
    return %c0_i32, %c0_i32_0 : i32, i32
  }
  func.func @transform_3(%arg0: i32) -> (i32, i32, i32) {
    %c0_i32 = arith.constant 0 : i32
    %c0_i32_0 = arith.constant 0 : i32
    %c0_i32_1 = arith.constant 0 : i32
    %c0_i32_2 = arith.constant 0 : i32
    return %c0_i32, %c0_i32_0, %c0_i32_1 : i32, i32, i32
  }
  func.func @transform_4(%arg0: i32) -> (i32, i32) {
    %c0_i32 = arith.constant 0 : i32
    %c0_i32_0 = arith.constant 0 : i32
    %c0_i32_1 = arith.constant 0 : i32
    return %c0_i32, %c0_i32_0 : i32, i32
  }
  func.func @transform_5(%arg0: i32) -> (i32, i32, i32) {
    %c0_i32 = arith.constant 0 : i32
    %c0_i32_0 = arith.constant 0 : i32
    %c0_i32_1 = arith.constant 0 : i32
    return %arg0, %c0_i32, %c0_i32_0 : i32, i32, i32
  }
}

module attributes {stable_mosaic.version = 11 : i64} {
  func.func @kernel(%arg0: i32, %arg1: i32, %arg2: memref<1x64x16xbf16, #tpu.memory_space<vmem>>, %arg3: memref<1x16x16xf32, #tpu.memory_space<vmem>>) attributes {dimension_semantics = [#tpu.dimension_semantics<parallel>, #tpu.dimension_semantics<arbitrary>], iteration_bounds = array<i64: 4, 1>, scalar_prefetch = 0 : i64, scratch_operands = 0 : i64, tpu.core_type = #tpu.core_type<tc>, window_params = [{transform_indices = @transform_0, window_bounds = array<i64: 1, 64, 16>}, {transform_indices = @transform_1, window_bounds = array<i64: 1, 16, 16>}]} {
    %c0_i32 = arith.constant 0 : i32
    %0 = arith.cmpi eq, %arg1, %c0_i32 : i32
    %1 = arith.extui %0 : i1 to i32
    %c0_i32_0 = arith.constant 0 : i32
    %2 = arith.cmpi ne, %1, %c0_i32_0 : i32
    scf.if %2 {
      %cst_9 = arith.constant 0.000000e+00 : f32
      %10 = vector.broadcast %cst_9 : f32 to vector<1x16x16xf32>
      %c0_10 = arith.constant 0 : index
      %c0_11 = arith.constant 0 : index
      %c0_12 = arith.constant 0 : index
      %11 = vector.load %arg3[%c0_10, %c0_11, %c0_12] : memref<1x16x16xf32, #tpu.memory_space<vmem>>, vector<1x16x16xf32>
      tpu.vector_store %arg3[%c0_10, %c0_11, %c0_12], %10 {strides = array<i32>} : memref<1x16x16xf32, #tpu.memory_space<vmem>>, vector<1x16x16xf32>,
    } else {
    }
    %c0 = arith.constant 0 : index
    %c0_1 = arith.constant 0 : index
    %c0_2 = arith.constant 0 : index
    %3 = vector.load %arg2[%c0, %c0_1, %c0_2] : memref<1x64x16xbf16, #tpu.memory_space<vmem>>, vector<1x64x16xbf16>
    %4 = vector.shape_cast %3 : vector<1x64x16xbf16> to vector<64x16xbf16>
    %cst = arith.constant dense<0.000000e+00> : vector<16x16xf32>
    %5 = tpu.matmul %4, %4, %cst {dimension_numbers = #tpu.dot_dimension_numbers<[0], [0], [1], [1], [0, 1, 1, 1], [], []>} : vector<64x16xbf16>, vector<64x16xbf16>, vector<16x16xf32> -> vector<16x16xf32>
    %c0_3 = arith.constant 0 : index
    %c0_4 = arith.constant 0 : index
    %c0_5 = arith.constant 0 : index
    %6 = vector.load %arg3[%c0_3, %c0_4, %c0_5] : memref<1x16x16xf32, #tpu.memory_space<vmem>>, vector<1x16x16xf32>
    %7 = vector.shape_cast %5 : vector<16x16xf32> to vector<1x16x16xf32>
    %8 = arith.addf %6, %7 : vector<1x16x16xf32>
    %c0_6 = arith.constant 0 : index
    %c0_7 = arith.constant 0 : index
    %c0_8 = arith.constant 0 : index
    %9 = vector.load %arg3[%c0_6, %c0_7, %c0_8] : memref<1x16x16xf32, #tpu.memory_space<vmem>>, vector<1x16x16xf32>
    tpu.vector_store %arg3[%c0_6, %c0_7, %c0_8], %8 {strides = array<i32>} : memref<1x16x16xf32, #tpu.memory_space<vmem>>, vector<1x16x16xf32>,
    return
  }
  func.func @transform_0(%arg0: i32, %arg1: i32) -> (i32, i32, i32) {
    %c0_i32 = arith.constant 0 : i32
    %c0_i32_0 = arith.constant 0 : i32
    return %arg0, %arg1, %c0_i32 : i32, i32, i32
  }
  func.func @transform_1(%arg0: i32, %arg1: i32) -> (i32, i32, i32) {
    %c0_i32 = arith.constant 0 : i32
    %c0_i32_0 = arith.constant 0 : i32
    %c0_i32_1 = arith.constant 0 : i32
    return %arg0, %c0_i32, %c0_i32_0 : i32, i32, i32
  }
}

module attributes {stable_mosaic.version = 11 : i64} {
  func.func @kernel(%arg0: i32, %arg1: i32, %arg2: memref<1x16x16xf32, #tpu.memory_space<vmem>>, %arg3: memref<1x16x16xf32, #tpu.memory_space<vmem>>, %arg4: memref<1x1x128xf32, #tpu.memory_space<vmem>>) attributes {dimension_semantics = [#tpu.dimension_semantics<parallel>, #tpu.dimension_semantics<arbitrary>], iteration_bounds = array<i64: 2, 1>, scalar_prefetch = 0 : i64, scratch_operands = 0 : i64, tpu.core_type = #tpu.core_type<tc>, window_params = [{transform_indices = @transform_0, window_bounds = array<i64: 1, 16, 16>}, {transform_indices = @transform_1, window_bounds = array<i64: 1, 16, 16>}, {transform_indices = @transform_2, window_bounds = array<i64: 1, 1, 128>}]} {
    %c0_i32 = arith.constant 0 : i32
    %0 = arith.cmpi eq, %arg1, %c0_i32 : i32
    %1 = arith.extui %0 : i1 to i32
    %c0_i32_0 = arith.constant 0 : i32
    %2 = arith.cmpi ne, %1, %c0_i32_0 : i32
    scf.if %2 {
      %cst_12 = arith.constant 0.000000e+00 : f32
      %15 = vector.broadcast %cst_12 : f32 to vector<1x1x128xf32>
      %c0_13 = arith.constant 0 : index
      %c0_14 = arith.constant 0 : index
      %c0_15 = arith.constant 0 : index
      %16 = vector.load %arg4[%c0_13, %c0_14, %c0_15] : memref<1x1x128xf32, #tpu.memory_space<vmem>>, vector<1x1x128xf32>
      tpu.vector_store %arg4[%c0_13, %c0_14, %c0_15], %15 {strides = array<i32>} : memref<1x1x128xf32, #tpu.memory_space<vmem>>, vector<1x1x128xf32>,
    } else {
    }
    %c0 = arith.constant 0 : index
    %c0_1 = arith.constant 0 : index
    %c0_2 = arith.constant 0 : index
    %3 = vector.load %arg2[%c0, %c0_1, %c0_2] : memref<1x16x16xf32, #tpu.memory_space<vmem>>, vector<1x16x16xf32>
    %c0_3 = arith.constant 0 : index
    %c0_4 = arith.constant 0 : index
    %c0_5 = arith.constant 0 : index
    %4 = vector.load %arg3[%c0_3, %c0_4, %c0_5] : memref<1x16x16xf32, #tpu.memory_space<vmem>>, vector<1x16x16xf32>
    %5 = arith.subf %3, %4 : vector<1x16x16xf32>
    %6 = math.absf %5 : vector<1x16x16xf32>
    %7 = vector.shape_cast %6 : vector<1x16x16xf32> to vector<1x1x16x16xf32>
    %cst = arith.constant dense<0.000000e+00> : vector<1xf32>
    %8 = vector.multi_reduction <add>, %7, %cst [1, 2, 3] : vector<1x1x16x16xf32> to vector<1xf32>
    %9 = vector.shape_cast %8 : vector<1xf32> to vector<1x1x1x1xf32>
    %10 = vector.extract %9[0, 0, 0, 0] : f32 from vector<1x1x1x1xf32>
    %c0_6 = arith.constant 0 : index
    %c0_7 = arith.constant 0 : index
    %c0_8 = arith.constant 0 : index
    %11 = vector.load %arg4[%c0_6, %c0_7, %c0_8] : memref<1x1x128xf32, #tpu.memory_space<vmem>>, vector<1x1x128xf32>
    %12 = vector.broadcast %10 : f32 to vector<1x1x128xf32>
    %13 = arith.addf %11, %12 : vector<1x1x128xf32>
    %c0_9 = arith.constant 0 : index
    %c0_10 = arith.constant 0 : index
    %c0_11 = arith.constant 0 : index
    %14 = vector.load %arg4[%c0_9, %c0_10, %c0_11] : memref<1x1x128xf32, #tpu.memory_space<vmem>>, vector<1x1x128xf32>
    tpu.vector_store %arg4[%c0_9, %c0_10, %c0_11], %13 {strides = array<i32>} : memref<1x1x128xf32, #tpu.memory_space<vmem>>, vector<1x1x128xf32>,
    return
  }
  func.func @transform_0(%arg0: i32, %arg1: i32) -> (i32, i32, i32) {
    %c0_i32 = arith.constant 0 : i32
    %c0_i32_0 = arith.constant 0 : i32
    return %arg0, %arg1, %c0_i32 : i32, i32, i32
  }
  func.func @transform_1(%arg0: i32, %arg1: i32) -> (i32, i32, i32) {
    %c2_i32 = arith.constant 2 : i32
    %0 = arith.addi %arg0, %c2_i32 : i32
    %c0_i32 = arith.constant 0 : i32
    %c0_i32_0 = arith.constant 0 : i32
    return %0, %arg1, %c0_i32 : i32, i32, i32
  }
  func.func @transform_2(%arg0: i32, %arg1: i32) -> (i32, i32, i32) {
    %c0_i32 = arith.constant 0 : i32
    %c0_i32_0 = arith.constant 0 : i32
    %c0_i32_1 = arith.constant 0 : i32
    return %arg0, %c0_i32, %c0_i32_0 : i32, i32, i32
  }
}

module attributes {stable_mosaic.version = 11 : i64} {
  func.func @kernel(%arg0: i32, %arg1: i32, %arg2: memref<1x256x8xbf16, #tpu.memory_space<vmem>>, %arg3: memref<1x8x8xf32, #tpu.memory_space<vmem>>) attributes {dimension_semantics = [#tpu.dimension_semantics<parallel>, #tpu.dimension_semantics<arbitrary>], iteration_bounds = array<i64: 4, 1>, scalar_prefetch = 0 : i64, scratch_operands = 0 : i64, tpu.core_type = #tpu.core_type<tc>, window_params = [{transform_indices = @transform_0, window_bounds = array<i64: 1, 256, 8>}, {transform_indices = @transform_1, window_bounds = array<i64: 1, 8, 8>}]} {
    %c0_i32 = arith.constant 0 : i32
    %0 = arith.cmpi eq, %arg1, %c0_i32 : i32
    %1 = arith.extui %0 : i1 to i32
    %c0_i32_0 = arith.constant 0 : i32
    %2 = arith.cmpi ne, %1, %c0_i32_0 : i32
    scf.if %2 {
      %cst_9 = arith.constant 0.000000e+00 : f32
      %10 = vector.broadcast %cst_9 : f32 to vector<1x8x8xf32>
      %c0_10 = arith.constant 0 : index
      %c0_11 = arith.constant 0 : index
      %c0_12 = arith.constant 0 : index
      %11 = vector.load %arg3[%c0_10, %c0_11, %c0_12] : memref<1x8x8xf32, #tpu.memory_space<vmem>>, vector<1x8x8xf32>
      tpu.vector_store %arg3[%c0_10, %c0_11, %c0_12], %10 {strides = array<i32>} : memref<1x8x8xf32, #tpu.memory_space<vmem>>, vector<1x8x8xf32>,
    } else {
    }
    %c0 = arith.constant 0 : index
    %c0_1 = arith.constant 0 : index
    %c0_2 = arith.constant 0 : index
    %3 = vector.load %arg2[%c0, %c0_1, %c0_2] : memref<1x256x8xbf16, #tpu.memory_space<vmem>>, vector<1x256x8xbf16>
    %4 = vector.shape_cast %3 : vector<1x256x8xbf16> to vector<256x8xbf16>
    %cst = arith.constant dense<0.000000e+00> : vector<8x8xf32>
    %5 = tpu.matmul %4, %4, %cst {dimension_numbers = #tpu.dot_dimension_numbers<[0], [0], [1], [1], [0, 1, 1, 1], [], []>} : vector<256x8xbf16>, vector<256x8xbf16>, vector<8x8xf32> -> vector<8x8xf32>
    %c0_3 = arith.constant 0 : index
    %c0_4 = arith.constant 0 : index
    %c0_5 = arith.constant 0 : index
    %6 = vector.load %arg3[%c0_3, %c0_4, %c0_5] : memref<1x8x8xf32, #tpu.memory_space<vmem>>, vector<1x8x8xf32>
    %7 = vector.shape_cast %5 : vector<8x8xf32> to vector<1x8x8xf32>
    %8 = arith.addf %6, %7 : vector<1x8x8xf32>
    %c0_6 = arith.constant 0 : index
    %c0_7 = arith.constant 0 : index
    %c0_8 = arith.constant 0 : index
    %9 = vector.load %arg3[%c0_6, %c0_7, %c0_8] : memref<1x8x8xf32, #tpu.memory_space<vmem>>, vector<1x8x8xf32>
    tpu.vector_store %arg3[%c0_6, %c0_7, %c0_8], %8 {strides = array<i32>} : memref<1x8x8xf32, #tpu.memory_space<vmem>>, vector<1x8x8xf32>,
    return
  }
  func.func @transform_0(%arg0: i32, %arg1: i32) -> (i32, i32, i32) {
    %c0_i32 = arith.constant 0 : i32
    %c0_i32_0 = arith.constant 0 : i32
    return %arg0, %arg1, %c0_i32 : i32, i32, i32
  }
  func.func @transform_1(%arg0: i32, %arg1: i32) -> (i32, i32, i32) {
    %c0_i32 = arith.constant 0 : i32
    %c0_i32_0 = arith.constant 0 : i32
    %c0_i32_1 = arith.constant 0 : i32
    return %arg0, %c0_i32, %c0_i32_0 : i32, i32, i32
  }
}

module attributes {stable_mosaic.version = 11 : i64} {
  func.func @kernel(%arg0: i32, %arg1: i32, %arg2: memref<1x8x128xbf16, #tpu.memory_space<vmem>>, %arg3: memref<1x8x128xbf16, #tpu.memory_space<vmem>>, %arg4: memref<1x1x128xf32, #tpu.memory_space<vmem>>) attributes {dimension_semantics = [#tpu.dimension_semantics<parallel>, #tpu.dimension_semantics<arbitrary>], iteration_bounds = array<i64: 2, 1>, scalar_prefetch = 0 : i64, scratch_operands = 0 : i64, tpu.core_type = #tpu.core_type<tc>, window_params = [{transform_indices = @transform_0, window_bounds = array<i64: 1, 8, 128>}, {transform_indices = @transform_1, window_bounds = array<i64: 1, 8, 128>}, {transform_indices = @transform_2, window_bounds = array<i64: 1, 1, 128>}]} {
    %c0_i32 = arith.constant 0 : i32
    %0 = arith.cmpi eq, %arg1, %c0_i32 : i32
    %1 = arith.extui %0 : i1 to i32
    %c0_i32_0 = arith.constant 0 : i32
    %2 = arith.cmpi ne, %1, %c0_i32_0 : i32
    scf.if %2 {
      %cst_12 = arith.constant 0.000000e+00 : f32
      %17 = vector.broadcast %cst_12 : f32 to vector<1x1x128xf32>
      %c0_13 = arith.constant 0 : index
      %c0_14 = arith.constant 0 : index
      %c0_15 = arith.constant 0 : index
      %18 = vector.load %arg4[%c0_13, %c0_14, %c0_15] : memref<1x1x128xf32, #tpu.memory_space<vmem>>, vector<1x1x128xf32>
      tpu.vector_store %arg4[%c0_13, %c0_14, %c0_15], %17 {strides = array<i32>} : memref<1x1x128xf32, #tpu.memory_space<vmem>>, vector<1x1x128xf32>,
    } else {
    }
    %c0 = arith.constant 0 : index
    %c0_1 = arith.constant 0 : index
    %c0_2 = arith.constant 0 : index
    %3 = vector.load %arg2[%c0, %c0_1, %c0_2] : memref<1x8x128xbf16, #tpu.memory_space<vmem>>, vector<1x8x128xbf16>
    %4 = arith.extf %3 : vector<1x8x128xbf16> to vector<1x8x128xf32>
    %c0_3 = arith.constant 0 : index
    %c0_4 = arith.constant 0 : index
    %c0_5 = arith.constant 0 : index
    %5 = vector.load %arg3[%c0_3, %c0_4, %c0_5] : memref<1x8x128xbf16, #tpu.memory_space<vmem>>, vector<1x8x128xbf16>
    %6 = arith.extf %5 : vector<1x8x128xbf16> to vector<1x8x128xf32>
    %7 = arith.subf %4, %6 : vector<1x8x128xf32>
    %8 = math.absf %7 : vector<1x8x128xf32>
    %9 = vector.shape_cast %8 : vector<1x8x128xf32> to vector<1x1x8x128xf32>
    %cst = arith.constant dense<0.000000e+00> : vector<1xf32>
    %10 = vector.multi_reduction <add>, %9, %cst [1, 2, 3] : vector<1x1x8x128xf32> to vector<1xf32>
    %11 = vector.shape_cast %10 : vector<1xf32> to vector<1x1x1x1xf32>
    %12 = vector.extract %11[0, 0, 0, 0] : f32 from vector<1x1x1x1xf32>
    %c0_6 = arith.constant 0 : index
    %c0_7 = arith.constant 0 : index
    %c0_8 = arith.constant 0 : index
    %13 = vector.load %arg4[%c0_6, %c0_7, %c0_8] : memref<1x1x128xf32, #tpu.memory_space<vmem>>, vector<1x1x128xf32>
    %14 = vector.broadcast %12 : f32 to vector<1x1x128xf32>
    %15 = arith.addf %13, %14 : vector<1x1x128xf32>
    %c0_9 = arith.constant 0 : index
    %c0_10 = arith.constant 0 : index
    %c0_11 = arith.constant 0 : index
    %16 = vector.load %arg4[%c0_9, %c0_10, %c0_11] : memref<1x1x128xf32, #tpu.memory_space<vmem>>, vector<1x1x128xf32>
    tpu.vector_store %arg4[%c0_9, %c0_10, %c0_11], %15 {strides = array<i32>} : memref<1x1x128xf32, #tpu.memory_space<vmem>>, vector<1x1x128xf32>,
    return
  }
  func.func @transform_0(%arg0: i32, %arg1: i32) -> (i32, i32, i32) {
    %c0_i32 = arith.constant 0 : i32
    %c0_i32_0 = arith.constant 0 : i32
    return %arg0, %arg1, %c0_i32 : i32, i32, i32
  }
  func.func @transform_1(%arg0: i32, %arg1: i32) -> (i32, i32, i32) {
    %c2_i32 = arith.constant 2 : i32
    %0 = arith.addi %arg0, %c2_i32 : i32
    %c0_i32 = arith.constant 0 : i32
    %c0_i32_0 = arith.constant 0 : i32
    return %0, %arg1, %c0_i32 : i32, i32, i32
  }
  func.func @transform_2(%arg0: i32, %arg1: i32) -> (i32, i32, i32) {
    %c0_i32 = arith.constant 0 : i32
    %c0_i32_0 = arith.constant 0 : i32
    %c0_i32_1 = arith.constant 0 : i32
    return %arg0, %c0_i32, %c0_i32_0 : i32, i32, i32
  }
}

module attributes {stable_mosaic.version = 11 : i64} {
  func.func @kernel(%arg0: i32, %arg1: i32, %arg2: memref<1x8x8xf32, #tpu.memory_space<vmem>>, %arg3: memref<1x8x8xf32, #tpu.memory_space<vmem>>, %arg4: memref<1x1x128xf32, #tpu.memory_space<vmem>>) attributes {dimension_semantics = [#tpu.dimension_semantics<parallel>, #tpu.dimension_semantics<arbitrary>], iteration_bounds = array<i64: 2, 1>, scalar_prefetch = 0 : i64, scratch_operands = 0 : i64, tpu.core_type = #tpu.core_type<tc>, window_params = [{transform_indices = @transform_0, window_bounds = array<i64: 1, 8, 8>}, {transform_indices = @transform_1, window_bounds = array<i64: 1, 8, 8>}, {transform_indices = @transform_2, window_bounds = array<i64: 1, 1, 128>}]} {
    %c0_i32 = arith.constant 0 : i32
    %0 = arith.cmpi eq, %arg1, %c0_i32 : i32
    %1 = arith.extui %0 : i1 to i32
    %c0_i32_0 = arith.constant 0 : i32
    %2 = arith.cmpi ne, %1, %c0_i32_0 : i32
    scf.if %2 {
      %cst_12 = arith.constant 0.000000e+00 : f32
      %15 = vector.broadcast %cst_12 : f32 to vector<1x1x128xf32>
      %c0_13 = arith.constant 0 : index
      %c0_14 = arith.constant 0 : index
      %c0_15 = arith.constant 0 : index
      %16 = vector.load %arg4[%c0_13, %c0_14, %c0_15] : memref<1x1x128xf32, #tpu.memory_space<vmem>>, vector<1x1x128xf32>
      tpu.vector_store %arg4[%c0_13, %c0_14, %c0_15], %15 {strides = array<i32>} : memref<1x1x128xf32, #tpu.memory_space<vmem>>, vector<1x1x128xf32>,
    } else {
    }
    %c0 = arith.constant 0 : index
    %c0_1 = arith.constant 0 : index
    %c0_2 = arith.constant 0 : index
    %3 = vector.load %arg2[%c0, %c0_1, %c0_2] : memref<1x8x8xf32, #tpu.memory_space<vmem>>, vector<1x8x8xf32>
    %c0_3 = arith.constant 0 : index
    %c0_4 = arith.constant 0 : index
    %c0_5 = arith.constant 0 : index
    %4 = vector.load %arg3[%c0_3, %c0_4, %c0_5] : memref<1x8x8xf32, #tpu.memory_space<vmem>>, vector<1x8x8xf32>
    %5 = arith.subf %3, %4 : vector<1x8x8xf32>
    %6 = math.absf %5 : vector<1x8x8xf32>
    %7 = vector.shape_cast %6 : vector<1x8x8xf32> to vector<1x1x8x8xf32>
    %cst = arith.constant dense<0.000000e+00> : vector<1xf32>
    %8 = vector.multi_reduction <add>, %7, %cst [1, 2, 3] : vector<1x1x8x8xf32> to vector<1xf32>
    %9 = vector.shape_cast %8 : vector<1xf32> to vector<1x1x1x1xf32>
    %10 = vector.extract %9[0, 0, 0, 0] : f32 from vector<1x1x1x1xf32>
    %c0_6 = arith.constant 0 : index
    %c0_7 = arith.constant 0 : index
    %c0_8 = arith.constant 0 : index
    %11 = vector.load %arg4[%c0_6, %c0_7, %c0_8] : memref<1x1x128xf32, #tpu.memory_space<vmem>>, vector<1x1x128xf32>
    %12 = vector.broadcast %10 : f32 to vector<1x1x128xf32>
    %13 = arith.addf %11, %12 : vector<1x1x128xf32>
    %c0_9 = arith.constant 0 : index
    %c0_10 = arith.constant 0 : index
    %c0_11 = arith.constant 0 : index
    %14 = vector.load %arg4[%c0_9, %c0_10, %c0_11] : memref<1x1x128xf32, #tpu.memory_space<vmem>>, vector<1x1x128xf32>
    tpu.vector_store %arg4[%c0_9, %c0_10, %c0_11], %13 {strides = array<i32>} : memref<1x1x128xf32, #tpu.memory_space<vmem>>, vector<1x1x128xf32>,
    return
  }
  func.func @transform_0(%arg0: i32, %arg1: i32) -> (i32, i32, i32) {
    %c0_i32 = arith.constant 0 : i32
    %c0_i32_0 = arith.constant 0 : i32
    return %arg0, %arg1, %c0_i32 : i32, i32, i32
  }
  func.func @transform_1(%arg0: i32, %arg1: i32) -> (i32, i32, i32) {
    %c2_i32 = arith.constant 2 : i32
    %0 = arith.addi %arg0, %c2_i32 : i32
    %c0_i32 = arith.constant 0 : i32
    %c0_i32_0 = arith.constant 0 : i32
    return %0, %arg1, %c0_i32 : i32, i32, i32
  }
  func.func @transform_2(%arg0: i32, %arg1: i32) -> (i32, i32, i32) {
    %c0_i32 = arith.constant 0 : i32
    %c0_i32_0 = arith.constant 0 : i32
    %c0_i32_1 = arith.constant 0 : i32
    return %arg0, %c0_i32, %c0_i32_0 : i32, i32, i32
  }
}

module attributes {stable_mosaic.version = 11 : i64} {
  func.func @kernel(%arg0: i32, %arg1: i32, %arg2: memref<1x16x128xbf16, #tpu.memory_space<vmem>>, %arg3: memref<1x16x128xbf16, #tpu.memory_space<vmem>>, %arg4: memref<1x1x128xf32, #tpu.memory_space<vmem>>) attributes {dimension_semantics = [#tpu.dimension_semantics<parallel>, #tpu.dimension_semantics<arbitrary>], iteration_bounds = array<i64: 2, 1>, scalar_prefetch = 0 : i64, scratch_operands = 0 : i64, tpu.core_type = #tpu.core_type<tc>, window_params = [{transform_indices = @transform_0, window_bounds = array<i64: 1, 16, 128>}, {transform_indices = @transform_1, window_bounds = array<i64: 1, 16, 128>}, {transform_indices = @transform_2, window_bounds = array<i64: 1, 1, 128>}]} {
    %c0_i32 = arith.constant 0 : i32
    %0 = arith.cmpi eq, %arg1, %c0_i32 : i32
    %1 = arith.extui %0 : i1 to i32
    %c0_i32_0 = arith.constant 0 : i32
    %2 = arith.cmpi ne, %1, %c0_i32_0 : i32
    scf.if %2 {
      %cst_12 = arith.constant 0.000000e+00 : f32
      %17 = vector.broadcast %cst_12 : f32 to vector<1x1x128xf32>
      %c0_13 = arith.constant 0 : index
      %c0_14 = arith.constant 0 : index
      %c0_15 = arith.constant 0 : index
      %18 = vector.load %arg4[%c0_13, %c0_14, %c0_15] : memref<1x1x128xf32, #tpu.memory_space<vmem>>, vector<1x1x128xf32>
      tpu.vector_store %arg4[%c0_13, %c0_14, %c0_15], %17 {strides = array<i32>} : memref<1x1x128xf32, #tpu.memory_space<vmem>>, vector<1x1x128xf32>,
    } else {
    }
    %c0 = arith.constant 0 : index
    %c0_1 = arith.constant 0 : index
    %c0_2 = arith.constant 0 : index
    %3 = vector.load %arg2[%c0, %c0_1, %c0_2] : memref<1x16x128xbf16, #tpu.memory_space<vmem>>, vector<1x16x128xbf16>
    %4 = arith.extf %3 : vector<1x16x128xbf16> to vector<1x16x128xf32>
    %c0_3 = arith.constant 0 : index
    %c0_4 = arith.constant 0 : index
    %c0_5 = arith.constant 0 : index
    %5 = vector.load %arg3[%c0_3, %c0_4, %c0_5] : memref<1x16x128xbf16, #tpu.memory_space<vmem>>, vector<1x16x128xbf16>
    %6 = arith.extf %5 : vector<1x16x128xbf16> to vector<1x16x128xf32>
    %7 = arith.subf %4, %6 : vector<1x16x128xf32>
    %8 = math.absf %7 : vector<1x16x128xf32>
    %9 = vector.shape_cast %8 : vector<1x16x128xf32> to vector<1x1x16x128xf32>
    %cst = arith.constant dense<0.000000e+00> : vector<1xf32>
    %10 = vector.multi_reduction <add>, %9, %cst [1, 2, 3] : vector<1x1x16x128xf32> to vector<1xf32>
    %11 = vector.shape_cast %10 : vector<1xf32> to vector<1x1x1x1xf32>
    %12 = vector.extract %11[0, 0, 0, 0] : f32 from vector<1x1x1x1xf32>
    %c0_6 = arith.constant 0 : index
    %c0_7 = arith.constant 0 : index
    %c0_8 = arith.constant 0 : index
    %13 = vector.load %arg4[%c0_6, %c0_7, %c0_8] : memref<1x1x128xf32, #tpu.memory_space<vmem>>, vector<1x1x128xf32>
    %14 = vector.broadcast %12 : f32 to vector<1x1x128xf32>
    %15 = arith.addf %13, %14 : vector<1x1x128xf32>
    %c0_9 = arith.constant 0 : index
    %c0_10 = arith.constant 0 : index
    %c0_11 = arith.constant 0 : index
    %16 = vector.load %arg4[%c0_9, %c0_10, %c0_11] : memref<1x1x128xf32, #tpu.memory_space<vmem>>, vector<1x1x128xf32>
    tpu.vector_store %arg4[%c0_9, %c0_10, %c0_11], %15 {strides = array<i32>} : memref<1x1x128xf32, #tpu.memory_space<vmem>>, vector<1x1x128xf32>,
    return
  }
  func.func @transform_0(%arg0: i32, %arg1: i32) -> (i32, i32, i32) {
    %c0_i32 = arith.constant 0 : i32
    %c0_i32_0 = arith.constant 0 : i32
    return %arg0, %arg1, %c0_i32 : i32, i32, i32
  }
  func.func @transform_1(%arg0: i32, %arg1: i32) -> (i32, i32, i32) {
    %c2_i32 = arith.constant 2 : i32
    %0 = arith.addi %arg0, %c2_i32 : i32
    %c0_i32 = arith.constant 0 : i32
    %c0_i32_0 = arith.constant 0 : i32
    return %0, %arg1, %c0_i32 : i32, i32, i32
  }
  func.func @transform_2(%arg0: i32, %arg1: i32) -> (i32, i32, i32) {
    %c0_i32 = arith.constant 0 : i32
    %c0_i32_0 = arith.constant 0 : i32
    %c0_i32_1 = arith.constant 0 : i32
    return %arg0, %c0_i32, %c0_i32_0 : i32, i32, i32
  }
}

</mosaic_0001>

<llo_original>
// kernel: tile.18
$region0: #{tile.18}
  #allocation0 [shape = 's32[1]{0}', space=sflag, size = 0x4, scoped, tag = 'scoped memory for tile.18']
  %s0 = inlined_call_operand.vmem [shape: f32[8], index: 0, kind: input, shape index: {}]
  %s1 = inlined_call_operand.vmem [shape: f32[16,8], index: 1, kind: output, shape index: {}]
  // Predicated region
  $region2: #{tile.18} parent=0 // pred_check
    _
  $region3: #{tile.18} parent=0 // pred_check_branch
    %3 = sbr.rel (0) target = $region5
  $region4: #{tile.18} parent=0 // pred_region
    _
  $region5: #{tile.18} parent=0 // pred_fallthru
    _
  %v4 = vld [vmem:[%s0] ss:$0 sm:$0xff]
  %5 = vst [vmem:[%s1] sm:$0xff] %v4
  %s6 = scalar_lea.vmem %s1, 8
  %7 = vst [vmem:[%s6] sm:$0xff] %v4

// kernel: tile.19
$region0: #{tile.19}
  %s0 = inlined_call_operand.vmem [shape: f32[16,8], index: 0, kind: input, shape index: {}]
  %s1 = inlined_call_operand.vmem [shape: f32[1,128], index: 1, kind: output, shape index: {}]
  $region1: #{tile.19} parent=0
    #allocation0 [shape = 'u8[4096]{0}', space=vmem, size = 0x1000, scoped, tag = 'scoped mem for output reshape']
    %v2 = vld [vmem:[%s0] sm:$0x1]
    %vm3 = vcmask 64512
    %4 = vst.msk [vmem:[#allocation0] sm:$0x1] %vm3, %v2
    %s5 = scalar_lea.vmem %s0, 15
    %v6 = vld [vmem:[%s5] sm:$0x1]
    %7 = vrot.lane.b32.xlu0 %v6, 120
    %v8 = vpop.permute.xlu0 %7
    %vm9 = vcmask 1048512
    %10 = vst.msk [vmem:[#allocation0] sm:$0x1] %vm9, %v8
    %s11 = scalar_lea.vmem %s0, 14
    %v12 = vld [vmem:[%s11] sm:$0x1]
    %13 = vrot.lane.b32.xlu0 %v12, 112
    %v14 = vpop.permute.xlu0 %13
    %vm15 = vcmask 982912
    %16 = vst.msk [vmem:[#allocation0] sm:$0x1] %vm15, %v14
    %s17 = scalar_lea.vmem %s0, 13
    %v18 = vld [vmem:[%s17] sm:$0x1]
    %19 = vrot.lane.b32.xlu0 %v18, 104
    %v20 = vpop.permute.xlu0 %19
    %vm21 = vcmask 917312
    %22 = vst.msk [vmem:[#allocation0] sm:$0x1] %vm21, %v20
    %s23 = scalar_lea.vmem %s0, 12
    %v24 = vld [vmem:[%s23] sm:$0x1]
    %25 = vrot.lane.b32.xlu0 %v24, 96
    %v26 = vpop.permute.xlu0 %25
    %vm27 = vcmask 851712
    %28 = vst.msk [vmem:[#allocation0] sm:$0x1] %vm27, %v26
    %s29 = scalar_lea.vmem %s0, 11
    %v30 = vld [vmem:[%s29] sm:$0x1]
    %31 = vrot.lane.b32.xlu0 %v30, 88
    %v32 = vpop.permute.xlu0 %31
    %vm33 = vcmask 786112
    %34 = vst.msk [vmem:[#allocation0] sm:$0x1] %vm33, %v32
    %s35 = scalar_lea.vmem %s0, 10
    %v36 = vld [vmem:[%s35] sm:$0x1]
    %37 = vrot.lane.b32.xlu0 %v36, 80
    %v38 = vpop.permute.xlu0 %37
    %vm39 = vcmask 720512
    %40 = vst.msk [vmem:[#allocation0] sm:$0x1] %vm39, %v38
    %s41 = scalar_lea.vmem %s0, 9
    %v42 = vld [vmem:[%s41] sm:$0x1]
    %43 = vrot.lane.b32.xlu0 %v42, 72
    %v44 = vpop.permute.xlu0 %43
    %vm45 = vcmask 654912
    %46 = vst.msk [vmem:[#allocation0] sm:$0x1] %vm45, %v44
    %s47 = scalar_lea.vmem %s0, 8
    %v48 = vld [vmem:[%s47] sm:$0x1]
    %49 = vrot.lane.b32.xlu0 %v48, 64
    %v50 = vpop.permute.xlu0 %49
    %vm51 = vcmask 589312
    %52 = vst.msk [vmem:[#allocation0] sm:$0x1] %vm51, %v50
    %s53 = scalar_lea.vmem %s0, 7
    %v54 = vld [vmem:[%s53] sm:$0x1]
    %55 = vrot.lane.b32.xlu0 %v54, 56
    %v56 = vpop.permute.xlu0 %55
    %vm57 = vcmask 523712
    %58 = vst.msk [vmem:[#allocation0] sm:$0x1] %vm57, %v56
    %s59 = scalar_lea.vmem %s0, 6
    %v60 = vld [vmem:[%s59] sm:$0x1]
    %61 = vrot.lane.b32.xlu0 %v60, 48
    %v62 = vpop.permute.xlu0 %61
    %vm63 = vcmask 458112
    %64 = vst.msk [vmem:[#allocation0] sm:$0x1] %vm63, %v62
    %s65 = scalar_lea.vmem %s0, 5
    %v66 = vld [vmem:[%s65] sm:$0x1]
    %67 = vrot.lane.b32.xlu0 %v66, 40
    %v68 = vpop.permute.xlu0 %67
    %vm69 = vcmask 392512
    %70 = vst.msk [vmem:[#allocation0] sm:$0x1] %vm69, %v68
    %s71 = scalar_lea.vmem %s0, 4
    %v72 = vld [vmem:[%s71] sm:$0x1]
    %73 = vrot.lane.b32.xlu0 %v72, 32
    %v74 = vpop.permute.xlu0 %73
    %vm75 = vcmask 326912
    %76 = vst.msk [vmem:[#allocation0] sm:$0x1] %vm75, %v74
    %s77 = scalar_lea.vmem %s0, 3
    %v78 = vld [vmem:[%s77] sm:$0x1]
    %79 = vrot.lane.b32.xlu0 %v78, 24
    %v80 = vpop.permute.xlu0 %79
    %vm81 = vcmask 261312
    %82 = vst.msk [vmem:[#allocation0] sm:$0x1] %vm81, %v80
    %s83 = scalar_lea.vmem %s0, 2
    %v84 = vld [vmem:[%s83] sm:$0x1]
    %85 = vrot.lane.b32.xlu0 %v84, 16
    %v86 = vpop.permute.xlu0 %85
    %vm87 = vcmask 195712
    %88 = vst.msk [vmem:[#allocation0] sm:$0x1] %vm87, %v86
    %s89 = scalar_lea.vmem %s0, 1
    %v90 = vld [vmem:[%s89] sm:$0x1]
    %91 = vrot.lane.b32.xlu0 %v90, 8
    %v92 = vpop.permute.xlu0 %91
    %vm93 = vcmask 130112
    %94 = vst.msk [vmem:[#allocation0] sm:$0x1] %vm93, %v92
    %s96 = ssub.s32 2, 1
    %v97 = vld [vmem:[#allocation0] sm:%s96]
    %s99 = ssub.s32 2, 1
    %100 = vst [vmem:[%s1] sm:%s99] %v97

// kernel: _lambda_.8
$region0: #{_lambda_.8}
  #allocation0 [shape = 'u32[]', space=smem, size = 0x4, offset = 0x4, fixed_abs, tag = 'smem constant byte address 0x4 - core index']
  #allocation1 [shape = 'u32[72,128]{1,0:T(1,128)}', space=vmem, size = 0x9000, scoped, tag = 'internal scratch']
  #allocation2 [shape = 'bf16[18,54]{1,0:T(8,128)(2,1)}', space=vmem, size = 0x1800, scoped, tag = 'scratch operand']
  #allocation3 [shape = 'bf16[18,144]{1,0:T(8,128)(2,1)}', space=vmem, size = 0x3000, scoped, tag = 'scratch operand']
  %s0 = inlined_call_operand.vmem [shape: bf16[4,16,48], index: 0, kind: input, shape index: {}]
  %s1 = inlined_call_operand.vmem [shape: bf16[3,54,128], index: 1, kind: input, shape index: {}]
  %s2 = inlined_call_operand.vmem [shape: f32[1,128], index: 2, kind: input, shape index: {}]
  %s3 = inlined_call_operand.vmem [shape: bf16[3,144,128], index: 3, kind: input, shape index: {}]
  %s4 = inlined_call_operand.vmem [shape: f32[1,128], index: 4, kind: input, shape index: {}]
  %s5 = inlined_call_operand.vmem [shape: bf16[2,128,64], index: 5, kind: input, shape index: {}]
  %s6 = inlined_call_operand.vmem [shape: bf16[4,16,128], index: 6, kind: output, shape index: {0}]
  %s7 = inlined_call_operand.vmem [shape: bf16[4,8,64], index: 7, kind: output, shape index: {1}]
  %8 = xla_tuple %s6, %s7
  %s9 = sld [smem:[#allocation0]]
  $region65: #{_lambda_.8} parent=0
    _
  %s11 = ssub.s32 1, %s9
  %s12 = scalar_select 0, %s11, %s9
  loop: start=0, step=1, limit=6
  $region2: #{_lambda_.8} parent=0 // loop_pre_header
    _
  $region3: #{_lambda_.8} parent=0 // loop_header
    %s14 = sphi 0, %s18
    %p15 = scmp.ge.s32.totalorder %s14, 6
    %s24 = sphi 0, %s26
    %s27 = sphi 0, %s24
    %s28 = sphi 0, %s27
    %s44 = sphi 0, %s28
    %s48 = sphi 0, %s48
    %s50 = sphi 0, %s48
    %s51 = sphi 0, %s50
    %s65 = sphi 0, %s51
    %s69 = sphi 0, %s69
    %s71 = sphi 0, %s69
    %s72 = sphi 0, %s71
    %s86 = sphi 0, %s72
    %s90 = sphi 0, %s90
    %s92 = sphi 0, %s90
    %s93 = sphi 0, %s92
    %s107 = sphi 0, %s93
    %s111 = sphi 0, %s111
    %s113 = sphi 0, %s111
    %s114 = sphi 0, %s113
    %s128 = sphi 0, %s114
    %s132 = sphi 0, %s132
    %s134 = sphi 0, %s132
    %s135 = sphi 0, %s134
    %s149 = sphi 0, %s135
    %s155 = sphi 0, %s157
    %s158 = sphi 0, %s155
    %s159 = sphi 0, %s158
    %s175 = sphi 0, %s159
    %s181 = sphi 0, %s183
    %s184 = sphi 0, %s181
    %s185 = sphi 0, %s184
    %s201 = sphi 0, %s185
  $region4: #{_lambda_.8} parent=0 // loop_header_branch
    %17 = sbr.rel (%p15) target = $region8
  $region5: #{_lambda_.8} parent=0 // loop_body
    %s19 = ssub.s32 %s14, 1
    %s20 = ssub.s32 %s14, 2
    %s21 = sadd.s32 %s14, 1
    %s22 = ssub.s32 %s14, %s21
    %p23 = scmp.eq.s32.totalorder %s22, 0
    %s25 = sadd.s32 %s24, 1
    %s26 = scalar_select %p23, %s24, %s25
    %p29 = pneg %p23
    %p30 = scmp.eq.s32.totalorder %s14, 3
    %p31 = por %p29, %p30
    %p32 = scmp.ne.s32.totalorder %s24, %s27
    %p33 = scmp.eq.s32.totalorder %s14, 0
    %p34 = por %p32, %p33
    %p35 = scmp.ne.s32.totalorder %s24, %s27
    %p36 = scmp.eq.s32.totalorder %s19, 3
    %p37 = por %p35, %p36
    %p38 = scmp.ne.s32.totalorder %s27, %s28
    %p39 = scmp.eq.s32.totalorder %s19, 0
    %p40 = por %p38, %p39
    %p41 = scmp.ne.s32.totalorder %s27, %s28
    %p42 = scmp.eq.s32.totalorder %s20, 3
    %p43 = por %p41, %p42
    %p45 = scmp.ne.s32.totalorder %s28, %s44
    %p46 = scmp.eq.s32.totalorder %s20, 0
    %p47 = por %p45, %p46
    %s49 = sadd.s32 %s48, 1
    %p52 = scmp.eq.s32.totalorder %s14, 3
    %p53 = scmp.ne.s32.totalorder %s48, %s50
    %p54 = scmp.eq.s32.totalorder %s14, 0
    %p55 = por %p53, %p54
    %p56 = scmp.ne.s32.totalorder %s48, %s50
    %p57 = scmp.eq.s32.totalorder %s19, 3
    %p58 = por %p56, %p57
    %p59 = scmp.ne.s32.totalorder %s50, %s51
    %p60 = scmp.eq.s32.totalorder %s19, 0
    %p61 = por %p59, %p60
    %p62 = scmp.ne.s32.totalorder %s50, %s51
    %p63 = scmp.eq.s32.totalorder %s20, 3
    %p64 = por %p62, %p63
    %p66 = scmp.ne.s32.totalorder %s51, %s65
    %p67 = scmp.eq.s32.totalorder %s20, 0
    %p68 = por %p66, %p67
    %s70 = sadd.s32 %s69, 1
    %p73 = scmp.eq.s32.totalorder %s14, 3
    %p74 = scmp.ne.s32.totalorder %s69, %s71
    %p75 = scmp.eq.s32.totalorder %s14, 0
    %p76 = por %p74, %p75
    %p77 = scmp.ne.s32.totalorder %s69, %s71
    %p78 = scmp.eq.s32.totalorder %s19, 3
    %p79 = por %p77, %p78
    %p80 = scmp.ne.s32.totalorder %s71, %s72
    %p81 = scmp.eq.s32.totalorder %s19, 0
    %p82 = por %p80, %p81
    %p83 = scmp.ne.s32.totalorder %s71, %s72
    %p84 = scmp.eq.s32.totalorder %s20, 3
    %p85 = por %p83, %p84
    %p87 = scmp.ne.s32.totalorder %s72, %s86
    %p88 = scmp.eq.s32.totalorder %s20, 0
    %p89 = por %p87, %p88
    %s91 = sadd.s32 %s90, 1
    %p94 = scmp.eq.s32.totalorder %s14, 3
    %p95 = scmp.ne.s32.totalorder %s90, %s92
    %p96 = scmp.eq.s32.totalorder %s14, 0
    %p97 = por %p95, %p96
    %p98 = scmp.ne.s32.totalorder %s90, %s92
    %p99 = scmp.eq.s32.totalorder %s19, 3
    %p100 = por %p98, %p99
    %p101 = scmp.ne.s32.totalorder %s92, %s93
    %p102 = scmp.eq.s32.totalorder %s19, 0
    %p103 = por %p101, %p102
    %p104 = scmp.ne.s32.totalorder %s92, %s93
    %p105 = scmp.eq.s32.totalorder %s20, 3
    %p106 = por %p104, %p105
    %p108 = scmp.ne.s32.totalorder %s93, %s107
    %p109 = scmp.eq.s32.totalorder %s20, 0
    %p110 = por %p108, %p109
    %s112 = sadd.s32 %s111, 1
    %p115 = scmp.eq.s32.totalorder %s14, 3
    %p116 = scmp.ne.s32.totalorder %s111, %s113
    %p117 = scmp.eq.s32.totalorder %s14, 0
    %p118 = por %p116, %p117
    %p119 = scmp.ne.s32.totalorder %s111, %s113
    %p120 = scmp.eq.s32.totalorder %s19, 3
    %p121 = por %p119, %p120
    %p122 = scmp.ne.s32.totalorder %s113, %s114
    %p123 = scmp.eq.s32.totalorder %s19, 0
    %p124 = por %p122, %p123
    %p125 = scmp.ne.s32.totalorder %s113, %s114
    %p126 = scmp.eq.s32.totalorder %s20, 3
    %p127 = por %p125, %p126
    %p129 = scmp.ne.s32.totalorder %s114, %s128
    %p130 = scmp.eq.s32.totalorder %s20, 0
    %p131 = por %p129, %p130
    %s133 = sadd.s32 %s132, 1
    %p136 = scmp.eq.s32.totalorder %s14, 3
    %p137 = scmp.ne.s32.totalorder %s132, %s134
    %p138 = scmp.eq.s32.totalorder %s14, 0
    %p139 = por %p137, %p138
    %p140 = scmp.ne.s32.totalorder %s132, %s134
    %p141 = scmp.eq.s32.totalorder %s19, 3
    %p142 = por %p140, %p141
    %p143 = scmp.ne.s32.totalorder %s134, %s135
    %p144 = scmp.eq.s32.totalorder %s19, 0
    %p145 = por %p143, %p144
    %p146 = scmp.ne.s32.totalorder %s134, %s135
    %p147 = scmp.eq.s32.totalorder %s20, 3
    %p148 = por %p146, %p147
    %p150 = scmp.ne.s32.totalorder %s135, %s149
    %p151 = scmp.eq.s32.totalorder %s20, 0
    %p152 = por %p150, %p151
    %s153 = ssub.s32 %s14, %s21
    %p154 = scmp.eq.s32.totalorder %s153, 0
    %s156 = sadd.s32 %s155, 1
    %s157 = scalar_select %p154, %s155, %s156
    %p160 = pneg %p154
    %p161 = scmp.eq.s32.totalorder %s14, 3
    %p162 = por %p160, %p161
    %p163 = scmp.ne.s32.totalorder %s155, %s158
    %p164 = scmp.eq.s32.totalorder %s14, 0
    %p165 = por %p163, %p164
    %p166 = scmp.ne.s32.totalorder %s155, %s158
    %p167 = scmp.eq.s32.totalorder %s19, 3
    %p168 = por %p166, %p167
    %p169 = scmp.ne.s32.totalorder %s158, %s159
    %p170 = scmp.eq.s32.totalorder %s19, 0
    %p171 = por %p169, %p170
    %p172 = scmp.ne.s32.totalorder %s158, %s159
    %p173 = scmp.eq.s32.totalorder %s20, 3
    %p174 = por %p172, %p173
    %p176 = scmp.ne.s32.totalorder %s159, %s175
    %p177 = scmp.eq.s32.totalorder %s20, 0
    %p178 = por %p176, %p177
    %s179 = ssub.s32 %s14, %s21
    %p180 = scmp.eq.s32.totalorder %s179, 0
    %s182 = sadd.s32 %s181, 1
    %s183 = scalar_select %p180, %s181, %s182
    %p186 = pneg %p180
    %p187 = scmp.eq.s32.totalorder %s14, 3
    %p188 = por %p186, %p187
    %p189 = scmp.ne.s32.totalorder %s181, %s184
    %p190 = scmp.eq.s32.totalorder %s14, 0
    %p191 = por %p189, %p190
    %p192 = scmp.ne.s32.totalorder %s181, %s184
    %p193 = scmp.eq.s32.totalorder %s19, 3
    %p194 = por %p192, %p193
    %p195 = scmp.ne.s32.totalorder %s184, %s185
    %p196 = scmp.eq.s32.totalorder %s19, 0
    %p197 = por %p195, %p196
    %p198 = scmp.ne.s32.totalorder %s184, %s185
    %p199 = scmp.eq.s32.totalorder %s20, 3
    %p200 = por %p198, %p199
    %p202 = scmp.ne.s32.totalorder %s185, %s201
    %p203 = scmp.eq.s32.totalorder %s20, 0
    %p204 = por %p202, %p203
    %p205 = scmp.le.s32.totalorder 1, %s14
    %p206 = scmp.lt.s32.totalorder %s14, 5
    %p207 = pnand %p205, %p206
    %p208 = pneg %p207
    // Predicated region
    $region9: #{_lambda_.8} parent=5 // pred_check
      _
    $region10: #{_lambda_.8} parent=5 // pred_check_branch
      %210 = sbr.rel (%p207) target = $region12
    $region11: #{_lambda_.8} parent=5 // pred_region
      %s211 = ssub.s32 %s14, 1
      // Predicated region
      $region13: #{_lambda_.8} parent=11 // pred_check
        %p212 = pneg %p61
      $region14: #{_lambda_.8} parent=11 // pred_check_branch
        %214 = sbr.rel (%p212) target = $region16
      $region15: #{_lambda_.8} parent=11 // pred_region
        _
      $region16: #{_lambda_.8} parent=11 // pred_fallthru
        _
      // Predicated region
      $region17: #{_lambda_.8} parent=11 // pred_check
        %p215 = pneg %p82
      $region18: #{_lambda_.8} parent=11 // pred_check_branch
        %217 = sbr.rel (%p215) target = $region20
      $region19: #{_lambda_.8} parent=11 // pred_region
        _
      $region20: #{_lambda_.8} parent=11 // pred_fallthru
        _
      // Predicated region
      $region21: #{_lambda_.8} parent=11 // pred_check
        %p218 = pneg %p103
      $region22: #{_lambda_.8} parent=11 // pred_check_branch
        %220 = sbr.rel (%p218) target = $region24
      $region23: #{_lambda_.8} parent=11 // pred_region
        _
      $region24: #{_lambda_.8} parent=11 // pred_fallthru
        _
      // Predicated region
      $region25: #{_lambda_.8} parent=11 // pred_check
        %p221 = pneg %p124
      $region26: #{_lambda_.8} parent=11 // pred_check_branch
        %223 = sbr.rel (%p221) target = $region28
      $region27: #{_lambda_.8} parent=11 // pred_region
        _
      $region28: #{_lambda_.8} parent=11 // pred_fallthru
        _
      // Predicated region
      $region29: #{_lambda_.8} parent=11 // pred_check
        %p224 = pneg %p145
      $region30: #{_lambda_.8} parent=11 // pred_check_branch
        %226 = sbr.rel (%p224) target = $region32
      $region31: #{_lambda_.8} parent=11 // pred_region
        _
      $region32: #{_lambda_.8} parent=11 // pred_fallthru
        _
    $region12: #{_lambda_.8} parent=5 // pred_fallthru
      _
    %p227 = scmp.lt.s32.totalorder %s14, 4
    // Predicated region
    $region33: #{_lambda_.8} parent=5 // pred_check
      %p228 = pneg %p227
    $region34: #{_lambda_.8} parent=5 // pred_check_branch
      %230 = sbr.rel (%p228) target = $region36
    $region35: #{_lambda_.8} parent=5 // pred_region
      // Predicated region
      $region37: #{_lambda_.8} parent=35 // pred_check
        %p231 = pneg %p34
      $region38: #{_lambda_.8} parent=35 // pred_check_branch
        %233 = sbr.rel (%p231) target = $region40
      $region39: #{_lambda_.8} parent=35 // pred_region
        %p234 = scmp.lt.s32.totalorder %s14, 3
        %s235 = scalar_select %p234, %s14, 3
        %s236 = smul.addr %s235, 2
        %s237 = smul.addr %s236, 4
        %s238 = scalar_lea.vmem %s0, %s237
      $region40: #{_lambda_.8} parent=35 // pred_fallthru
        _
    $region36: #{_lambda_.8} parent=5 // pred_fallthru
      _
    %p239 = scmp.le.s32.totalorder 1, %s14
    %p240 = scmp.lt.s32.totalorder %s14, 5
    %p241 = pnand %p239, %p240
    %p242 = pneg %p241
    // Predicated region
    $region41: #{_lambda_.8} parent=5 // pred_check
      _
    $region42: #{_lambda_.8} parent=5 // pred_check_branch
      %244 = sbr.rel (%p241) target = $region44
    $region43: #{_lambda_.8} parent=5 // pred_region
      %s245 = ssub.s32 %s14, 1
      %p246 = scmp.lt.s32.totalorder %s19, 3
      %s247 = scalar_select %p246, %s19, 3
      %s248 = smul.addr %s247, 2
      %s249 = smul.addr %s248, 4
      %s250 = scalar_lea.vmem %s0, %s249
      %p251 = pneg %p40
      %p252 = pneg %p37
      %p253 = pneg %p61
      %p254 = pneg %p58
      %p255 = pneg %p82
      %p256 = pneg %p79
      %p257 = pneg %p103
      %p258 = pneg %p100
      %p259 = pneg %p124
      %p260 = pneg %p121
      %p261 = pneg %p145
      %p262 = pneg %p142
      %p263 = pneg %p171
      %p264 = pneg %p168
      %p265 = scmp.lt.s32.totalorder %s19, 3
      %s266 = scalar_select %p265, %s19, 3
      %s267 = smul.addr %s266, 2
      %s268 = smul.addr %s267, 4
      %s269 = scalar_lea.vmem %s6, %s268
      %p270 = pneg %p197
      %p271 = pneg %p194
      %p272 = scmp.lt.s32.totalorder %s19, 3
      %s273 = scalar_select %p272, %s19, 3
      %s274 = smul.addr %s273, 4
      %s275 = scalar_lea.vmem %s7, %s274
      %p276 = scmp.lt.s32.totalorder %s19, 3
      %s277 = scalar_select %p276, %s19, 3
      %s278 = smul.addr %s277, 2
      %s279 = smul.addr %s278, 4
      %s280 = scalar_lea.vmem %s0, %s279
      %p281 = scmp.lt.s32.totalorder %s19, 3
      %s282 = scalar_select %p281, %s19, 3
      %s283 = smul.addr %s282, 2
      %s284 = smul.addr %s283, 4
      %s285 = scalar_lea.vmem %s6, %s284
      %p286 = scmp.lt.s32.totalorder %s19, 3
      %s287 = scalar_select %p286, %s19, 3
      %s288 = smul.addr %s287, 4
      %s289 = scalar_lea.vmem %s7, %s288
      %v291 = vld [vmem:[%s280] sm:$0xf]
      %v292 = vld [vmem:[%s280 + $0x4] sm:$0xf]
      %vm293 = vcmask 434176
      %vm294 = vsmask.f32 256
      %vm295 = vmand %vm293, %vm294
      %v296 = vld [vmem:[#allocation2] sm:$0x1]
      %v297 = vsel %vm295, 0, %v296
      %298 = vst [vmem:[#allocation2] sm:$0x1] %v297
      %vm299 = vsmask.f32 7938
      %vm300 = vmand %vm293, %vm299
      %v301 = vld [vmem:[#allocation2 + $0x8] sm:$0x1]
      %v302 = vsel %vm300, 0, %v301
      %303 = vst [vmem:[#allocation2 + $0x8] sm:$0x1] %v302
      %vm304 = vcmask 19456
      %305 = vst.msk [vmem:[#allocation2] sm:$0xf] %vm304, 0
      %306 = vst.msk [vmem:[#allocation2 + $0x4] sm:$0xf] %vm304, 0
      %vm307 = vcmask 16384
      %308 = vst.msk [vmem:[#allocation2 + $0x8] sm:$0x1] %vm307, 0
      %vm309 = vcmask 437656
      %310 = vst.msk [vmem:[#allocation2] sm:$0xf] %vm309, 0
      %311 = vst.msk [vmem:[#allocation2 + $0x4] sm:$0xf] %vm309, 0
      %vm312 = vcmask 434584
      %313 = vst.msk [vmem:[#allocation2 + $0x8] sm:$0x1] %vm312, 0
      %vm314 = vsmask.f32 4368
      %vm315 = vmor %vm294, %vm314
      %v317 = vshrl.u32 %v291, 16
      %v319 = vrot.slane %v317, 7
      %v320 = vshll.u32 %v291, 16
      %v322 = vor.u32 %v319, %v320
      %v323 = vrot.slane %v319, 4
      %v325 = vshrl.u32 %v292, 16
      %v327 = vrot.slane %v325, 7
      %v328 = vshll.u32 %v292, 16
      %v330 = vor.u32 %v327, %v328
      %v331 = vsel %vm315, %v323, %v330
      %v332 = vrot.slane %v327, 4
      %333 = vrot.lane.b32.xlu0 %v322, 3
      %v334 = vpop.permute.xlu0 %333
      %335 = vrot.lane.b32.xlu0 %v331, 3
      %v336 = vpop.permute.xlu0 %335
      %337 = vrot.lane.b32.xlu0 %v332, 3
      %v338 = vpop.permute.xlu0 %337
      %vm342 = vcmask 412696
      %vm343 = vmand %vm342, %vm299
      %v344 = vld [vmem:[#allocation2] sm:$0xf]
      %v345 = vsel %vm343, %v334, %v344
      %346 = vst [vmem:[#allocation2] sm:$0xf] %v345
      %vm347 = vcmask 412696
      %348 = vst.msk [vmem:[#allocation2 + $0x4] sm:$0xf] %vm347, %v336
      %vm349 = vcmask 409624
      %vm350 = vmand %vm349, %vm294
      %v351 = vld [vmem:[#allocation2 + $0x8] sm:$0x1]
      %v352 = vsel %vm350, %v338, %v351
      %353 = vst [vmem:[#allocation2 + $0x8] sm:$0x1] %v352
      %v354 = vld [vmem:[#allocation2] sm:$0xf]
      %v355 = vld [vmem:[#allocation2 + $0x4] sm:$0xf]
      %v356 = vld [vmem:[%s1] sm:$0xf]
      %v357 = vld [vmem:[%s1 + $0x4] sm:$0xf]
      %v358 = vld [vmem:[%s1 + $0x8] sm:$0xf]
      %v359 = vld [vmem:[%s1 + $0xc] sm:$0xf]
      %v360 = vld [vmem:[%s1 + $0x10] sm:$0xf]
      %v361 = vld [vmem:[%s1 + $0x14] sm:$0xf]
      %v362 = vld [vmem:[%s1 + $0x18] sm:$0x7]
      %v363 = vld [vmem:[#allocation2 + $0x8] sm:$0x1]
      %s364 = scalar_lea.vmem %s1, 28
      %v365 = vld [vmem:[%s364] sm:$0xf]
      %v366 = vld [vmem:[%s364 + $0x4] sm:$0xf]
      %v367 = vld [vmem:[%s364 + $0x8] sm:$0xf]
      %v368 = vld [vmem:[%s364 + $0xc] sm:$0xf]
      %v369 = vld [vmem:[%s364 + $0x10] sm:$0xf]
      %v370 = vld [vmem:[%s364 + $0x14] sm:$0xf]
      %v371 = vld [vmem:[%s364 + $0x18] sm:$0x7]
      %v375 = vunpack.c.l.b16 %v354
      %v376 = vunpack.c.l.b16 %v355
      %v377 = vunpack.c.l.b16 %v363
      %v378 = vpack.c.b16 %v376, %v375
      %v379 = vpack.c.b16 %v377, %v377
      %vm380 = vsmask.f32 7424
      %v382 = vshrl.u32 %v378, 16
      %v384 = vshll.u32 %v378, 16
      %v386 = vrot.slane %v384, 1
      %v387 = vor.u32 %v382, %v386
      %v389 = vshll.u32 %v379, 16
      %v391 = vrot.slane %v389, 1
      %v392 = vsel %vm380, %v387, %v391
      %v400 = vunpack.c.l.b16 %v365
      %v401 = vunpack.c.l.b16 %v366
      %v402 = vunpack.c.l.b16 %v367
      %v403 = vunpack.c.l.b16 %v368
      %v404 = vunpack.c.l.b16 %v369
      %v405 = vunpack.c.l.b16 %v370
      %v406 = vunpack.c.l.b16 %v371
      %v407 = vpack.c.b16 %v401, %v400
      %v408 = vpack.c.b16 %v403, %v402
      %v409 = vpack.c.b16 %v405, %v404
      %v410 = vpack.c.b16 %v406, %v406
      %vm414 = vcmask 441344
      %v416 = vsel %vm414, %v392, 0
      %vm418 = vcmask 1042432
      %v420 = vsel %vm418, %v410, 0
      %422 = vmatpush.bf16.msra.mxu0 0
      %423 = vmatpush.bf16.msra.mxu0 0
      %424 = vmatpush.bf16.msra.mxu0 0
      %425 = vmatpush.bf16.msra.mxu0 0
      %426 = vmatpush.bf16.msra.mxu0 %v420
      %427 = vmatpush.bf16.msra.mxu0 %v409
      %428 = vmatpush.bf16.msra.mxu0 %v408
      %429 = vmatpush.bf16.msra.mxu0 %v407
      %430 = vmatmul.bf16.gmra.mxu0 %v416
      %v431 = vpop.f32.mrf.mxu0
      %v432 = vadd.f32 0.0, %v431
      %v433 = vpop.f32.mrf.mxu0
      %v434 = vadd.f32 0.0, %v433
      %435 = vdwg.mxu0
      %v443 = vunpack.c.l.b16 %v356
      %v444 = vunpack.c.l.b16 %v357
      %v445 = vunpack.c.l.b16 %v358
      %v446 = vunpack.c.l.b16 %v359
      %v447 = vunpack.c.l.b16 %v360
      %v448 = vunpack.c.l.b16 %v361
      %v449 = vunpack.c.l.b16 %v362
      %v450 = vpack.c.b16 %v444, %v443
      %v451 = vpack.c.b16 %v446, %v445
      %v452 = vpack.c.b16 %v448, %v447
      %v453 = vpack.c.b16 %v449, %v449
      %v457 = vsel %vm414, %v378, 0
      %v460 = vsel %vm418, %v453, 0
      %462 = vmatpush.bf16.msra.mxu0 0
      %463 = vmatpush.bf16.msra.mxu0 0
      %464 = vmatpush.bf16.msra.mxu0 0
      %465 = vmatpush.bf16.msra.mxu0 0
      %466 = vmatpush.bf16.msra.mxu0 %v460
      %467 = vmatpush.bf16.msra.mxu0 %v452
      %468 = vmatpush.bf16.msra.mxu0 %v451
      %469 = vmatpush.bf16.msra.mxu0 %v450
      %470 = vmatmul.bf16.gmra.mxu0 %v457
      %v471 = vpop.f32.mrf.mxu0
      %v472 = vadd.f32 %v432, %v471
      %v473 = vpop.f32.mrf.mxu0
      %v474 = vadd.f32 %v434, %v473
      %475 = vdwg.mxu0
      %v476 = vld [vmem:[#allocation2] sm:$0xe]
      %s477 = scalar_lea.vmem %s1, 56
      %v478 = vld [vmem:[%s477] sm:$0xf]
      %v479 = vld [vmem:[%s477 + $0x4] sm:$0xf]
      %v480 = vld [vmem:[%s477 + $0x8] sm:$0xf]
      %v481 = vld [vmem:[%s477 + $0xc] sm:$0xf]
      %v482 = vld [vmem:[%s477 + $0x10] sm:$0xf]
      %v483 = vld [vmem:[%s477 + $0x14] sm:$0xf]
      %v484 = vld [vmem:[%s477 + $0x18] sm:$0x7]
      %v486 = vunpack.c.l.b16 %v476
      %v487 = vpack.c.b16 %v376, %v486
      %vm488 = vcmask 1046528
      %v489 = vrot.slane %v487, 1
      %v490 = vrot.slane %v379, 1
      %v491 = vsel %vm488, %v489, %v490
      %v499 = vunpack.c.l.b16 %v478
      %v500 = vunpack.c.l.b16 %v479
      %v501 = vunpack.c.l.b16 %v480
      %v502 = vunpack.c.l.b16 %v481
      %v503 = vunpack.c.l.b16 %v482
      %v504 = vunpack.c.l.b16 %v483
      %v505 = vunpack.c.l.b16 %v484
      %v506 = vpack.c.b16 %v500, %v499
      %v507 = vpack.c.b16 %v502, %v501
      %v508 = vpack.c.b16 %v504, %v503
      %v509 = vpack.c.b16 %v505, %v505
      %v514 = vsel %vm414, %v491, 0
      %v517 = vsel %vm418, %v509, 0
      %519 = vmatpush.bf16.msra.mxu0 0
      %520 = vmatpush.bf16.msra.mxu0 0
      %521 = vmatpush.bf16.msra.mxu0 0
      %522 = vmatpush.bf16.msra.mxu0 0
      %523 = vmatpush.bf16.msra.mxu0 %v517
      %524 = vmatpush.bf16.msra.mxu0 %v508
      %525 = vmatpush.bf16.msra.mxu0 %v507
      %526 = vmatpush.bf16.msra.mxu0 %v506
      %527 = vmatmul.bf16.gmra.mxu0 %v514
      %v528 = vpop.f32.mrf.mxu0
      %v529 = vadd.f32 0.0, %v528
      %v530 = vpop.f32.mrf.mxu0
      %v531 = vadd.f32 0.0, %v530
      %532 = vdwg.mxu0
      %v533 = vadd.f32 %v472, %v529
      %v534 = vadd.f32 %v474, %v531
      %v535 = vld [vmem:[%s2] sm:$0x1]
      %v537 = vperm.slane %v535, 0
      %v539 = vadd.f32 %v533, %v537
      %v540 = vadd.f32 %v534, %v537
      %v541 = vmax.f32 %v539, 0.0
      %v542 = vmax.f32 %v540, 0.0
      %v543 = vpack.c.bf16 %v541, %v541
      %v544 = vpack.c.bf16 %v542, %v542
      %vm545 = vcmask 1040384
      %vm546 = vmand %vm545, %vm294
      %vm547 = vcmask 126980
      %vm548 = vsmask.f32 4352
      %vm549 = vmand %vm547, %vm548
      %vm550 = vmor %vm549, %vm546
      %v551 = vld [vmem:[#allocation3] sm:$0x11]
      %v552 = vsel %vm550, 0, %v551
      %553 = vst [vmem:[#allocation3] sm:$0x11] %v552
      %vm554 = vmand %vm545, %vm299
      %vm555 = vsmask.f32 7954
      %vm556 = vmand %vm547, %vm555
      %vm557 = vmor %vm556, %vm554
      %v558 = vld [vmem:[#allocation3 + $0x10] sm:$0x11]
      %v559 = vsel %vm557, 0, %v558
      %560 = vst [vmem:[#allocation3 + $0x10] sm:$0x11] %v559
      %vm561 = vcmask 60416
      %562 = vst.msk [vmem:[#allocation3] sm:$0xf] %vm561, 0
      %563 = vst.msk [vmem:[#allocation3 + $0x8] sm:$0xf] %vm561, 0
      %vm564 = vcmask 57344
      %565 = vst.msk [vmem:[#allocation3 + $0x10] sm:$0x1] %vm564, 0
      %vm566 = vcmask 126016
      %567 = vst.msk [vmem:[#allocation3 + $0x4] sm:$0xf] %vm566, 0
      %568 = vst.msk [vmem:[#allocation3 + $0xc] sm:$0xf] %vm566, 0
      %vm569 = vcmask 122944
      %570 = vst.msk [vmem:[#allocation3 + $0x14] sm:$0x1] %vm569, 0
      %v572 = vshrl.u32 %v543, 16
      %v574 = vrot.slane %v572, 7
      %v575 = vshll.u32 %v543, 16
      %v577 = vor.u32 %v574, %v575
      %v578 = vrot.slane %v574, 4
      %v580 = vshrl.u32 %v544, 16
      %v582 = vrot.slane %v580, 7
      %v583 = vshll.u32 %v544, 16
      %v585 = vor.u32 %v582, %v583
      %v586 = vsel %vm315, %v578, %v585
      %v587 = vrot.slane %v582, 4
      %588 = vrot.lane.b32.xlu0 %v577, 8
      %v589 = vpop.permute.xlu0 %588
      %590 = vrot.lane.b32.xlu0 %v586, 8
      %v591 = vpop.permute.xlu0 %590
      %592 = vrot.lane.b32.xlu0 %v587, 8
      %v593 = vpop.permute.xlu0 %592
      %v594 = vrot.slane %v589, 4
      %v595 = vrot.slane %v591, 4
      %v596 = vrot.slane %v593, 4
      %vm597 = vcmask 64512
      %v598 = vsel %vm597, %v594, %v589
      %v599 = vsel %vm597, %v595, %v591
      %v600 = vsel %vm597, %v596, %v593
      %vm604 = vcmask 1043520
      %vm605 = vmand %vm604, %vm299
      %vm606 = vcmask 64516
      %vm607 = vmand %vm606, %vm555
      %vm608 = vmor %vm607, %vm605
      %v609 = vld [vmem:[#allocation3] sm:$0xff]
      %v610 = vsel %vm608, %v598, %v609
      %611 = vst [vmem:[#allocation3] sm:$0xff] %v610
      %vm612 = vcmask 1043520
      %vm613 = vcmask 64516
      %vm614 = vmor %vm613, %vm612
      %615 = vst.msk [vmem:[#allocation3 + $0x8] sm:$0xff] %vm614, %v599
      %vm616 = vcmask 1040448
      %vm617 = vmand %vm616, %vm294
      %vm618 = vcmask 61444
      %vm619 = vmand %vm618, %vm548
      %vm620 = vmor %vm619, %vm617
      %v621 = vld [vmem:[#allocation3 + $0x10] sm:$0x11]
      %v622 = vsel %vm620, %v600, %v621
      %623 = vst [vmem:[#allocation3 + $0x10] sm:$0x11] %v622
      %v624 = vld [vmem:[#allocation3] sm:$0xff]
      %v625 = vld [vmem:[#allocation3 + $0x8] sm:$0xff]
      %v626 = vld [vmem:[%s3] sm:$0xf]
      %v627 = vld [vmem:[%s3 + $0x4] sm:$0xf]
      %v628 = vld [vmem:[%s3 + $0x8] sm:$0xf]
      %v629 = vld [vmem:[%s3 + $0xc] sm:$0xf]
      %v630 = vld [vmem:[%s3 + $0x10] sm:$0xf]
      %v631 = vld [vmem:[%s3 + $0x14] sm:$0xf]
      %v632 = vld [vmem:[%s3 + $0x18] sm:$0xf]
      %v633 = vld [vmem:[%s3 + $0x1c] sm:$0xf]
      %v634 = vld [vmem:[%s3 + $0x20] sm:$0xf]
      %v635 = vld [vmem:[%s3 + $0x24] sm:$0xf]
      %v636 = vld [vmem:[%s3 + $0x28] sm:$0xf]
      %v637 = vld [vmem:[%s3 + $0x2c] sm:$0xf]
      %v638 = vld [vmem:[%s3 + $0x30] sm:$0xf]
      %v639 = vld [vmem:[%s3 + $0x34] sm:$0xf]
      %v640 = vld [vmem:[%s3 + $0x38] sm:$0xf]
      %v641 = vld [vmem:[%s3 + $0x3c] sm:$0xf]
      %v642 = vld [vmem:[%s3 + $0x40] sm:$0xf]
      %v643 = vld [vmem:[%s3 + $0x44] sm:$0xf]
      %v644 = vld [vmem:[#allocation3 + $0x10] sm:$0x11]
      %s645 = scalar_lea.vmem %s3, 72
      %v646 = vld [vmem:[%s645] sm:$0xf]
      %v647 = vld [vmem:[%s645 + $0x4] sm:$0xf]
      %v648 = vld [vmem:[%s645 + $0x8] sm:$0xf]
      %v649 = vld [vmem:[%s645 + $0xc] sm:$0xf]
      %v650 = vld [vmem:[%s645 + $0x10] sm:$0xf]
      %v651 = vld [vmem:[%s645 + $0x14] sm:$0xf]
      %v652 = vld [vmem:[%s645 + $0x18] sm:$0xf]
      %v653 = vld [vmem:[%s645 + $0x1c] sm:$0xf]
      %v654 = vld [vmem:[%s645 + $0x20] sm:$0xf]
      %v655 = vld [vmem:[%s645 + $0x24] sm:$0xf]
      %v656 = vld [vmem:[%s645 + $0x28] sm:$0xf]
      %v657 = vld [vmem:[%s645 + $0x2c] sm:$0xf]
      %v658 = vld [vmem:[%s645 + $0x30] sm:$0xf]
      %v659 = vld [vmem:[%s645 + $0x34] sm:$0xf]
      %v660 = vld [vmem:[%s645 + $0x38] sm:$0xf]
      %v661 = vld [vmem:[%s645 + $0x3c] sm:$0xf]
      %v662 = vld [vmem:[%s645 + $0x40] sm:$0xf]
      %v663 = vld [vmem:[%s645 + $0x44] sm:$0xf]
      %v667 = vunpack.c.l.b16 %v624
      %v668 = vunpack.c.h.b16 %v624
      %v669 = vunpack.c.l.b16 %v625
      %v670 = vunpack.c.h.b16 %v625
      %v671 = vunpack.c.l.b16 %v644
      %v672 = vunpack.c.h.b16 %v644
      %v673 = vpack.c.b16 %v669, %v667
      %v674 = vpack.c.b16 %v670, %v668
      %v675 = vpack.c.b16 %v671, %v671
      %v676 = vpack.c.b16 %v672, %v672
      %v678 = vshrl.u32 %v673, 16
      %v680 = vshll.u32 %v673, 16
      %v682 = vrot.slane %v680, 1
      %v683 = vor.u32 %v678, %v682
      %v685 = vshll.u32 %v675, 16
      %v687 = vrot.slane %v685, 1
      %v688 = vsel %vm380, %v683, %v687
      %v690 = vshrl.u32 %v674, 16
      %v692 = vshll.u32 %v674, 16
      %v694 = vrot.slane %v692, 1
      %v695 = vor.u32 %v690, %v694
      %v697 = vshll.u32 %v676, 16
      %v699 = vrot.slane %v697, 1
      %v700 = vsel %vm380, %v695, %v699
      %v720 = vunpack.c.l.b16 %v646
      %v721 = vunpack.c.l.b16 %v647
      %v722 = vunpack.c.l.b16 %v648
      %v723 = vunpack.c.l.b16 %v649
      %v724 = vunpack.c.l.b16 %v650
      %v725 = vunpack.c.l.b16 %v651
      %v726 = vunpack.c.l.b16 %v652
      %v727 = vunpack.c.l.b16 %v653
      %v728 = vunpack.c.l.b16 %v654
      %v729 = vunpack.c.l.b16 %v655
      %v730 = vunpack.c.l.b16 %v656
      %v731 = vunpack.c.l.b16 %v657
      %v732 = vunpack.c.l.b16 %v658
      %v733 = vunpack.c.l.b16 %v659
      %v734 = vunpack.c.l.b16 %v660
      %v735 = vunpack.c.l.b16 %v661
      %v736 = vunpack.c.l.b16 %v662
      %v737 = vunpack.c.l.b16 %v663
      %v738 = vpack.c.b16 %v721, %v720
      %v739 = vpack.c.b16 %v723, %v722
      %v740 = vpack.c.b16 %v725, %v724
      %v741 = vpack.c.b16 %v727, %v726
      %v742 = vpack.c.b16 %v729, %v728
      %v743 = vpack.c.b16 %v731, %v730
      %v744 = vpack.c.b16 %v733, %v732
      %v745 = vpack.c.b16 %v735, %v734
      %v746 = vpack.c.b16 %v737, %v736
      %vm756 = vcmask 130048
      %v758 = vsel %vm756, %v700, 0
      %760 = vmatpush.bf16.msra.mxu0 %v745
      %761 = vmatpush.bf16.msra.mxu0 %v744
      %762 = vmatpush.bf16.msra.mxu0 %v743
      %763 = vmatpush.bf16.msra.mxu0 %v742
      %764 = vmatpush.bf16.msra.mxu0 %v741
      %765 = vmatpush.bf16.msra.mxu0 %v740
      %766 = vmatpush.bf16.msra.mxu0 %v739
      %767 = vmatpush.bf16.msra.mxu0 %v738
      %768 = vmatmul.bf16.gmra.mxu0 %v688
      %v769 = vpop.f32.mrf.mxu0
      %v770 = vadd.f32 0.0, %v769
      %v771 = vpop.f32.mrf.mxu0
      %v772 = vadd.f32 0.0, %v771
      %773 = vdwg.mxu0
      %774 = vmatpush.bf16.msra.mxu0 0
      %775 = vmatpush.bf16.msra.mxu0 0
      %776 = vmatpush.bf16.msra.mxu0 0
      %777 = vmatpush.bf16.msra.mxu0 0
      %778 = vmatpush.bf16.msra.mxu0 0
      %779 = vmatpush.bf16.msra.mxu0 0
      %780 = vmatpush.bf16.msra.mxu0 0
      %781 = vmatpush.bf16.msra.mxu0 %v746
      %782 = vmatmul.bf16.gmra.mxu0 %v758
      %v783 = vpop.f32.mrf.mxu0
      %v784 = vadd.f32 %v770, %v783
      %v785 = vpop.f32.mrf.mxu0
      %v786 = vadd.f32 %v772, %v785
      %787 = vdwg.mxu0
      %v807 = vunpack.c.l.b16 %v626
      %v808 = vunpack.c.l.b16 %v627
      %v809 = vunpack.c.l.b16 %v628
      %v810 = vunpack.c.l.b16 %v629
      %v811 = vunpack.c.l.b16 %v630
      %v812 = vunpack.c.l.b16 %v631
      %v813 = vunpack.c.l.b16 %v632
      %v814 = vunpack.c.l.b16 %v633
      %v815 = vunpack.c.l.b16 %v634
      %v816 = vunpack.c.l.b16 %v635
      %v817 = vunpack.c.l.b16 %v636
      %v818 = vunpack.c.l.b16 %v637
      %v819 = vunpack.c.l.b16 %v638
      %v820 = vunpack.c.l.b16 %v639
      %v821 = vunpack.c.l.b16 %v640
      %v822 = vunpack.c.l.b16 %v641
      %v823 = vunpack.c.l.b16 %v642
      %v824 = vunpack.c.l.b16 %v643
      %v825 = vpack.c.b16 %v808, %v807
      %v826 = vpack.c.b16 %v810, %v809
      %v827 = vpack.c.b16 %v812, %v811
      %v828 = vpack.c.b16 %v814, %v813
      %v829 = vpack.c.b16 %v816, %v815
      %v830 = vpack.c.b16 %v818, %v817
      %v831 = vpack.c.b16 %v820, %v819
      %v832 = vpack.c.b16 %v822, %v821
      %v833 = vpack.c.b16 %v824, %v823
      %v843 = vsel %vm756, %v674, 0
      %845 = vmatpush.bf16.msra.mxu0 %v832
      %846 = vmatpush.bf16.msra.mxu0 %v831
      %847 = vmatpush.bf16.msra.mxu0 %v830
      %848 = vmatpush.bf16.msra.mxu0 %v829
      %849 = vmatpush.bf16.msra.mxu0 %v828
      %850 = vmatpush.bf16.msra.mxu0 %v827
      %851 = vmatpush.bf16.msra.mxu0 %v826
      %852 = vmatpush.bf16.msra.mxu0 %v825
      %853 = vmatmul.bf16.gmra.mxu0 %v673
      %v854 = vpop.f32.mrf.mxu0
      %v855 = vadd.f32 %v784, %v854
      %v856 = vpop.f32.mrf.mxu0
      %v857 = vadd.f32 %v786, %v856
      %858 = vdwg.mxu0
      %859 = vmatpush.bf16.msra.mxu0 0
      %860 = vmatpush.bf16.msra.mxu0 0
      %861 = vmatpush.bf16.msra.mxu0 0
      %862 = vmatpush.bf16.msra.mxu0 0
      %863 = vmatpush.bf16.msra.mxu0 0
      %864 = vmatpush.bf16.msra.mxu0 0
      %865 = vmatpush.bf16.msra.mxu0 0
      %866 = vmatpush.bf16.msra.mxu0 %v833
      %867 = vmatmul.bf16.gmra.mxu0 %v843
      %v868 = vpop.f32.mrf.mxu0
      %v869 = vadd.f32 %v855, %v868
      %v870 = vpop.f32.mrf.mxu0
      %v871 = vadd.f32 %v857, %v870
      %872 = vdwg.mxu0
      %v873 = vld [vmem:[#allocation3] sm:$0xee]
      %s874 = scalar_lea.vmem %s3, 144
      %v875 = vld [vmem:[%s874] sm:$0xf]
      %v876 = vld [vmem:[%s874 + $0x4] sm:$0xf]
      %v877 = vld [vmem:[%s874 + $0x8] sm:$0xf]
      %v878 = vld [vmem:[%s874 + $0xc] sm:$0xf]
      %v879 = vld [vmem:[%s874 + $0x10] sm:$0xf]
      %v880 = vld [vmem:[%s874 + $0x14] sm:$0xf]
      %v881 = vld [vmem:[%s874 + $0x18] sm:$0xf]
      %v882 = vld [vmem:[%s874 + $0x1c] sm:$0xf]
      %v883 = vld [vmem:[%s874 + $0x20] sm:$0xf]
      %v884 = vld [vmem:[%s874 + $0x24] sm:$0xf]
      %v885 = vld [vmem:[%s874 + $0x28] sm:$0xf]
      %v886 = vld [vmem:[%s874 + $0x2c] sm:$0xf]
      %v887 = vld [vmem:[%s874 + $0x30] sm:$0xf]
      %v888 = vld [vmem:[%s874 + $0x34] sm:$0xf]
      %v889 = vld [vmem:[%s874 + $0x38] sm:$0xf]
      %v890 = vld [vmem:[%s874 + $0x3c] sm:$0xf]
      %v891 = vld [vmem:[%s874 + $0x40] sm:$0xf]
      %v892 = vld [vmem:[%s874 + $0x44] sm:$0xf]
      %v894 = vunpack.c.l.b16 %v873
      %v895 = vunpack.c.h.b16 %v873
      %v896 = vpack.c.b16 %v669, %v894
      %v897 = vpack.c.b16 %v670, %v895
      %v898 = vrot.slane %v896, 1
      %v899 = vrot.slane %v675, 1
      %v900 = vsel %vm488, %v898, %v899
      %v901 = vrot.slane %v897, 1
      %v902 = vrot.slane %v676, 1
      %v903 = vsel %vm488, %v901, %v902
      %v923 = vunpack.c.l.b16 %v875
      %v924 = vunpack.c.l.b16 %v876
      %v925 = vunpack.c.l.b16 %v877
      %v926 = vunpack.c.l.b16 %v878
      %v927 = vunpack.c.l.b16 %v879
      %v928 = vunpack.c.l.b16 %v880
      %v929 = vunpack.c.l.b16 %v881
      %v930 = vunpack.c.l.b16 %v882
      %v931 = vunpack.c.l.b16 %v883
      %v932 = vunpack.c.l.b16 %v884
      %v933 = vunpack.c.l.b16 %v885
      %v934 = vunpack.c.l.b16 %v886
      %v935 = vunpack.c.l.b16 %v887
      %v936 = vunpack.c.l.b16 %v888
      %v937 = vunpack.c.l.b16 %v889
      %v938 = vunpack.c.l.b16 %v890
      %v939 = vunpack.c.l.b16 %v891
      %v940 = vunpack.c.l.b16 %v892
      %v941 = vpack.c.b16 %v924, %v923
      %v942 = vpack.c.b16 %v926, %v925
      %v943 = vpack.c.b16 %v928, %v927
      %v944 = vpack.c.b16 %v930, %v929
      %v945 = vpack.c.b16 %v932, %v931
      %v946 = vpack.c.b16 %v934, %v933
      %v947 = vpack.c.b16 %v936, %v935
      %v948 = vpack.c.b16 %v938, %v937
      %v949 = vpack.c.b16 %v940, %v939
      %v960 = vsel %vm756, %v903, 0
      %962 = vmatpush.bf16.msra.mxu0 %v948
      %963 = vmatpush.bf16.msra.mxu0 %v947
      %964 = vmatpush.bf16.msra.mxu0 %v946
      %965 = vmatpush.bf16.msra.mxu0 %v945
      %966 = vmatpush.bf16.msra.mxu0 %v944
      %967 = vmatpush.bf16.msra.mxu0 %v943
      %968 = vmatpush.bf16.msra.mxu0 %v942
      %969 = vmatpush.bf16.msra.mxu0 %v941
      %970 = vmatmul.bf16.gmra.mxu0 %v900
      %v971 = vpop.f32.mrf.mxu0
      %v972 = vadd.f32 0.0, %v971
      %v973 = vpop.f32.mrf.mxu0
      %v974 = vadd.f32 0.0, %v973
      %975 = vdwg.mxu0
      %976 = vmatpush.bf16.msra.mxu0 0
      %977 = vmatpush.bf16.msra.mxu0 0
      %978 = vmatpush.bf16.msra.mxu0 0
      %979 = vmatpush.bf16.msra.mxu0 0
      %980 = vmatpush.bf16.msra.mxu0 0
      %981 = vmatpush.bf16.msra.mxu0 0
      %982 = vmatpush.bf16.msra.mxu0 0
      %983 = vmatpush.bf16.msra.mxu0 %v949
      %984 = vmatmul.bf16.gmra.mxu0 %v960
      %v985 = vpop.f32.mrf.mxu0
      %v986 = vadd.f32 %v972, %v985
      %v987 = vpop.f32.mrf.mxu0
      %v988 = vadd.f32 %v974, %v987
      %989 = vdwg.mxu0
      %v990 = vadd.f32 %v869, %v986
      %v991 = vadd.f32 %v871, %v988
      %v992 = vld [vmem:[%s4] sm:$0x1]
      %v994 = vperm.slane %v992, 0
      %v996 = vadd.f32 %v990, %v994
      %v997 = vadd.f32 %v991, %v994
      %v998 = vpack.c.bf16 %v996, %v996
      %v999 = vpack.c.bf16 %v997, %v997
      %1000 = vst [vmem:[%s285] sm:$0xf] %v998
      %1001 = vst [vmem:[%s285 + $0x4] sm:$0xf] %v999
      %v1002 = vmax.f32 %v996, 0.0
      %v1003 = vmax.f32 %v997, 0.0
      %v1004 = vpack.c.bf16 %v1002, %v1002
      %v1005 = vpack.c.bf16 %v1003, %v1003
      %v1008 = vrot.slane %v1004, 3
      %v1009 = vrot.slane %v1005, 3
      %vm1010 = vcmask 1040384
      %v1013 = vsel %vm1010, %v1004, %v1008
      %vm1014 = vcmask 1041409
      %v1015 = vsel %vm1014, %v1004, %v1008
      %v1017 = vrot.slane %v1015, 1
      %vm1018 = vcmask 1042434
      %v1019 = vsel %vm1018, %v1004, %v1008
      %v1021 = vrot.slane %v1019, 2
      %vm1022 = vcmask 1043459
      %v1023 = vsel %vm1022, %v1004, %v1008
      %v1025 = vrot.slane %v1023, 3
      %v1028 = vsel %vm1010, %v1005, %v1009
      %v1029 = vsel %vm1014, %v1005, %v1009
      %v1031 = vrot.slane %v1029, 1
      %v1032 = vsel %vm1018, %v1005, %v1009
      %v1034 = vrot.slane %v1032, 2
      %v1035 = vsel %vm1022, %v1005, %v1009
      %v1037 = vrot.slane %v1035, 3
      %v1046 = vunpack.c.l.bf16 %v1013
      %v1047 = vunpack.c.l.bf16 %v1017
      %v1048 = vunpack.c.l.bf16 %v1021
      %v1049 = vunpack.c.l.bf16 %v1025
      %v1050 = vunpack.c.l.bf16 %v1028
      %v1051 = vunpack.c.l.bf16 %v1031
      %v1052 = vunpack.c.l.bf16 %v1034
      %v1053 = vunpack.c.l.bf16 %v1037
      %v1062 = vrot.slane %v1046, 7
      %v1063 = vrot.slane %v1062, 2
      %v1064 = vrot.slane %v1047, 7
      %v1065 = vrot.slane %v1064, 2
      %v1066 = vrot.slane %v1048, 7
      %v1067 = vrot.slane %v1066, 2
      %v1068 = vrot.slane %v1049, 7
      %v1069 = vrot.slane %v1068, 2
      %v1070 = vrot.slane %v1050, 7
      %v1071 = vrot.slane %v1070, 2
      %v1072 = vrot.slane %v1051, 7
      %v1073 = vrot.slane %v1072, 2
      %v1074 = vrot.slane %v1052, 7
      %v1075 = vrot.slane %v1074, 2
      %v1076 = vrot.slane %v1053, 7
      %v1077 = vrot.slane %v1076, 2
      %v1086 = vmax.f32 %v1046, %v1063
      %v1087 = vmax.f32 %v1047, %v1065
      %v1088 = vmax.f32 %v1048, %v1067
      %v1089 = vmax.f32 %v1049, %v1069
      %v1090 = vmax.f32 %v1050, %v1071
      %v1091 = vmax.f32 %v1051, %v1073
      %v1092 = vmax.f32 %v1052, %v1075
      %v1093 = vmax.f32 %v1053, %v1077
      %v1094 = vpack.c.bf16 %v1086, %v1086
      %v1095 = vpack.c.bf16 %v1087, %v1087
      %v1096 = vpack.c.bf16 %v1088, %v1088
      %v1097 = vpack.c.bf16 %v1089, %v1089
      %v1098 = vpack.c.bf16 %v1090, %v1090
      %v1099 = vpack.c.bf16 %v1091, %v1091
      %v1100 = vpack.c.bf16 %v1092, %v1092
      %v1101 = vpack.c.bf16 %v1093, %v1093
      %v1102 = vld [vmem:[%s5] sm:$0xf]
      %v1103 = vld [vmem:[%s5 + $0x4] sm:$0xf]
      %v1104 = vld [vmem:[%s5 + $0x8] sm:$0xf]
      %v1105 = vld [vmem:[%s5 + $0xc] sm:$0xf]
      %v1106 = vld [vmem:[%s5 + $0x10] sm:$0xf]
      %v1107 = vld [vmem:[%s5 + $0x14] sm:$0xf]
      %v1108 = vld [vmem:[%s5 + $0x18] sm:$0xf]
      %v1109 = vld [vmem:[%s5 + $0x1c] sm:$0xf]
      %v1110 = vld [vmem:[%s5 + $0x20] sm:$0xf]
      %v1111 = vld [vmem:[%s5 + $0x24] sm:$0xf]
      %v1112 = vld [vmem:[%s5 + $0x28] sm:$0xf]
      %v1113 = vld [vmem:[%s5 + $0x2c] sm:$0xf]
      %v1114 = vld [vmem:[%s5 + $0x30] sm:$0xf]
      %v1115 = vld [vmem:[%s5 + $0x34] sm:$0xf]
      %v1116 = vld [vmem:[%s5 + $0x38] sm:$0xf]
      %v1117 = vld [vmem:[%s5 + $0x3c] sm:$0xf]
      %v1126 = vunpack.c.l.b16 %v1094
      %v1127 = vunpack.c.l.b16 %v1095
      %v1128 = vunpack.c.l.b16 %v1096
      %v1129 = vunpack.c.l.b16 %v1097
      %v1130 = vunpack.c.l.b16 %v1098
      %v1131 = vunpack.c.l.b16 %v1099
      %v1132 = vunpack.c.l.b16 %v1100
      %v1133 = vunpack.c.l.b16 %v1101
      %v1134 = vrot.slane %v1127, 7
      %v1135 = vsel %vm1014, %v1134, %v1126
      %v1136 = vrot.slane %v1128, 6
      %v1137 = vsel %vm1018, %v1136, %v1135
      %v1138 = vrot.slane %v1129, 5
      %v1139 = vsel %vm1022, %v1138, %v1137
      %v1140 = vrot.slane %v1130, 4
      %vm1141 = vcmask 1044484
      %v1142 = vsel %vm1141, %v1140, %v1139
      %v1143 = vrot.slane %v1131, 3
      %vm1144 = vcmask 1045509
      %v1145 = vsel %vm1144, %v1143, %v1142
      %v1146 = vrot.slane %v1132, 2
      %vm1147 = vcmask 1046534
      %v1148 = vsel %vm1147, %v1146, %v1145
      %v1149 = vrot.slane %v1133, 1
      %vm1150 = vcmask 1047559
      %v1151 = vsel %vm1150, %v1149, %v1148
      %v1152 = vpack.c.b16 %v1151, %v1151
      %v1170 = vunpack.c.l.b16 %v1102
      %v1171 = vunpack.c.l.b16 %v1103
      %v1172 = vunpack.c.l.b16 %v1104
      %v1173 = vunpack.c.l.b16 %v1105
      %v1174 = vunpack.c.l.b16 %v1106
      %v1175 = vunpack.c.l.b16 %v1107
      %v1176 = vunpack.c.l.b16 %v1108
      %v1177 = vunpack.c.l.b16 %v1109
      %v1178 = vunpack.c.l.b16 %v1110
      %v1179 = vunpack.c.l.b16 %v1111
      %v1180 = vunpack.c.l.b16 %v1112
      %v1181 = vunpack.c.l.b16 %v1113
      %v1182 = vunpack.c.l.b16 %v1114
      %v1183 = vunpack.c.l.b16 %v1115
      %v1184 = vunpack.c.l.b16 %v1116
      %v1185 = vunpack.c.l.b16 %v1117
      %v1186 = vpack.c.b16 %v1171, %v1170
      %v1187 = vpack.c.b16 %v1173, %v1172
      %v1188 = vpack.c.b16 %v1175, %v1174
      %v1189 = vpack.c.b16 %v1177, %v1176
      %v1190 = vpack.c.b16 %v1179, %v1178
      %v1191 = vpack.c.b16 %v1181, %v1180
      %v1192 = vpack.c.b16 %v1183, %v1182
      %v1193 = vpack.c.b16 %v1185, %v1184
      %1202 = vmatpush.bf16.msra.mxu0 %v1193
      %1203 = vmatpush.bf16.msra.mxu0 %v1192
      %1204 = vmatpush.bf16.msra.mxu0 %v1191
      %1205 = vmatpush.bf16.msra.mxu0 %v1190
      %1206 = vmatpush.bf16.msra.mxu0 %v1189
      %1207 = vmatpush.bf16.msra.mxu0 %v1188
      %1208 = vmatpush.bf16.msra.mxu0 %v1187
      %1209 = vmatpush.bf16.msra.mxu0 %v1186
      %1210 = vmatmul.bf16.gmra.mxu0 %v1152
      %v1211 = vpop.f32.mrf.mxu0
      %v1212 = vadd.f32 0.0, %v1211
      %v1213 = vpop.f32.mrf.mxu0
      %1214 = vdwg.mxu0
      %s1215 = scalar_lea.vmem %s5, 64
      %v1216 = vld [vmem:[%s1215] sm:$0xf]
      %v1217 = vld [vmem:[%s1215 + $0x4] sm:$0xf]
      %v1218 = vld [vmem:[%s1215 + $0x8] sm:$0xf]
      %v1219 = vld [vmem:[%s1215 + $0xc] sm:$0xf]
      %v1220 = vld [vmem:[%s1215 + $0x10] sm:$0xf]
      %v1221 = vld [vmem:[%s1215 + $0x14] sm:$0xf]
      %v1222 = vld [vmem:[%s1215 + $0x18] sm:$0xf]
      %v1223 = vld [vmem:[%s1215 + $0x1c] sm:$0xf]
      %v1224 = vld [vmem:[%s1215 + $0x20] sm:$0xf]
      %v1225 = vld [vmem:[%s1215 + $0x24] sm:$0xf]
      %v1226 = vld [vmem:[%s1215 + $0x28] sm:$0xf]
      %v1227 = vld [vmem:[%s1215 + $0x2c] sm:$0xf]
      %v1228 = vld [vmem:[%s1215 + $0x30] sm:$0xf]
      %v1229 = vld [vmem:[%s1215 + $0x34] sm:$0xf]
      %v1230 = vld [vmem:[%s1215 + $0x38] sm:$0xf]
      %v1231 = vld [vmem:[%s1215 + $0x3c] sm:$0xf]
      %v1248 = vunpack.c.l.b16 %v1216
      %v1249 = vunpack.c.l.b16 %v1217
      %v1250 = vunpack.c.l.b16 %v1218
      %v1251 = vunpack.c.l.b16 %v1219
      %v1252 = vunpack.c.l.b16 %v1220
      %v1253 = vunpack.c.l.b16 %v1221
      %v1254 = vunpack.c.l.b16 %v1222
      %v1255 = vunpack.c.l.b16 %v1223
      %v1256 = vunpack.c.l.b16 %v1224
      %v1257 = vunpack.c.l.b16 %v1225
      %v1258 = vunpack.c.l.b16 %v1226
      %v1259 = vunpack.c.l.b16 %v1227
      %v1260 = vunpack.c.l.b16 %v1228
      %v1261 = vunpack.c.l.b16 %v1229
      %v1262 = vunpack.c.l.b16 %v1230
      %v1263 = vunpack.c.l.b16 %v1231
      %v1264 = vpack.c.b16 %v1249, %v1248
      %v1265 = vpack.c.b16 %v1251, %v1250
      %v1266 = vpack.c.b16 %v1253, %v1252
      %v1267 = vpack.c.b16 %v1255, %v1254
      %v1268 = vpack.c.b16 %v1257, %v1256
      %v1269 = vpack.c.b16 %v1259, %v1258
      %v1270 = vpack.c.b16 %v1261, %v1260
      %v1271 = vpack.c.b16 %v1263, %v1262
      %1280 = vmatpush.bf16.msra.mxu0 %v1271
      %1281 = vmatpush.bf16.msra.mxu0 %v1270
      %1282 = vmatpush.bf16.msra.mxu0 %v1269
      %1283 = vmatpush.bf16.msra.mxu0 %v1268
      %1284 = vmatpush.bf16.msra.mxu0 %v1267
      %1285 = vmatpush.bf16.msra.mxu0 %v1266
      %1286 = vmatpush.bf16.msra.mxu0 %v1265
      %1287 = vmatpush.bf16.msra.mxu0 %v1264
      %1288 = vmatmul.bf16.gmra.mxu0 %v1152
      %v1289 = vpop.f32.mrf.mxu0
      %v1290 = vadd.f32 0.0, %v1289
      %v1291 = vpop.f32.mrf.mxu0
      %1292 = vdwg.mxu0
      %v1293 = vmax.f32 %v1212, %v1290
      %v1294 = vpack.c.bf16 %v1293, %v1293
      %vm1295 = vcmask 519168
      %1296 = vst.msk [vmem:[%s289] sm:$0xf] %vm1295, %v1294
      %p1297 = scmp.lt.s32.totalorder %s19, 3
      %s1298 = scalar_select %p1297, %s19, 3
      %s1299 = smul.addr %s1298, 2
      %s1300 = smul.addr %s1299, 4
      %s1301 = scalar_lea.vmem %s6, %s1300
      %p1302 = scmp.lt.s32.totalorder %s19, 3
      %s1303 = scalar_select %p1302, %s19, 3
      %s1304 = smul.addr %s1303, 4
      %s1305 = scalar_lea.vmem %s7, %s1304
      // Predicated region
      $region45: #{_lambda_.8} parent=43 // pred_check
        %p1306 = pneg %p168
      $region46: #{_lambda_.8} parent=43 // pred_check_branch
        %1308 = sbr.rel (%p1306) target = $region48
      $region47: #{_lambda_.8} parent=43 // pred_region
        _
      $region48: #{_lambda_.8} parent=43 // pred_fallthru
        _
      // Predicated region
      $region49: #{_lambda_.8} parent=43 // pred_check
        %p1309 = pneg %p194
      $region50: #{_lambda_.8} parent=43 // pred_check_branch
        %1311 = sbr.rel (%p1309) target = $region52
      $region51: #{_lambda_.8} parent=43 // pred_region
        _
      $region52: #{_lambda_.8} parent=43 // pred_fallthru
        _
    $region44: #{_lambda_.8} parent=5 // pred_fallthru
      _
    %p1312 = scmp.le.s32.totalorder 2, %s14
    // Predicated region
    $region53: #{_lambda_.8} parent=5 // pred_check
      %p1313 = pneg %p1312
    $region54: #{_lambda_.8} parent=5 // pred_check_branch
      %1315 = sbr.rel (%p1313) target = $region56
    $region55: #{_lambda_.8} parent=5 // pred_region
      %s1316 = ssub.s32 %s14, 2
      // Predicated region
      $region57: #{_lambda_.8} parent=55 // pred_check
        %p1317 = pneg %p174
      $region58: #{_lambda_.8} parent=55 // pred_check_branch
        %1319 = sbr.rel (%p1317) target = $region60
      $region59: #{_lambda_.8} parent=55 // pred_region
        %p1320 = scmp.lt.s32.totalorder %s20, 3
        %s1321 = scalar_select %p1320, %s20, 3
        %s1322 = smul.addr %s1321, 2
        %s1323 = smul.addr %s1322, 4
        %s1324 = scalar_lea.vmem %s6, %s1323
      $region60: #{_lambda_.8} parent=55 // pred_fallthru
        _
      // Predicated region
      $region61: #{_lambda_.8} parent=55 // pred_check
        %p1325 = pneg %p200
      $region62: #{_lambda_.8} parent=55 // pred_check_branch
        %1327 = sbr.rel (%p1325) target = $region64
      $region63: #{_lambda_.8} parent=55 // pred_region
        %p1328 = scmp.lt.s32.totalorder %s20, 3
        %s1329 = scalar_select %p1328, %s20, 3
        %s1330 = smul.addr %s1329, 4
        %s1331 = scalar_lea.vmem %s7, %s1330
      $region64: #{_lambda_.8} parent=55 // pred_fallthru
        _
    $region56: #{_lambda_.8} parent=5 // pred_fallthru
      _
  $region6: #{_lambda_.8} parent=0 // loop_footer
    %s18 = sadd.s32 1, %s14
  $region7: #{_lambda_.8} parent=0 // loop_footer_branch
    %13 = sbr.rel target = $region3
  $region8: #{_lambda_.8} parent=0 // loop_exit
    _

// kernel: tile.26
$region0: #{tile.26}
  #allocation0 [shape = 's32[1]{0}', space=sflag, size = 0x4, scoped, tag = 'scoped memory for tile.26']
  %s0 = inlined_call_operand.vmem [shape: f32[16], index: 0, kind: input, shape index: {}]
  %s1 = inlined_call_operand.vmem [shape: f32[8,16], index: 1, kind: output, shape index: {}]
  // Predicated region
  $region2: #{tile.26} parent=0 // pred_check
    _
  $region3: #{tile.26} parent=0 // pred_check_branch
    %3 = sbr.rel (0) target = $region5
  $region4: #{tile.26} parent=0 // pred_region
    _
  $region5: #{tile.26} parent=0 // pred_fallthru
    _
  %v4 = vld [vmem:[%s0] ss:$0 sm:$0xff]
  %5 = vst [vmem:[%s1] sm:$0xff] %v4

// kernel: tile.27
$region0: #{tile.27}
  %s0 = inlined_call_operand.vmem [shape: f32[8,16], index: 0, kind: input, shape index: {}]
  %s1 = inlined_call_operand.vmem [shape: f32[1,128], index: 1, kind: output, shape index: {}]
  $region1: #{tile.27} parent=0
    #allocation0 [shape = 'u8[4096]{0}', space=vmem, size = 0x1000, scoped, tag = 'scoped mem for output reshape']
    %v2 = vld [vmem:[%s0] sm:$0x1]
    %vm3 = vcmask 130048
    %4 = vst.msk [vmem:[#allocation0] sm:$0x1] %vm3, %v2
    %s5 = scalar_lea.vmem %s0, 7
    %v6 = vld [vmem:[%s5] sm:$0x1]
    %7 = vrot.lane.b32.xlu0 %v6, 112
    %v8 = vpop.permute.xlu0 %7
    %vm9 = vcmask 1048448
    %10 = vst.msk [vmem:[#allocation0] sm:$0x1] %vm9, %v8
    %s11 = scalar_lea.vmem %s0, 6
    %v12 = vld [vmem:[%s11] sm:$0x1]
    %13 = vrot.lane.b32.xlu0 %v12, 96
    %v14 = vpop.permute.xlu0 %13
    %vm15 = vcmask 917248
    %16 = vst.msk [vmem:[#allocation0] sm:$0x1] %vm15, %v14
    %s17 = scalar_lea.vmem %s0, 5
    %v18 = vld [vmem:[%s17] sm:$0x1]
    %19 = vrot.lane.b32.xlu0 %v18, 80
    %v20 = vpop.permute.xlu0 %19
    %vm21 = vcmask 786048
    %22 = vst.msk [vmem:[#allocation0] sm:$0x1] %vm21, %v20
    %s23 = scalar_lea.vmem %s0, 4
    %v24 = vld [vmem:[%s23] sm:$0x1]
    %25 = vrot.lane.b32.xlu0 %v24, 64
    %v26 = vpop.permute.xlu0 %25
    %vm27 = vcmask 654848
    %28 = vst.msk [vmem:[#allocation0] sm:$0x1] %vm27, %v26
    %s29 = scalar_lea.vmem %s0, 3
    %v30 = vld [vmem:[%s29] sm:$0x1]
    %31 = vrot.lane.b32.xlu0 %v30, 48
    %v32 = vpop.permute.xlu0 %31
    %vm33 = vcmask 523648
    %34 = vst.msk [vmem:[#allocation0] sm:$0x1] %vm33, %v32
    %s35 = scalar_lea.vmem %s0, 2
    %v36 = vld [vmem:[%s35] sm:$0x1]
    %37 = vrot.lane.b32.xlu0 %v36, 32
    %v38 = vpop.permute.xlu0 %37
    %vm39 = vcmask 392448
    %40 = vst.msk [vmem:[#allocation0] sm:$0x1] %vm39, %v38
    %s41 = scalar_lea.vmem %s0, 1
    %v42 = vld [vmem:[%s41] sm:$0x1]
    %43 = vrot.lane.b32.xlu0 %v42, 16
    %v44 = vpop.permute.xlu0 %43
    %vm45 = vcmask 261248
    %46 = vst.msk [vmem:[#allocation0] sm:$0x1] %vm45, %v44
    %s48 = ssub.s32 2, 1
    %v49 = vld [vmem:[#allocation0] sm:%s48]
    %s51 = ssub.s32 2, 1
    %52 = vst [vmem:[%s1] sm:%s51] %v49

// kernel: _lambda_.14
$region0: #{_lambda_.14}
  #allocation0 [shape = 'u32[]', space=smem, size = 0x4, offset = 0x4, fixed_abs, tag = 'smem constant byte address 0x4 - core index']
  #allocation1 [shape = 'u32[72,128]{1,0:T(1,128)}', space=vmem, size = 0x9000, scoped, tag = 'internal scratch']
  %s0 = inlined_call_operand.vmem [shape: bf16[4,64,16], index: 0, kind: input, shape index: {}]
  %s1 = inlined_call_operand.vmem [shape: f32[4,16,16], index: 1, kind: output, shape index: {}]
  %s2 = sld [smem:[#allocation0]]
  $region41: #{_lambda_.14} parent=0
    _
  %s4 = ssub.s32 1, %s2
  %s5 = scalar_select 0, %s4, %s2
  loop: start=0, step=1, limit=6
  $region2: #{_lambda_.14} parent=0 // loop_pre_header
    _
  $region3: #{_lambda_.14} parent=0 // loop_header
    %s7 = sphi 0, %s11
    %p8 = scmp.ge.s32.totalorder %s7, 6
    %s14 = sphi 0, %s26
    %s15 = sphi 0, %s22
    %s16 = sphi 0, %s14
    %s17 = sphi 0, %s15
    %s18 = sphi 0, %s16
    %s19 = sphi 0, %s17
    %s31 = sphi 0, %s33
    %s34 = sphi 0, %s31
    %s35 = sphi 0, %s34
    %s51 = sphi 0, %s35
    %s57 = sphi 0, %s59
    %s60 = sphi 0, %s57
    %s61 = sphi 0, %s60
    %s77 = sphi 0, %s61
  $region4: #{_lambda_.14} parent=0 // loop_header_branch
    %10 = sbr.rel (%p8) target = $region8
  $region5: #{_lambda_.14} parent=0 // loop_body
    %s12 = ssub.s32 %s7, 1
    %s13 = ssub.s32 %s7, 2
    %s20 = sadd.s32 1, %s15
    %p21 = scmp.ge.s32.totalorder %s20, 1
    %s22 = scalar_select %p21, 0, %s20
    %s23 = sadd.s32 1, %s14
    %s24 = scalar_select %p21, %s23, %s14
    %p25 = scmp.ge.s32.totalorder %s24, 4
    %s26 = scalar_select %p25, 0, %s24
    %s27 = ssub.s32 %s14, %s26
    %s28 = ssub.s32 %s15, %s22
    %s29 = sor.u32 %s27, %s28
    %p30 = scmp.eq.s32.totalorder %s29, 0
    %s32 = sadd.s32 %s31, 1
    %s33 = scalar_select %p30, %s31, %s32
    %p36 = pneg %p30
    %p37 = scmp.eq.s32.totalorder %s7, 3
    %p38 = por %p36, %p37
    %p39 = scmp.ne.s32.totalorder %s31, %s34
    %p40 = scmp.eq.s32.totalorder %s7, 0
    %p41 = por %p39, %p40
    %p42 = scmp.ne.s32.totalorder %s31, %s34
    %p43 = scmp.eq.s32.totalorder %s12, 3
    %p44 = por %p42, %p43
    %p45 = scmp.ne.s32.totalorder %s34, %s35
    %p46 = scmp.eq.s32.totalorder %s12, 0
    %p47 = por %p45, %p46
    %p48 = scmp.ne.s32.totalorder %s34, %s35
    %p49 = scmp.eq.s32.totalorder %s13, 3
    %p50 = por %p48, %p49
    %p52 = scmp.ne.s32.totalorder %s35, %s51
    %p53 = scmp.eq.s32.totalorder %s13, 0
    %p54 = por %p52, %p53
    %s55 = ssub.s32 %s14, %s26
    %p56 = scmp.eq.s32.totalorder %s55, 0
    %s58 = sadd.s32 %s57, 1
    %s59 = scalar_select %p56, %s57, %s58
    %p62 = pneg %p56
    %p63 = scmp.eq.s32.totalorder %s7, 3
    %p64 = por %p62, %p63
    %p65 = scmp.ne.s32.totalorder %s57, %s60
    %p66 = scmp.eq.s32.totalorder %s7, 0
    %p67 = por %p65, %p66
    %p68 = scmp.ne.s32.totalorder %s57, %s60
    %p69 = scmp.eq.s32.totalorder %s12, 3
    %p70 = por %p68, %p69
    %p71 = scmp.ne.s32.totalorder %s60, %s61
    %p72 = scmp.eq.s32.totalorder %s12, 0
    %p73 = por %p71, %p72
    %p74 = scmp.ne.s32.totalorder %s60, %s61
    %p75 = scmp.eq.s32.totalorder %s13, 3
    %p76 = por %p74, %p75
    %p78 = scmp.ne.s32.totalorder %s61, %s77
    %p79 = scmp.eq.s32.totalorder %s13, 0
    %p80 = por %p78, %p79
    %p81 = scmp.le.s32.totalorder 1, %s7
    %p82 = scmp.lt.s32.totalorder %s7, 5
    %p83 = pnand %p81, %p82
    %p84 = pneg %p83
    // Predicated region
    $region9: #{_lambda_.14} parent=5 // pred_check
      _
    $region10: #{_lambda_.14} parent=5 // pred_check_branch
      %86 = sbr.rel (%p83) target = $region12
    $region11: #{_lambda_.14} parent=5 // pred_region
      %s87 = ssub.s32 %s7, 1
    $region12: #{_lambda_.14} parent=5 // pred_fallthru
      _
    %p88 = scmp.lt.s32.totalorder %s7, 4
    // Predicated region
    $region13: #{_lambda_.14} parent=5 // pred_check
      %p89 = pneg %p88
    $region14: #{_lambda_.14} parent=5 // pred_check_branch
      %91 = sbr.rel (%p89) target = $region16
    $region15: #{_lambda_.14} parent=5 // pred_region
      // Predicated region
      $region17: #{_lambda_.14} parent=15 // pred_check
        %p92 = pneg %p41
      $region18: #{_lambda_.14} parent=15 // pred_check_branch
        %94 = sbr.rel (%p92) target = $region20
      $region19: #{_lambda_.14} parent=15 // pred_region
        %s95 = smul.u32 8, %s15
        %p96 = scmp.lt.s32.totalorder %s14, 3
        %s97 = scalar_select %p96, %s14, 3
        %p98 = scmp.lt.s32.totalorder %s95, 7
        %s99 = scalar_select %p98, %s95, 7
        %s100 = smul.addr %s97, 8
        %s101 = sadd.s32 %s99, %s100
        %s102 = smul.addr %s101, 4
        %s103 = scalar_lea.vmem %s0, %s102
        %s104 = smul.u32 8, %s15
      $region20: #{_lambda_.14} parent=15 // pred_fallthru
        _
    $region16: #{_lambda_.14} parent=5 // pred_fallthru
      _
    %p105 = scmp.le.s32.totalorder 1, %s7
    %p106 = scmp.lt.s32.totalorder %s7, 5
    %p107 = pnand %p105, %p106
    %p108 = pneg %p107
    // Predicated region
    $region21: #{_lambda_.14} parent=5 // pred_check
      _
    $region22: #{_lambda_.14} parent=5 // pred_check_branch
      %110 = sbr.rel (%p107) target = $region24
    $region23: #{_lambda_.14} parent=5 // pred_region
      %s111 = ssub.s32 %s7, 1
      %s112 = smul.u32 8, %s17
      %p113 = scmp.lt.s32.totalorder %s16, 3
      %s114 = scalar_select %p113, %s16, 3
      %p115 = scmp.lt.s32.totalorder %s112, 7
      %s116 = scalar_select %p115, %s112, 7
      %s117 = smul.addr %s114, 8
      %s118 = sadd.s32 %s116, %s117
      %s119 = smul.addr %s118, 4
      %s120 = scalar_lea.vmem %s0, %s119
      %p121 = pneg %p47
      %p122 = pneg %p44
      %p123 = pneg %p73
      %p124 = pneg %p70
      %p125 = scmp.lt.s32.totalorder %s16, 3
      %s126 = scalar_select %p125, %s16, 3
      %s127 = smul.addr %s126, 2
      %s128 = smul.addr %s127, 8
      %s129 = scalar_lea.vmem %s1, %s128
      %s130 = smul.u32 8, %s17
      %p131 = scmp.lt.s32.totalorder %s16, 3
      %s132 = scalar_select %p131, %s16, 3
      %p133 = scmp.lt.s32.totalorder %s130, 7
      %s134 = scalar_select %p133, %s130, 7
      %s135 = smul.addr %s132, 8
      %s136 = sadd.s32 %s134, %s135
      %s137 = smul.addr %s136, 4
      %s138 = scalar_lea.vmem %s0, %s137
      %s139 = smul.u32 8, %s17
      %p140 = scmp.lt.s32.totalorder %s16, 3
      %s141 = scalar_select %p140, %s16, 3
      %s142 = smul.addr %s141, 2
      %s143 = smul.addr %s142, 8
      %s144 = scalar_lea.vmem %s1, %s143
      %p146 = scmp.eq.s32.totalorder %s17, 0
      // Predicated region
      $region25: #{_lambda_.14} parent=23 // pred_check
        %p147 = pneg %p146
      $region26: #{_lambda_.14} parent=23 // pred_check_branch
        %149 = sbr.rel (%p147) target = $region28
      $region27: #{_lambda_.14} parent=23 // pred_region
        %vm150 = vcmask 130048
        %151 = vst.msk [vmem:[%s144] sm:$0xff] %vm150, 0.0
        %152 = vst.msk [vmem:[%s144 + $0x8] sm:$0xff] %vm150, 0.0
      $region28: #{_lambda_.14} parent=23 // pred_fallthru
        _
      %v153 = vld [vmem:[%s138] sm:$0xf]
      %v154 = vld [vmem:[%s138 + $0x4] sm:$0xf]
      %v155 = vld [vmem:[%s138 + $0x8] sm:$0xf]
      %v156 = vld [vmem:[%s138 + $0xc] sm:$0xf]
      %v157 = vld [vmem:[%s138 + $0x10] sm:$0xf]
      %v158 = vld [vmem:[%s138 + $0x14] sm:$0xf]
      %v159 = vld [vmem:[%s138 + $0x18] sm:$0xf]
      %v160 = vld [vmem:[%s138 + $0x1c] sm:$0xf]
      %v169 = vunpack.c.l.b16 %v153
      %v170 = vunpack.c.l.b16 %v154
      %v171 = vunpack.c.l.b16 %v155
      %v172 = vunpack.c.l.b16 %v156
      %v173 = vunpack.c.l.b16 %v157
      %v174 = vunpack.c.l.b16 %v158
      %v175 = vunpack.c.l.b16 %v159
      %v176 = vunpack.c.l.b16 %v160
      %v177 = vpack.c.b16 %v170, %v169
      %v178 = vpack.c.b16 %v172, %v171
      %v179 = vpack.c.b16 %v174, %v173
      %v180 = vpack.c.b16 %v176, %v175
      %185 = vxpose.xlu0.c.b16.start [1/8] %v177, 128
      %186 = vxpose.xlu0.c.b16.cont [2/8] %v178, 128
      %187 = vxpose.xlu0.c.b16.cont [3/8] %v179, 128
      %188 = vxpose.xlu0.c.b16.cont [4/8] %v180, 128
      %189 = vxpose.xlu0.c.b16.cont [5/8] 0, 128
      %190 = vxpose.xlu0.c.b16.cont [6/8] 0, 128
      %191 = vxpose.xlu0.c.b16.cont [7/8] 0, 128
      %192 = vxpose.xlu0.c.b16.end [8/8] 0, 128
      %v193 = vpop.trf.xlu0
      %v194 = vpop.trf.xlu0
      %v195 = vpop.trf.xlu0
      %v196 = vpop.trf.xlu0
      %v197 = vpop.trf.xlu0
      %v198 = vpop.trf.xlu0
      %v199 = vpop.trf.xlu0
      %v200 = vpop.trf.xlu0
      %vm201 = vcmask 523264
      %v203 = vsel %vm201, %v193, 0
      %205 = vmatpush.bf16.msra.mxu0 0
      %206 = vmatpush.bf16.msra.mxu0 0
      %207 = vmatpush.bf16.msra.mxu0 0
      %208 = vmatpush.bf16.msra.mxu0 0
      %209 = vmatpush.bf16.msra.mxu0 %v180
      %210 = vmatpush.bf16.msra.mxu0 %v179
      %211 = vmatpush.bf16.msra.mxu0 %v178
      %212 = vmatpush.bf16.msra.mxu0 %v177
      %213 = vmatmul.bf16.gmra.mxu0 %v203
      %v214 = vpop.f32.mrf.mxu0
      %v215 = vadd.f32 0.0, %v214
      %v216 = vpop.f32.mrf.mxu0
      %v217 = vadd.f32 0.0, %v216
      %218 = vdwg.mxu0
      %v219 = vld [vmem:[%s144] sm:$0xff]
      %v220 = vld [vmem:[%s144 + $0x8] sm:$0xff]
      %v221 = vadd.f32 %v219, %v215
      %v222 = vadd.f32 %v220, %v217
      %vm223 = vcmask 130048
      %224 = vst.msk [vmem:[%s144] sm:$0xff] %vm223, %v221
      %225 = vst.msk [vmem:[%s144 + $0x8] sm:$0xff] %vm223, %v222
      %p226 = scmp.lt.s32.totalorder %s16, 3
      %s227 = scalar_select %p226, %s16, 3
      %s228 = smul.addr %s227, 2
      %s229 = smul.addr %s228, 8
      %s230 = scalar_lea.vmem %s1, %s229
      // Predicated region
      $region29: #{_lambda_.14} parent=23 // pred_check
        %p231 = pneg %p70
      $region30: #{_lambda_.14} parent=23 // pred_check_branch
        %233 = sbr.rel (%p231) target = $region32
      $region31: #{_lambda_.14} parent=23 // pred_region
        _
      $region32: #{_lambda_.14} parent=23 // pred_fallthru
        _
    $region24: #{_lambda_.14} parent=5 // pred_fallthru
      _
    %p234 = scmp.le.s32.totalorder 2, %s7
    // Predicated region
    $region33: #{_lambda_.14} parent=5 // pred_check
      %p235 = pneg %p234
    $region34: #{_lambda_.14} parent=5 // pred_check_branch
      %237 = sbr.rel (%p235) target = $region36
    $region35: #{_lambda_.14} parent=5 // pred_region
      %s238 = ssub.s32 %s7, 2
      // Predicated region
      $region37: #{_lambda_.14} parent=35 // pred_check
        %p239 = pneg %p76
      $region38: #{_lambda_.14} parent=35 // pred_check_branch
        %241 = sbr.rel (%p239) target = $region40
      $region39: #{_lambda_.14} parent=35 // pred_region
        %p242 = scmp.lt.s32.totalorder %s18, 3
        %s243 = scalar_select %p242, %s18, 3
        %s244 = smul.addr %s243, 2
        %s245 = smul.addr %s244, 8
        %s246 = scalar_lea.vmem %s1, %s245
      $region40: #{_lambda_.14} parent=35 // pred_fallthru
        _
    $region36: #{_lambda_.14} parent=5 // pred_fallthru
      _
  $region6: #{_lambda_.14} parent=0 // loop_footer
    %s11 = sadd.s32 1, %s7
  $region7: #{_lambda_.14} parent=0 // loop_footer_branch
    %6 = sbr.rel target = $region3
  $region8: #{_lambda_.14} parent=0 // loop_exit
    _

// kernel: _lambda_.9
$region0: #{_lambda_.9}
  #allocation0 [shape = 'u32[]', space=smem, size = 0x4, offset = 0x4, fixed_abs, tag = 'smem constant byte address 0x4 - core index']
  #allocation1 [shape = 'u32[72,128]{1,0:T(1,128)}', space=vmem, size = 0x9000, scoped, tag = 'internal scratch']
  #allocation2 [shape = 'bf16[10,80]{1,0:T(8,128)(2,1)}', space=vmem, size = 0x1000, scoped, tag = 'scratch operand']
  #allocation3 [shape = 'bf16[10,160]{1,0:T(8,128)(2,1)}', space=vmem, size = 0x2000, scoped, tag = 'scratch operand']
  %s0 = inlined_call_operand.vmem [shape: bf16[4,8,64], index: 0, kind: input, shape index: {}]
  %s1 = inlined_call_operand.vmem [shape: bf16[3,80,128], index: 1, kind: input, shape index: {}]
  %s2 = inlined_call_operand.vmem [shape: f32[1,128], index: 2, kind: input, shape index: {}]
  %s3 = inlined_call_operand.vmem [shape: bf16[3,160,128], index: 3, kind: input, shape index: {}]
  %s4 = inlined_call_operand.vmem [shape: f32[1,128], index: 4, kind: input, shape index: {}]
  %s5 = inlined_call_operand.vmem [shape: bf16[4,8,128], index: 5, kind: output, shape index: {}]
  %s6 = sld [smem:[#allocation0]]
  $region53: #{_lambda_.9} parent=0
    _
  %s8 = ssub.s32 1, %s6
  %s9 = scalar_select 0, %s8, %s6
  loop: start=0, step=1, limit=6
  $region2: #{_lambda_.9} parent=0 // loop_pre_header
    _
  $region3: #{_lambda_.9} parent=0 // loop_header
    %s11 = sphi 0, %s15
    %p12 = scmp.ge.s32.totalorder %s11, 6
    %s21 = sphi 0, %s23
    %s24 = sphi 0, %s21
    %s25 = sphi 0, %s24
    %s41 = sphi 0, %s25
    %s45 = sphi 0, %s45
    %s47 = sphi 0, %s45
    %s48 = sphi 0, %s47
    %s62 = sphi 0, %s48
    %s66 = sphi 0, %s66
    %s68 = sphi 0, %s66
    %s69 = sphi 0, %s68
    %s83 = sphi 0, %s69
    %s87 = sphi 0, %s87
    %s89 = sphi 0, %s87
    %s90 = sphi 0, %s89
    %s104 = sphi 0, %s90
    %s108 = sphi 0, %s108
    %s110 = sphi 0, %s108
    %s111 = sphi 0, %s110
    %s125 = sphi 0, %s111
    %s131 = sphi 0, %s133
    %s134 = sphi 0, %s131
    %s135 = sphi 0, %s134
    %s151 = sphi 0, %s135
  $region4: #{_lambda_.9} parent=0 // loop_header_branch
    %14 = sbr.rel (%p12) target = $region8
  $region5: #{_lambda_.9} parent=0 // loop_body
    %s16 = ssub.s32 %s11, 1
    %s17 = ssub.s32 %s11, 2
    %s18 = sadd.s32 %s11, 1
    %s19 = ssub.s32 %s11, %s18
    %p20 = scmp.eq.s32.totalorder %s19, 0
    %s22 = sadd.s32 %s21, 1
    %s23 = scalar_select %p20, %s21, %s22
    %p26 = pneg %p20
    %p27 = scmp.eq.s32.totalorder %s11, 3
    %p28 = por %p26, %p27
    %p29 = scmp.ne.s32.totalorder %s21, %s24
    %p30 = scmp.eq.s32.totalorder %s11, 0
    %p31 = por %p29, %p30
    %p32 = scmp.ne.s32.totalorder %s21, %s24
    %p33 = scmp.eq.s32.totalorder %s16, 3
    %p34 = por %p32, %p33
    %p35 = scmp.ne.s32.totalorder %s24, %s25
    %p36 = scmp.eq.s32.totalorder %s16, 0
    %p37 = por %p35, %p36
    %p38 = scmp.ne.s32.totalorder %s24, %s25
    %p39 = scmp.eq.s32.totalorder %s17, 3
    %p40 = por %p38, %p39
    %p42 = scmp.ne.s32.totalorder %s25, %s41
    %p43 = scmp.eq.s32.totalorder %s17, 0
    %p44 = por %p42, %p43
    %s46 = sadd.s32 %s45, 1
    %p49 = scmp.eq.s32.totalorder %s11, 3
    %p50 = scmp.ne.s32.totalorder %s45, %s47
    %p51 = scmp.eq.s32.totalorder %s11, 0
    %p52 = por %p50, %p51
    %p53 = scmp.ne.s32.totalorder %s45, %s47
    %p54 = scmp.eq.s32.totalorder %s16, 3
    %p55 = por %p53, %p54
    %p56 = scmp.ne.s32.totalorder %s47, %s48
    %p57 = scmp.eq.s32.totalorder %s16, 0
    %p58 = por %p56, %p57
    %p59 = scmp.ne.s32.totalorder %s47, %s48
    %p60 = scmp.eq.s32.totalorder %s17, 3
    %p61 = por %p59, %p60
    %p63 = scmp.ne.s32.totalorder %s48, %s62
    %p64 = scmp.eq.s32.totalorder %s17, 0
    %p65 = por %p63, %p64
    %s67 = sadd.s32 %s66, 1
    %p70 = scmp.eq.s32.totalorder %s11, 3
    %p71 = scmp.ne.s32.totalorder %s66, %s68
    %p72 = scmp.eq.s32.totalorder %s11, 0
    %p73 = por %p71, %p72
    %p74 = scmp.ne.s32.totalorder %s66, %s68
    %p75 = scmp.eq.s32.totalorder %s16, 3
    %p76 = por %p74, %p75
    %p77 = scmp.ne.s32.totalorder %s68, %s69
    %p78 = scmp.eq.s32.totalorder %s16, 0
    %p79 = por %p77, %p78
    %p80 = scmp.ne.s32.totalorder %s68, %s69
    %p81 = scmp.eq.s32.totalorder %s17, 3
    %p82 = por %p80, %p81
    %p84 = scmp.ne.s32.totalorder %s69, %s83
    %p85 = scmp.eq.s32.totalorder %s17, 0
    %p86 = por %p84, %p85
    %s88 = sadd.s32 %s87, 1
    %p91 = scmp.eq.s32.totalorder %s11, 3
    %p92 = scmp.ne.s32.totalorder %s87, %s89
    %p93 = scmp.eq.s32.totalorder %s11, 0
    %p94 = por %p92, %p93
    %p95 = scmp.ne.s32.totalorder %s87, %s89
    %p96 = scmp.eq.s32.totalorder %s16, 3
    %p97 = por %p95, %p96
    %p98 = scmp.ne.s32.totalorder %s89, %s90
    %p99 = scmp.eq.s32.totalorder %s16, 0
    %p100 = por %p98, %p99
    %p101 = scmp.ne.s32.totalorder %s89, %s90
    %p102 = scmp.eq.s32.totalorder %s17, 3
    %p103 = por %p101, %p102
    %p105 = scmp.ne.s32.totalorder %s90, %s104
    %p106 = scmp.eq.s32.totalorder %s17, 0
    %p107 = por %p105, %p106
    %s109 = sadd.s32 %s108, 1
    %p112 = scmp.eq.s32.totalorder %s11, 3
    %p113 = scmp.ne.s32.totalorder %s108, %s110
    %p114 = scmp.eq.s32.totalorder %s11, 0
    %p115 = por %p113, %p114
    %p116 = scmp.ne.s32.totalorder %s108, %s110
    %p117 = scmp.eq.s32.totalorder %s16, 3
    %p118 = por %p116, %p117
    %p119 = scmp.ne.s32.totalorder %s110, %s111
    %p120 = scmp.eq.s32.totalorder %s16, 0
    %p121 = por %p119, %p120
    %p122 = scmp.ne.s32.totalorder %s110, %s111
    %p123 = scmp.eq.s32.totalorder %s17, 3
    %p124 = por %p122, %p123
    %p126 = scmp.ne.s32.totalorder %s111, %s125
    %p127 = scmp.eq.s32.totalorder %s17, 0
    %p128 = por %p126, %p127
    %s129 = ssub.s32 %s11, %s18
    %p130 = scmp.eq.s32.totalorder %s129, 0
    %s132 = sadd.s32 %s131, 1
    %s133 = scalar_select %p130, %s131, %s132
    %p136 = pneg %p130
    %p137 = scmp.eq.s32.totalorder %s11, 3
    %p138 = por %p136, %p137
    %p139 = scmp.ne.s32.totalorder %s131, %s134
    %p140 = scmp.eq.s32.totalorder %s11, 0
    %p141 = por %p139, %p140
    %p142 = scmp.ne.s32.totalorder %s131, %s134
    %p143 = scmp.eq.s32.totalorder %s16, 3
    %p144 = por %p142, %p143
    %p145 = scmp.ne.s32.totalorder %s134, %s135
    %p146 = scmp.eq.s32.totalorder %s16, 0
    %p147 = por %p145, %p146
    %p148 = scmp.ne.s32.totalorder %s134, %s135
    %p149 = scmp.eq.s32.totalorder %s17, 3
    %p150 = por %p148, %p149
    %p152 = scmp.ne.s32.totalorder %s135, %s151
    %p153 = scmp.eq.s32.totalorder %s17, 0
    %p154 = por %p152, %p153
    %p155 = scmp.le.s32.totalorder 1, %s11
    %p156 = scmp.lt.s32.totalorder %s11, 5
    %p157 = pnand %p155, %p156
    %p158 = pneg %p157
    // Predicated region
    $region9: #{_lambda_.9} parent=5 // pred_check
      _
    $region10: #{_lambda_.9} parent=5 // pred_check_branch
      %160 = sbr.rel (%p157) target = $region12
    $region11: #{_lambda_.9} parent=5 // pred_region
      %s161 = ssub.s32 %s11, 1
      // Predicated region
      $region13: #{_lambda_.9} parent=11 // pred_check
        %p162 = pneg %p58
      $region14: #{_lambda_.9} parent=11 // pred_check_branch
        %164 = sbr.rel (%p162) target = $region16
      $region15: #{_lambda_.9} parent=11 // pred_region
        _
      $region16: #{_lambda_.9} parent=11 // pred_fallthru
        _
      // Predicated region
      $region17: #{_lambda_.9} parent=11 // pred_check
        %p165 = pneg %p79
      $region18: #{_lambda_.9} parent=11 // pred_check_branch
        %167 = sbr.rel (%p165) target = $region20
      $region19: #{_lambda_.9} parent=11 // pred_region
        _
      $region20: #{_lambda_.9} parent=11 // pred_fallthru
        _
      // Predicated region
      $region21: #{_lambda_.9} parent=11 // pred_check
        %p168 = pneg %p100
      $region22: #{_lambda_.9} parent=11 // pred_check_branch
        %170 = sbr.rel (%p168) target = $region24
      $region23: #{_lambda_.9} parent=11 // pred_region
        _
      $region24: #{_lambda_.9} parent=11 // pred_fallthru
        _
      // Predicated region
      $region25: #{_lambda_.9} parent=11 // pred_check
        %p171 = pneg %p121
      $region26: #{_lambda_.9} parent=11 // pred_check_branch
        %173 = sbr.rel (%p171) target = $region28
      $region27: #{_lambda_.9} parent=11 // pred_region
        _
      $region28: #{_lambda_.9} parent=11 // pred_fallthru
        _
    $region12: #{_lambda_.9} parent=5 // pred_fallthru
      _
    %p174 = scmp.lt.s32.totalorder %s11, 4
    // Predicated region
    $region29: #{_lambda_.9} parent=5 // pred_check
      %p175 = pneg %p174
    $region30: #{_lambda_.9} parent=5 // pred_check_branch
      %177 = sbr.rel (%p175) target = $region32
    $region31: #{_lambda_.9} parent=5 // pred_region
      // Predicated region
      $region33: #{_lambda_.9} parent=31 // pred_check
        %p178 = pneg %p31
      $region34: #{_lambda_.9} parent=31 // pred_check_branch
        %180 = sbr.rel (%p178) target = $region36
      $region35: #{_lambda_.9} parent=31 // pred_region
        %p181 = scmp.lt.s32.totalorder %s11, 3
        %s182 = scalar_select %p181, %s11, 3
        %s183 = smul.addr %s182, 4
        %s184 = scalar_lea.vmem %s0, %s183
      $region36: #{_lambda_.9} parent=31 // pred_fallthru
        _
    $region32: #{_lambda_.9} parent=5 // pred_fallthru
      _
    %p185 = scmp.le.s32.totalorder 1, %s11
    %p186 = scmp.lt.s32.totalorder %s11, 5
    %p187 = pnand %p185, %p186
    %p188 = pneg %p187
    // Predicated region
    $region37: #{_lambda_.9} parent=5 // pred_check
      _
    $region38: #{_lambda_.9} parent=5 // pred_check_branch
      %190 = sbr.rel (%p187) target = $region40
    $region39: #{_lambda_.9} parent=5 // pred_region
      %s191 = ssub.s32 %s11, 1
      %p192 = scmp.lt.s32.totalorder %s16, 3
      %s193 = scalar_select %p192, %s16, 3
      %s194 = smul.addr %s193, 4
      %s195 = scalar_lea.vmem %s0, %s194
      %p196 = pneg %p37
      %p197 = pneg %p34
      %p198 = pneg %p58
      %p199 = pneg %p55
      %p200 = pneg %p79
      %p201 = pneg %p76
      %p202 = pneg %p100
      %p203 = pneg %p97
      %p204 = pneg %p121
      %p205 = pneg %p118
      %p206 = pneg %p147
      %p207 = pneg %p144
      %p208 = scmp.lt.s32.totalorder %s16, 3
      %s209 = scalar_select %p208, %s16, 3
      %s210 = smul.addr %s209, 4
      %s211 = scalar_lea.vmem %s5, %s210
      %p212 = scmp.lt.s32.totalorder %s16, 3
      %s213 = scalar_select %p212, %s16, 3
      %s214 = smul.addr %s213, 4
      %s215 = scalar_lea.vmem %s0, %s214
      %p216 = scmp.lt.s32.totalorder %s16, 3
      %s217 = scalar_select %p216, %s16, 3
      %s218 = smul.addr %s217, 4
      %s219 = scalar_lea.vmem %s5, %s218
      %v221 = vld [vmem:[%s215] sm:$0xf]
      %vm222 = vcmask 647168
      %vm223 = vsmask.f32 256
      %vm224 = vmand %vm222, %vm223
      %v225 = vld [vmem:[#allocation2] sm:$0x1]
      %v226 = vsel %vm224, 0, %v225
      %227 = vst [vmem:[#allocation2] sm:$0x1] %v226
      %vm228 = vsmask.f32 7938
      %vm229 = vmand %vm222, %vm228
      %v230 = vld [vmem:[#allocation2 + $0x4] sm:$0x1]
      %v231 = vsel %vm229, 0, %v230
      %232 = vst [vmem:[#allocation2 + $0x4] sm:$0x1] %v231
      %vm233 = vcmask 60416
      %234 = vst.msk [vmem:[#allocation2] sm:$0xf] %vm233, 0
      %vm235 = vcmask 57344
      %236 = vst.msk [vmem:[#allocation2 + $0x4] sm:$0x1] %vm235, 0
      %vm237 = vcmask 650816
      %238 = vst.msk [vmem:[#allocation2] sm:$0xf] %vm237, 0
      %vm239 = vcmask 647744
      %240 = vst.msk [vmem:[#allocation2 + $0x4] sm:$0x1] %vm239, 0
      %v242 = vshrl.u32 %v221, 16
      %v244 = vrot.slane %v242, 7
      %v245 = vshll.u32 %v221, 16
      %v247 = vor.u32 %v244, %v245
      %v248 = vrot.slane %v244, 4
      %249 = vrot.lane.b32.xlu0 %v247, 8
      %v250 = vpop.permute.xlu0 %249
      %251 = vrot.lane.b32.xlu0 %v248, 8
      %v252 = vpop.permute.xlu0 %251
      %vm255 = vcmask 584768
      %vm256 = vmand %vm255, %vm228
      %v257 = vld [vmem:[#allocation2] sm:$0xf]
      %v258 = vsel %vm256, %v250, %v257
      %259 = vst [vmem:[#allocation2] sm:$0xf] %v258
      %vm260 = vcmask 581696
      %vm261 = vmand %vm260, %vm223
      %v262 = vld [vmem:[#allocation2 + $0x4] sm:$0x1]
      %v263 = vsel %vm261, %v252, %v262
      %264 = vst [vmem:[#allocation2 + $0x4] sm:$0x1] %v263
      %v265 = vld [vmem:[#allocation2] sm:$0xf]
      %v266 = vld [vmem:[%s1] sm:$0xf]
      %v267 = vld [vmem:[%s1 + $0x4] sm:$0xf]
      %v268 = vld [vmem:[%s1 + $0x8] sm:$0xf]
      %v269 = vld [vmem:[%s1 + $0xc] sm:$0xf]
      %v270 = vld [vmem:[%s1 + $0x10] sm:$0xf]
      %v271 = vld [vmem:[%s1 + $0x14] sm:$0xf]
      %v272 = vld [vmem:[%s1 + $0x18] sm:$0xf]
      %v273 = vld [vmem:[%s1 + $0x1c] sm:$0xf]
      %v274 = vld [vmem:[%s1 + $0x20] sm:$0xf]
      %v275 = vld [vmem:[%s1 + $0x24] sm:$0xf]
      %v276 = vld [vmem:[#allocation2 + $0x4] sm:$0x1]
      %s277 = scalar_lea.vmem %s1, 40
      %v278 = vld [vmem:[%s277] sm:$0xf]
      %v279 = vld [vmem:[%s277 + $0x4] sm:$0xf]
      %v280 = vld [vmem:[%s277 + $0x8] sm:$0xf]
      %v281 = vld [vmem:[%s277 + $0xc] sm:$0xf]
      %v282 = vld [vmem:[%s277 + $0x10] sm:$0xf]
      %v283 = vld [vmem:[%s277 + $0x14] sm:$0xf]
      %v284 = vld [vmem:[%s277 + $0x18] sm:$0xf]
      %v285 = vld [vmem:[%s277 + $0x1c] sm:$0xf]
      %v286 = vld [vmem:[%s277 + $0x20] sm:$0xf]
      %v287 = vld [vmem:[%s277 + $0x24] sm:$0xf]
      %v290 = vunpack.c.l.b16 %v265
      %v291 = vunpack.c.l.b16 %v276
      %v292 = vpack.c.b16 %v291, %v290
      %v294 = vshrl.u32 %v292, 16
      %v296 = vshll.u32 %v292, 16
      %v298 = vrot.slane %v296, 1
      %v299 = vor.u32 %v294, %v298
      %v310 = vunpack.c.l.b16 %v278
      %v311 = vunpack.c.l.b16 %v279
      %v312 = vunpack.c.l.b16 %v280
      %v313 = vunpack.c.l.b16 %v281
      %v314 = vunpack.c.l.b16 %v282
      %v315 = vunpack.c.l.b16 %v283
      %v316 = vunpack.c.l.b16 %v284
      %v317 = vunpack.c.l.b16 %v285
      %v318 = vunpack.c.l.b16 %v286
      %v319 = vunpack.c.l.b16 %v287
      %v320 = vpack.c.b16 %v311, %v310
      %v321 = vpack.c.b16 %v313, %v312
      %v322 = vpack.c.b16 %v315, %v314
      %v323 = vpack.c.b16 %v317, %v316
      %v324 = vpack.c.b16 %v319, %v318
      %vm330 = vcmask 654336
      %v332 = vsel %vm330, %v299, 0
      %334 = vmatpush.bf16.msra.mxu0 0
      %335 = vmatpush.bf16.msra.mxu0 0
      %336 = vmatpush.bf16.msra.mxu0 0
      %337 = vmatpush.bf16.msra.mxu0 %v324
      %338 = vmatpush.bf16.msra.mxu0 %v323
      %339 = vmatpush.bf16.msra.mxu0 %v322
      %340 = vmatpush.bf16.msra.mxu0 %v321
      %341 = vmatpush.bf16.msra.mxu0 %v320
      %342 = vmatmul.bf16.gmra.mxu0 %v332
      %v343 = vpop.f32.mrf.mxu0
      %v344 = vadd.f32 0.0, %v343
      %v345 = vpop.f32.mrf.mxu0
      %346 = vdwg.mxu0
      %v357 = vunpack.c.l.b16 %v266
      %v358 = vunpack.c.l.b16 %v267
      %v359 = vunpack.c.l.b16 %v268
      %v360 = vunpack.c.l.b16 %v269
      %v361 = vunpack.c.l.b16 %v270
      %v362 = vunpack.c.l.b16 %v271
      %v363 = vunpack.c.l.b16 %v272
      %v364 = vunpack.c.l.b16 %v273
      %v365 = vunpack.c.l.b16 %v274
      %v366 = vunpack.c.l.b16 %v275
      %v367 = vpack.c.b16 %v358, %v357
      %v368 = vpack.c.b16 %v360, %v359
      %v369 = vpack.c.b16 %v362, %v361
      %v370 = vpack.c.b16 %v364, %v363
      %v371 = vpack.c.b16 %v366, %v365
      %v378 = vsel %vm330, %v265, 0
      %380 = vmatpush.bf16.msra.mxu0 0
      %381 = vmatpush.bf16.msra.mxu0 0
      %382 = vmatpush.bf16.msra.mxu0 0
      %383 = vmatpush.bf16.msra.mxu0 %v371
      %384 = vmatpush.bf16.msra.mxu0 %v370
      %385 = vmatpush.bf16.msra.mxu0 %v369
      %386 = vmatpush.bf16.msra.mxu0 %v368
      %387 = vmatpush.bf16.msra.mxu0 %v367
      %388 = vmatmul.bf16.gmra.mxu0 %v378
      %v389 = vpop.f32.mrf.mxu0
      %v390 = vadd.f32 %v344, %v389
      %v391 = vpop.f32.mrf.mxu0
      %392 = vdwg.mxu0
      %v393 = vld [vmem:[#allocation2] sm:$0xe]
      %s394 = scalar_lea.vmem %s1, 80
      %v395 = vld [vmem:[%s394] sm:$0xf]
      %v396 = vld [vmem:[%s394 + $0x4] sm:$0xf]
      %v397 = vld [vmem:[%s394 + $0x8] sm:$0xf]
      %v398 = vld [vmem:[%s394 + $0xc] sm:$0xf]
      %v399 = vld [vmem:[%s394 + $0x10] sm:$0xf]
      %v400 = vld [vmem:[%s394 + $0x14] sm:$0xf]
      %v401 = vld [vmem:[%s394 + $0x18] sm:$0xf]
      %v402 = vld [vmem:[%s394 + $0x1c] sm:$0xf]
      %v403 = vld [vmem:[%s394 + $0x20] sm:$0xf]
      %v404 = vld [vmem:[%s394 + $0x24] sm:$0xf]
      %v406 = vunpack.c.l.b16 %v393
      %v407 = vpack.c.b16 %v291, %v406
      %v408 = vrot.slane %v407, 1
      %v419 = vunpack.c.l.b16 %v395
      %v420 = vunpack.c.l.b16 %v396
      %v421 = vunpack.c.l.b16 %v397
      %v422 = vunpack.c.l.b16 %v398
      %v423 = vunpack.c.l.b16 %v399
      %v424 = vunpack.c.l.b16 %v400
      %v425 = vunpack.c.l.b16 %v401
      %v426 = vunpack.c.l.b16 %v402
      %v427 = vunpack.c.l.b16 %v403
      %v428 = vunpack.c.l.b16 %v404
      %v429 = vpack.c.b16 %v420, %v419
      %v430 = vpack.c.b16 %v422, %v421
      %v431 = vpack.c.b16 %v424, %v423
      %v432 = vpack.c.b16 %v426, %v425
      %v433 = vpack.c.b16 %v428, %v427
      %v440 = vsel %vm330, %v408, 0
      %442 = vmatpush.bf16.msra.mxu0 0
      %443 = vmatpush.bf16.msra.mxu0 0
      %444 = vmatpush.bf16.msra.mxu0 0
      %445 = vmatpush.bf16.msra.mxu0 %v433
      %446 = vmatpush.bf16.msra.mxu0 %v432
      %447 = vmatpush.bf16.msra.mxu0 %v431
      %448 = vmatpush.bf16.msra.mxu0 %v430
      %449 = vmatpush.bf16.msra.mxu0 %v429
      %450 = vmatmul.bf16.gmra.mxu0 %v440
      %v451 = vpop.f32.mrf.mxu0
      %v452 = vadd.f32 0.0, %v451
      %v453 = vpop.f32.mrf.mxu0
      %454 = vdwg.mxu0
      %v455 = vadd.f32 %v390, %v452
      %v456 = vld [vmem:[%s2] sm:$0x1]
      %v458 = vperm.slane %v456, 0
      %v460 = vadd.f32 %v455, %v458
      %v461 = vmax.f32 %v460, 0.0
      %v462 = vpack.c.bf16 %v461, %v461
      %vm463 = vcmask 1040384
      %vm464 = vmand %vm463, %vm223
      %vm465 = vcmask 258052
      %vm466 = vsmask.f32 4352
      %vm467 = vmand %vm465, %vm466
      %vm468 = vmor %vm467, %vm464
      %v469 = vld [vmem:[#allocation3] sm:$0x11]
      %v470 = vsel %vm468, 0, %v469
      %471 = vst [vmem:[#allocation3] sm:$0x11] %v470
      %vm472 = vmand %vm463, %vm228
      %vm473 = vsmask.f32 7954
      %vm474 = vmand %vm465, %vm473
      %vm475 = vmor %vm474, %vm472
      %v476 = vld [vmem:[#allocation3 + $0x8] sm:$0x11]
      %v477 = vsel %vm475, 0, %v476
      %478 = vst [vmem:[#allocation3 + $0x8] sm:$0x11] %v477
      %vm479 = vcmask 125952
      %480 = vst.msk [vmem:[#allocation3] sm:$0xf] %vm479, 0
      %vm481 = vcmask 122880
      %482 = vst.msk [vmem:[#allocation3 + $0x8] sm:$0x1] %vm481, 0
      %vm483 = vcmask 257152
      %484 = vst.msk [vmem:[#allocation3 + $0x4] sm:$0xf] %vm483, 0
      %vm485 = vcmask 254080
      %486 = vst.msk [vmem:[#allocation3 + $0xc] sm:$0x1] %vm485, 0
      %v488 = vshrl.u32 %v462, 16
      %v490 = vrot.slane %v488, 7
      %v491 = vshll.u32 %v462, 16
      %v493 = vor.u32 %v490, %v491
      %v494 = vrot.slane %v490, 4
      %495 = vrot.lane.b32.xlu0 %v493, 16
      %v496 = vpop.permute.xlu0 %495
      %497 = vrot.lane.b32.xlu0 %v494, 16
      %v498 = vpop.permute.xlu0 %497
      %v499 = vrot.slane %v496, 4
      %v500 = vrot.slane %v498, 4
      %vm501 = vcmask 130048
      %v502 = vsel %vm501, %v499, %v496
      %v503 = vsel %vm501, %v500, %v498
      %vm506 = vcmask 1043584
      %vm507 = vmand %vm506, %vm228
      %vm508 = vcmask 130052
      %vm509 = vmand %vm508, %vm473
      %vm510 = vmor %vm509, %vm507
      %v511 = vld [vmem:[#allocation3] sm:$0xff]
      %v512 = vsel %vm510, %v502, %v511
      %513 = vst [vmem:[#allocation3] sm:$0xff] %v512
      %vm514 = vcmask 1040512
      %vm515 = vmand %vm514, %vm223
      %vm516 = vcmask 126980
      %vm517 = vmand %vm516, %vm466
      %vm518 = vmor %vm517, %vm515
      %v519 = vld [vmem:[#allocation3 + $0x8] sm:$0x11]
      %v520 = vsel %vm518, %v503, %v519
      %521 = vst [vmem:[#allocation3 + $0x8] sm:$0x11] %v520
      %v522 = vld [vmem:[#allocation3] sm:$0xff]
      %v523 = vld [vmem:[%s3] sm:$0xf]
      %v524 = vld [vmem:[%s3 + $0x4] sm:$0xf]
      %v525 = vld [vmem:[%s3 + $0x8] sm:$0xf]
      %v526 = vld [vmem:[%s3 + $0xc] sm:$0xf]
      %v527 = vld [vmem:[%s3 + $0x10] sm:$0xf]
      %v528 = vld [vmem:[%s3 + $0x14] sm:$0xf]
      %v529 = vld [vmem:[%s3 + $0x18] sm:$0xf]
      %v530 = vld [vmem:[%s3 + $0x1c] sm:$0xf]
      %v531 = vld [vmem:[%s3 + $0x20] sm:$0xf]
      %v532 = vld [vmem:[%s3 + $0x24] sm:$0xf]
      %v533 = vld [vmem:[%s3 + $0x28] sm:$0xf]
      %v534 = vld [vmem:[%s3 + $0x2c] sm:$0xf]
      %v535 = vld [vmem:[%s3 + $0x30] sm:$0xf]
      %v536 = vld [vmem:[%s3 + $0x34] sm:$0xf]
      %v537 = vld [vmem:[%s3 + $0x38] sm:$0xf]
      %v538 = vld [vmem:[%s3 + $0x3c] sm:$0xf]
      %v539 = vld [vmem:[%s3 + $0x40] sm:$0xf]
      %v540 = vld [vmem:[%s3 + $0x44] sm:$0xf]
      %v541 = vld [vmem:[%s3 + $0x48] sm:$0xf]
      %v542 = vld [vmem:[%s3 + $0x4c] sm:$0xf]
      %v543 = vld [vmem:[#allocation3 + $0x8] sm:$0x11]
      %s544 = scalar_lea.vmem %s3, 80
      %v545 = vld [vmem:[%s544] sm:$0xf]
      %v546 = vld [vmem:[%s544 + $0x4] sm:$0xf]
      %v547 = vld [vmem:[%s544 + $0x8] sm:$0xf]
      %v548 = vld [vmem:[%s544 + $0xc] sm:$0xf]
      %v549 = vld [vmem:[%s544 + $0x10] sm:$0xf]
      %v550 = vld [vmem:[%s544 + $0x14] sm:$0xf]
      %v551 = vld [vmem:[%s544 + $0x18] sm:$0xf]
      %v552 = vld [vmem:[%s544 + $0x1c] sm:$0xf]
      %v553 = vld [vmem:[%s544 + $0x20] sm:$0xf]
      %v554 = vld [vmem:[%s544 + $0x24] sm:$0xf]
      %v555 = vld [vmem:[%s544 + $0x28] sm:$0xf]
      %v556 = vld [vmem:[%s544 + $0x2c] sm:$0xf]
      %v557 = vld [vmem:[%s544 + $0x30] sm:$0xf]
      %v558 = vld [vmem:[%s544 + $0x34] sm:$0xf]
      %v559 = vld [vmem:[%s544 + $0x38] sm:$0xf]
      %v560 = vld [vmem:[%s544 + $0x3c] sm:$0xf]
      %v561 = vld [vmem:[%s544 + $0x40] sm:$0xf]
      %v562 = vld [vmem:[%s544 + $0x44] sm:$0xf]
      %v563 = vld [vmem:[%s544 + $0x48] sm:$0xf]
      %v564 = vld [vmem:[%s544 + $0x4c] sm:$0xf]
      %v567 = vunpack.c.l.b16 %v522
      %v568 = vunpack.c.h.b16 %v522
      %v569 = vunpack.c.l.b16 %v543
      %v570 = vunpack.c.h.b16 %v543
      %v571 = vpack.c.b16 %v569, %v567
      %v572 = vpack.c.b16 %v570, %v568
      %v574 = vshrl.u32 %v571, 16
      %v576 = vshll.u32 %v571, 16
      %v578 = vrot.slane %v576, 1
      %v579 = vor.u32 %v574, %v578
      %v581 = vshrl.u32 %v572, 16
      %v583 = vshll.u32 %v572, 16
      %v585 = vrot.slane %v583, 1
      %v586 = vor.u32 %v581, %v585
      %v608 = vunpack.c.l.b16 %v545
      %v609 = vunpack.c.l.b16 %v546
      %v610 = vunpack.c.l.b16 %v547
      %v611 = vunpack.c.l.b16 %v548
      %v612 = vunpack.c.l.b16 %v549
      %v613 = vunpack.c.l.b16 %v550
      %v614 = vunpack.c.l.b16 %v551
      %v615 = vunpack.c.l.b16 %v552
      %v616 = vunpack.c.l.b16 %v553
      %v617 = vunpack.c.l.b16 %v554
      %v618 = vunpack.c.l.b16 %v555
      %v619 = vunpack.c.l.b16 %v556
      %v620 = vunpack.c.l.b16 %v557
      %v621 = vunpack.c.l.b16 %v558
      %v622 = vunpack.c.l.b16 %v559
      %v623 = vunpack.c.l.b16 %v560
      %v624 = vunpack.c.l.b16 %v561
      %v625 = vunpack.c.l.b16 %v562
      %v626 = vunpack.c.l.b16 %v563
      %v627 = vunpack.c.l.b16 %v564
      %v628 = vpack.c.b16 %v609, %v608
      %v629 = vpack.c.b16 %v611, %v610
      %v630 = vpack.c.b16 %v613, %v612
      %v631 = vpack.c.b16 %v615, %v614
      %v632 = vpack.c.b16 %v617, %v616
      %v633 = vpack.c.b16 %v619, %v618
      %v634 = vpack.c.b16 %v621, %v620
      %v635 = vpack.c.b16 %v623, %v622
      %v636 = vpack.c.b16 %v625, %v624
      %v637 = vpack.c.b16 %v627, %v626
      %vm648 = vcmask 261120
      %v650 = vsel %vm648, %v586, 0
      %652 = vmatpush.bf16.msra.mxu0 %v635
      %653 = vmatpush.bf16.msra.mxu0 %v634
      %654 = vmatpush.bf16.msra.mxu0 %v633
      %655 = vmatpush.bf16.msra.mxu0 %v632
      %656 = vmatpush.bf16.msra.mxu0 %v631
      %657 = vmatpush.bf16.msra.mxu0 %v630
      %658 = vmatpush.bf16.msra.mxu0 %v629
      %659 = vmatpush.bf16.msra.mxu0 %v628
      %660 = vmatmul.bf16.gmra.mxu0 %v579
      %v661 = vpop.f32.mrf.mxu0
      %v662 = vadd.f32 0.0, %v661
      %v663 = vpop.f32.mrf.mxu0
      %664 = vdwg.mxu0
      %665 = vmatpush.bf16.msra.mxu0 0
      %666 = vmatpush.bf16.msra.mxu0 0
      %667 = vmatpush.bf16.msra.mxu0 0
      %668 = vmatpush.bf16.msra.mxu0 0
      %669 = vmatpush.bf16.msra.mxu0 0
      %670 = vmatpush.bf16.msra.mxu0 0
      %671 = vmatpush.bf16.msra.mxu0 %v637
      %672 = vmatpush.bf16.msra.mxu0 %v636
      %673 = vmatmul.bf16.gmra.mxu0 %v650
      %v674 = vpop.f32.mrf.mxu0
      %v675 = vadd.f32 %v662, %v674
      %v676 = vpop.f32.mrf.mxu0
      %677 = vdwg.mxu0
      %v678 = vpack.c.b16 %v567, %v567
      %v679 = vpack.c.b16 %v568, %v568
      %v701 = vunpack.c.l.b16 %v523
      %v702 = vunpack.c.l.b16 %v524
      %v703 = vunpack.c.l.b16 %v525
      %v704 = vunpack.c.l.b16 %v526
      %v705 = vunpack.c.l.b16 %v527
      %v706 = vunpack.c.l.b16 %v528
      %v707 = vunpack.c.l.b16 %v529
      %v708 = vunpack.c.l.b16 %v530
      %v709 = vunpack.c.l.b16 %v531
      %v710 = vunpack.c.l.b16 %v532
      %v711 = vunpack.c.l.b16 %v533
      %v712 = vunpack.c.l.b16 %v534
      %v713 = vunpack.c.l.b16 %v535
      %v714 = vunpack.c.l.b16 %v536
      %v715 = vunpack.c.l.b16 %v537
      %v716 = vunpack.c.l.b16 %v538
      %v717 = vunpack.c.l.b16 %v539
      %v718 = vunpack.c.l.b16 %v540
      %v719 = vunpack.c.l.b16 %v541
      %v720 = vunpack.c.l.b16 %v542
      %v721 = vpack.c.b16 %v702, %v701
      %v722 = vpack.c.b16 %v704, %v703
      %v723 = vpack.c.b16 %v706, %v705
      %v724 = vpack.c.b16 %v708, %v707
      %v725 = vpack.c.b16 %v710, %v709
      %v726 = vpack.c.b16 %v712, %v711
      %v727 = vpack.c.b16 %v714, %v713
      %v728 = vpack.c.b16 %v716, %v715
      %v729 = vpack.c.b16 %v718, %v717
      %v730 = vpack.c.b16 %v720, %v719
      %v742 = vsel %vm648, %v679, 0
      %744 = vmatpush.bf16.msra.mxu0 %v728
      %745 = vmatpush.bf16.msra.mxu0 %v727
      %746 = vmatpush.bf16.msra.mxu0 %v726
      %747 = vmatpush.bf16.msra.mxu0 %v725
      %748 = vmatpush.bf16.msra.mxu0 %v724
      %749 = vmatpush.bf16.msra.mxu0 %v723
      %750 = vmatpush.bf16.msra.mxu0 %v722
      %751 = vmatpush.bf16.msra.mxu0 %v721
      %752 = vmatmul.bf16.gmra.mxu0 %v678
      %v753 = vpop.f32.mrf.mxu0
      %v754 = vadd.f32 %v675, %v753
      %v755 = vpop.f32.mrf.mxu0
      %756 = vdwg.mxu0
      %757 = vmatpush.bf16.msra.mxu0 0
      %758 = vmatpush.bf16.msra.mxu0 0
      %759 = vmatpush.bf16.msra.mxu0 0
      %760 = vmatpush.bf16.msra.mxu0 0
      %761 = vmatpush.bf16.msra.mxu0 0
      %762 = vmatpush.bf16.msra.mxu0 0
      %763 = vmatpush.bf16.msra.mxu0 %v730
      %764 = vmatpush.bf16.msra.mxu0 %v729
      %765 = vmatmul.bf16.gmra.mxu0 %v742
      %v766 = vpop.f32.mrf.mxu0
      %v767 = vadd.f32 %v754, %v766
      %v768 = vpop.f32.mrf.mxu0
      %769 = vdwg.mxu0
      %v770 = vld [vmem:[#allocation3] sm:$0xee]
      %s771 = scalar_lea.vmem %s3, 160
      %v772 = vld [vmem:[%s771] sm:$0xf]
      %v773 = vld [vmem:[%s771 + $0x4] sm:$0xf]
      %v774 = vld [vmem:[%s771 + $0x8] sm:$0xf]
      %v775 = vld [vmem:[%s771 + $0xc] sm:$0xf]
      %v776 = vld [vmem:[%s771 + $0x10] sm:$0xf]
      %v777 = vld [vmem:[%s771 + $0x14] sm:$0xf]
      %v778 = vld [vmem:[%s771 + $0x18] sm:$0xf]
      %v779 = vld [vmem:[%s771 + $0x1c] sm:$0xf]
      %v780 = vld [vmem:[%s771 + $0x20] sm:$0xf]
      %v781 = vld [vmem:[%s771 + $0x24] sm:$0xf]
      %v782 = vld [vmem:[%s771 + $0x28] sm:$0xf]
      %v783 = vld [vmem:[%s771 + $0x2c] sm:$0xf]
      %v784 = vld [vmem:[%s771 + $0x30] sm:$0xf]
      %v785 = vld [vmem:[%s771 + $0x34] sm:$0xf]
      %v786 = vld [vmem:[%s771 + $0x38] sm:$0xf]
      %v787 = vld [vmem:[%s771 + $0x3c] sm:$0xf]
      %v788 = vld [vmem:[%s771 + $0x40] sm:$0xf]
      %v789 = vld [vmem:[%s771 + $0x44] sm:$0xf]
      %v790 = vld [vmem:[%s771 + $0x48] sm:$0xf]
      %v791 = vld [vmem:[%s771 + $0x4c] sm:$0xf]
      %v793 = vunpack.c.l.b16 %v770
      %v794 = vunpack.c.h.b16 %v770
      %v795 = vpack.c.b16 %v569, %v793
      %v796 = vpack.c.b16 %v570, %v794
      %v797 = vrot.slane %v795, 1
      %v798 = vrot.slane %v796, 1
      %v820 = vunpack.c.l.b16 %v772
      %v821 = vunpack.c.l.b16 %v773
      %v822 = vunpack.c.l.b16 %v774
      %v823 = vunpack.c.l.b16 %v775
      %v824 = vunpack.c.l.b16 %v776
      %v825 = vunpack.c.l.b16 %v777
      %v826 = vunpack.c.l.b16 %v778
      %v827 = vunpack.c.l.b16 %v779
      %v828 = vunpack.c.l.b16 %v780
      %v829 = vunpack.c.l.b16 %v781
      %v830 = vunpack.c.l.b16 %v782
      %v831 = vunpack.c.l.b16 %v783
      %v832 = vunpack.c.l.b16 %v784
      %v833 = vunpack.c.l.b16 %v785
      %v834 = vunpack.c.l.b16 %v786
      %v835 = vunpack.c.l.b16 %v787
      %v836 = vunpack.c.l.b16 %v788
      %v837 = vunpack.c.l.b16 %v789
      %v838 = vunpack.c.l.b16 %v790
      %v839 = vunpack.c.l.b16 %v791
      %v840 = vpack.c.b16 %v821, %v820
      %v841 = vpack.c.b16 %v823, %v822
      %v842 = vpack.c.b16 %v825, %v824
      %v843 = vpack.c.b16 %v827, %v826
      %v844 = vpack.c.b16 %v829, %v828
      %v845 = vpack.c.b16 %v831, %v830
      %v846 = vpack.c.b16 %v833, %v832
      %v847 = vpack.c.b16 %v835, %v834
      %v848 = vpack.c.b16 %v837, %v836
      %v849 = vpack.c.b16 %v839, %v838
      %v861 = vsel %vm648, %v798, 0
      %863 = vmatpush.bf16.msra.mxu0 %v847
      %864 = vmatpush.bf16.msra.mxu0 %v846
      %865 = vmatpush.bf16.msra.mxu0 %v845
      %866 = vmatpush.bf16.msra.mxu0 %v844
      %867 = vmatpush.bf16.msra.mxu0 %v843
      %868 = vmatpush.bf16.msra.mxu0 %v842
      %869 = vmatpush.bf16.msra.mxu0 %v841
      %870 = vmatpush.bf16.msra.mxu0 %v840
      %871 = vmatmul.bf16.gmra.mxu0 %v797
      %v872 = vpop.f32.mrf.mxu0
      %v873 = vadd.f32 0.0, %v872
      %v874 = vpop.f32.mrf.mxu0
      %875 = vdwg.mxu0
      %876 = vmatpush.bf16.msra.mxu0 0
      %877 = vmatpush.bf16.msra.mxu0 0
      %878 = vmatpush.bf16.msra.mxu0 0
      %879 = vmatpush.bf16.msra.mxu0 0
      %880 = vmatpush.bf16.msra.mxu0 0
      %881 = vmatpush.bf16.msra.mxu0 0
      %882 = vmatpush.bf16.msra.mxu0 %v849
      %883 = vmatpush.bf16.msra.mxu0 %v848
      %884 = vmatmul.bf16.gmra.mxu0 %v861
      %v885 = vpop.f32.mrf.mxu0
      %v886 = vadd.f32 %v873, %v885
      %v887 = vpop.f32.mrf.mxu0
      %888 = vdwg.mxu0
      %v889 = vadd.f32 %v767, %v886
      %v890 = vld [vmem:[%s4] sm:$0x1]
      %v892 = vperm.slane %v890, 0
      %v894 = vadd.f32 %v889, %v892
      %v895 = vpack.c.bf16 %v894, %v894
      %896 = vst [vmem:[%s219] sm:$0xf] %v895
      %p897 = scmp.lt.s32.totalorder %s16, 3
      %s898 = scalar_select %p897, %s16, 3
      %s899 = smul.addr %s898, 4
      %s900 = scalar_lea.vmem %s5, %s899
      // Predicated region
      $region41: #{_lambda_.9} parent=39 // pred_check
        %p901 = pneg %p144
      $region42: #{_lambda_.9} parent=39 // pred_check_branch
        %903 = sbr.rel (%p901) target = $region44
      $region43: #{_lambda_.9} parent=39 // pred_region
        _
      $region44: #{_lambda_.9} parent=39 // pred_fallthru
        _
    $region40: #{_lambda_.9} parent=5 // pred_fallthru
      _
    %p904 = scmp.le.s32.totalorder 2, %s11
    // Predicated region
    $region45: #{_lambda_.9} parent=5 // pred_check
      %p905 = pneg %p904
    $region46: #{_lambda_.9} parent=5 // pred_check_branch
      %907 = sbr.rel (%p905) target = $region48
    $region47: #{_lambda_.9} parent=5 // pred_region
      %s908 = ssub.s32 %s11, 2
      // Predicated region
      $region49: #{_lambda_.9} parent=47 // pred_check
        %p909 = pneg %p150
      $region50: #{_lambda_.9} parent=47 // pred_check_branch
        %911 = sbr.rel (%p909) target = $region52
      $region51: #{_lambda_.9} parent=47 // pred_region
        %p912 = scmp.lt.s32.totalorder %s17, 3
        %s913 = scalar_select %p912, %s17, 3
        %s914 = smul.addr %s913, 4
        %s915 = scalar_lea.vmem %s5, %s914
      $region52: #{_lambda_.9} parent=47 // pred_fallthru
        _
    $region48: #{_lambda_.9} parent=5 // pred_fallthru
      _
  $region6: #{_lambda_.9} parent=0 // loop_footer
    %s15 = sadd.s32 1, %s11
  $region7: #{_lambda_.9} parent=0 // loop_footer_branch
    %10 = sbr.rel target = $region3
  $region8: #{_lambda_.9} parent=0 // loop_exit
    _

// kernel: _lambda_.15
$region0: #{_lambda_.15}
  #allocation0 [shape = 'u32[]', space=smem, size = 0x4, offset = 0x4, fixed_abs, tag = 'smem constant byte address 0x4 - core index']
  #allocation1 [shape = 'u32[72,128]{1,0:T(1,128)}', space=vmem, size = 0x9000, scoped, tag = 'internal scratch']
  %s0 = inlined_call_operand.vmem [shape: f32[4,16,16], index: 0, kind: input, shape index: {}, may-alias: {0,1}]
  %s1 = inlined_call_operand.vmem [shape: f32[4,16,16], index: 1, kind: input, shape index: {}, may-alias: {0,1}]
  %s2 = inlined_call_operand.vmem [shape: f32[2,1,128], index: 2, kind: output, shape index: {}]
  %s3 = sld [smem:[#allocation0]]
  $region45: #{_lambda_.15} parent=0
    _
  %s5 = ssub.s32 1, %s3
  %s6 = scalar_select 0, %s5, %s3
  loop: start=0, step=1, limit=4
  $region2: #{_lambda_.15} parent=0 // loop_pre_header
    _
  $region3: #{_lambda_.15} parent=0 // loop_header
    %s8 = sphi 0, %s12
    %p9 = scmp.ge.s32.totalorder %s8, 4
    %s15 = sphi 0, %s27
    %s16 = sphi 0, %s23
    %s17 = sphi 0, %s15
    %s18 = sphi 0, %s16
    %s19 = sphi 0, %s17
    %s20 = sphi 0, %s18
    %s32 = sphi 0, %s34
    %s35 = sphi 0, %s32
    %s36 = sphi 0, %s35
    %s52 = sphi 0, %s36
    %s62 = sphi 0, %s64
    %s65 = sphi 0, %s62
    %s66 = sphi 0, %s65
    %s82 = sphi 0, %s66
    %s88 = sphi 0, %s90
    %s91 = sphi 0, %s88
    %s92 = sphi 0, %s91
    %s108 = sphi 0, %s92
  $region4: #{_lambda_.15} parent=0 // loop_header_branch
    %11 = sbr.rel (%p9) target = $region8
  $region5: #{_lambda_.15} parent=0 // loop_body
    %s13 = ssub.s32 %s8, 1
    %s14 = ssub.s32 %s8, 2
    %s21 = sadd.s32 1, %s16
    %p22 = scmp.ge.s32.totalorder %s21, 1
    %s23 = scalar_select %p22, 0, %s21
    %s24 = sadd.s32 1, %s15
    %s25 = scalar_select %p22, %s24, %s15
    %p26 = scmp.ge.s32.totalorder %s25, 2
    %s27 = scalar_select %p26, 0, %s25
    %s28 = ssub.s32 %s15, %s27
    %s29 = ssub.s32 %s16, %s23
    %s30 = sor.u32 %s28, %s29
    %p31 = scmp.eq.s32.totalorder %s30, 0
    %s33 = sadd.s32 %s32, 1
    %s34 = scalar_select %p31, %s32, %s33
    %p37 = pneg %p31
    %p38 = scmp.eq.s32.totalorder %s8, 1
    %p39 = por %p37, %p38
    %p40 = scmp.ne.s32.totalorder %s32, %s35
    %p41 = scmp.eq.s32.totalorder %s8, 0
    %p42 = por %p40, %p41
    %p43 = scmp.ne.s32.totalorder %s32, %s35
    %p44 = scmp.eq.s32.totalorder %s13, 1
    %p45 = por %p43, %p44
    %p46 = scmp.ne.s32.totalorder %s35, %s36
    %p47 = scmp.eq.s32.totalorder %s13, 0
    %p48 = por %p46, %p47
    %p49 = scmp.ne.s32.totalorder %s35, %s36
    %p50 = scmp.eq.s32.totalorder %s14, 1
    %p51 = por %p49, %p50
    %p53 = scmp.ne.s32.totalorder %s36, %s52
    %p54 = scmp.eq.s32.totalorder %s14, 0
    %p55 = por %p53, %p54
    %s56 = sadd.s32 %s15, 2
    %s57 = sadd.s32 %s27, 2
    %s58 = ssub.s32 %s56, %s57
    %s59 = ssub.s32 %s16, %s23
    %s60 = sor.u32 %s58, %s59
    %p61 = scmp.eq.s32.totalorder %s60, 0
    %s63 = sadd.s32 %s62, 1
    %s64 = scalar_select %p61, %s62, %s63
    %p67 = pneg %p61
    %p68 = scmp.eq.s32.totalorder %s8, 1
    %p69 = por %p67, %p68
    %p70 = scmp.ne.s32.totalorder %s62, %s65
    %p71 = scmp.eq.s32.totalorder %s8, 0
    %p72 = por %p70, %p71
    %p73 = scmp.ne.s32.totalorder %s62, %s65
    %p74 = scmp.eq.s32.totalorder %s13, 1
    %p75 = por %p73, %p74
    %p76 = scmp.ne.s32.totalorder %s65, %s66
    %p77 = scmp.eq.s32.totalorder %s13, 0
    %p78 = por %p76, %p77
    %p79 = scmp.ne.s32.totalorder %s65, %s66
    %p80 = scmp.eq.s32.totalorder %s14, 1
    %p81 = por %p79, %p80
    %p83 = scmp.ne.s32.totalorder %s66, %s82
    %p84 = scmp.eq.s32.totalorder %s14, 0
    %p85 = por %p83, %p84
    %s86 = ssub.s32 %s15, %s27
    %p87 = scmp.eq.s32.totalorder %s86, 0
    %s89 = sadd.s32 %s88, 1
    %s90 = scalar_select %p87, %s88, %s89
    %p93 = pneg %p87
    %p94 = scmp.eq.s32.totalorder %s8, 1
    %p95 = por %p93, %p94
    %p96 = scmp.ne.s32.totalorder %s88, %s91
    %p97 = scmp.eq.s32.totalorder %s8, 0
    %p98 = por %p96, %p97
    %p99 = scmp.ne.s32.totalorder %s88, %s91
    %p100 = scmp.eq.s32.totalorder %s13, 1
    %p101 = por %p99, %p100
    %p102 = scmp.ne.s32.totalorder %s91, %s92
    %p103 = scmp.eq.s32.totalorder %s13, 0
    %p104 = por %p102, %p103
    %p105 = scmp.ne.s32.totalorder %s91, %s92
    %p106 = scmp.eq.s32.totalorder %s14, 1
    %p107 = por %p105, %p106
    %p109 = scmp.ne.s32.totalorder %s92, %s108
    %p110 = scmp.eq.s32.totalorder %s14, 0
    %p111 = por %p109, %p110
    %p112 = scmp.le.s32.totalorder 1, %s8
    %p113 = scmp.lt.s32.totalorder %s8, 3
    %p114 = pnand %p112, %p113
    %p115 = pneg %p114
    // Predicated region
    $region9: #{_lambda_.15} parent=5 // pred_check
      _
    $region10: #{_lambda_.15} parent=5 // pred_check_branch
      %117 = sbr.rel (%p114) target = $region12
    $region11: #{_lambda_.15} parent=5 // pred_region
      %s118 = ssub.s32 %s8, 1
    $region12: #{_lambda_.15} parent=5 // pred_fallthru
      _
    %p119 = scmp.lt.s32.totalorder %s8, 2
    // Predicated region
    $region13: #{_lambda_.15} parent=5 // pred_check
      %p120 = pneg %p119
    $region14: #{_lambda_.15} parent=5 // pred_check_branch
      %122 = sbr.rel (%p120) target = $region16
    $region15: #{_lambda_.15} parent=5 // pred_region
      // Predicated region
      $region17: #{_lambda_.15} parent=15 // pred_check
        %p123 = pneg %p42
      $region18: #{_lambda_.15} parent=15 // pred_check_branch
        %125 = sbr.rel (%p123) target = $region20
      $region19: #{_lambda_.15} parent=15 // pred_region
        %s126 = smul.u32 2, %s16
        %p127 = scmp.lt.s32.totalorder %s15, 3
        %s128 = scalar_select %p127, %s15, 3
        %p129 = scmp.lt.s32.totalorder %s126, 1
        %s130 = scalar_select %p129, %s126, 1
        %s131 = smul.addr %s128, 2
        %s132 = sadd.s32 %s130, %s131
        %s133 = smul.addr %s132, 8
        %s134 = scalar_lea.vmem %s0, %s133
        %s135 = smul.u32 2, %s16
      $region20: #{_lambda_.15} parent=15 // pred_fallthru
        _
      // Predicated region
      $region21: #{_lambda_.15} parent=15 // pred_check
        %p136 = pneg %p72
      $region22: #{_lambda_.15} parent=15 // pred_check_branch
        %138 = sbr.rel (%p136) target = $region24
      $region23: #{_lambda_.15} parent=15 // pred_region
        %s139 = sadd.s32 %s15, 2
        %s140 = smul.u32 2, %s16
        %p141 = scmp.lt.s32.totalorder %s139, 3
        %s142 = scalar_select %p141, %s139, 3
        %p143 = scmp.lt.s32.totalorder %s140, 1
        %s144 = scalar_select %p143, %s140, 1
        %s145 = smul.addr %s142, 2
        %s146 = sadd.s32 %s144, %s145
        %s147 = smul.addr %s146, 8
        %s148 = scalar_lea.vmem %s1, %s147
        %s149 = sadd.s32 %s15, 2
        %s150 = smul.u32 2, %s16
      $region24: #{_lambda_.15} parent=15 // pred_fallthru
        _
    $region16: #{_lambda_.15} parent=5 // pred_fallthru
      _
    %p151 = scmp.le.s32.totalorder 1, %s8
    %p152 = scmp.lt.s32.totalorder %s8, 3
    %p153 = pnand %p151, %p152
    %p154 = pneg %p153
    // Predicated region
    $region25: #{_lambda_.15} parent=5 // pred_check
      _
    $region26: #{_lambda_.15} parent=5 // pred_check_branch
      %156 = sbr.rel (%p153) target = $region28
    $region27: #{_lambda_.15} parent=5 // pred_region
      %s157 = ssub.s32 %s8, 1
      %s158 = smul.u32 2, %s18
      %p159 = scmp.lt.s32.totalorder %s17, 3
      %s160 = scalar_select %p159, %s17, 3
      %p161 = scmp.lt.s32.totalorder %s158, 1
      %s162 = scalar_select %p161, %s158, 1
      %s163 = smul.addr %s160, 2
      %s164 = sadd.s32 %s162, %s163
      %s165 = smul.addr %s164, 8
      %s166 = scalar_lea.vmem %s0, %s165
      %p167 = pneg %p48
      %p168 = pneg %p45
      %s169 = sadd.s32 %s17, 2
      %s170 = smul.u32 2, %s18
      %p171 = scmp.lt.s32.totalorder %s169, 3
      %s172 = scalar_select %p171, %s169, 3
      %p173 = scmp.lt.s32.totalorder %s170, 1
      %s174 = scalar_select %p173, %s170, 1
      %s175 = smul.addr %s172, 2
      %s176 = sadd.s32 %s174, %s175
      %s177 = smul.addr %s176, 8
      %s178 = scalar_lea.vmem %s1, %s177
      %p179 = pneg %p78
      %p180 = pneg %p75
      %p181 = pneg %p104
      %p182 = pneg %p101
      %p183 = scmp.lt.s32.totalorder %s17, 1
      %s184 = scalar_select %p183, %s17, 1
      %s185 = scalar_lea.vmem %s2, %s184
      %s186 = smul.u32 2, %s18
      %p187 = scmp.lt.s32.totalorder %s17, 3
      %s188 = scalar_select %p187, %s17, 3
      %p189 = scmp.lt.s32.totalorder %s186, 1
      %s190 = scalar_select %p189, %s186, 1
      %s191 = smul.addr %s188, 2
      %s192 = sadd.s32 %s190, %s191
      %s193 = smul.addr %s192, 8
      %s194 = scalar_lea.vmem %s0, %s193
      %s195 = smul.u32 2, %s18
      %s196 = sadd.s32 %s17, 2
      %s197 = smul.u32 2, %s18
      %p198 = scmp.lt.s32.totalorder %s196, 3
      %s199 = scalar_select %p198, %s196, 3
      %p200 = scmp.lt.s32.totalorder %s197, 1
      %s201 = scalar_select %p200, %s197, 1
      %s202 = smul.addr %s199, 2
      %s203 = sadd.s32 %s201, %s202
      %s204 = smul.addr %s203, 8
      %s205 = scalar_lea.vmem %s1, %s204
      %s206 = sadd.s32 %s17, 2
      %s207 = smul.u32 2, %s18
      %p208 = scmp.lt.s32.totalorder %s17, 1
      %s209 = scalar_select %p208, %s17, 1
      %s210 = scalar_lea.vmem %s2, %s209
      %p211 = scmp.eq.s32.totalorder %s18, 0
      // Predicated region
      $region29: #{_lambda_.15} parent=27 // pred_check
        %p212 = pneg %p211
      $region30: #{_lambda_.15} parent=27 // pred_check_branch
        %214 = sbr.rel (%p212) target = $region32
      $region31: #{_lambda_.15} parent=27 // pred_region
        %215 = vst [vmem:[%s210] sm:$0x1] 0.0
      $region32: #{_lambda_.15} parent=27 // pred_fallthru
        _
      %v216 = vld [vmem:[%s194] sm:$0xff]
      %v217 = vld [vmem:[%s194 + $0x8] sm:$0xff]
      %v218 = vld [vmem:[%s205] sm:$0xff]
      %v219 = vld [vmem:[%s205 + $0x8] sm:$0xff]
      %v220 = vsub.f32 %v216, %v218
      %v221 = vsub.f32 %v217, %v219
      %v222 = vand.u32 2147483647, %v220
      %v223 = vand.u32 2147483647, %v221
      %vm224 = vcmask 130048
      %v225 = vsel %vm224, %v222, 0.0
      %v226 = vsel %vm224, %v223, 0.0
      %v227 = vadd.f32 %v225, %v226
      %228 = vadd.xlane.f32.xlu0 %v227
      %v229 = vpop.xlane.xlu0 %228
      %v230 = vrot.slane %v229, 4
      %v231 = vadd.f32 %v229, %v230
      %v232 = vrot.slane %v231, 2
      %v233 = vadd.f32 %v231, %v232
      %v234 = vrot.slane %v233, 1
      %v235 = vadd.f32 %v233, %v234
      %s236 = vtos %v235
      %v237 = vld [vmem:[%s210] sm:$0x1]
      %v238 = vstv %s236
      %v239 = vadd.f32 %v237, %v238
      %240 = vst [vmem:[%s210] sm:$0x1] %v239
      %p241 = scmp.lt.s32.totalorder %s17, 1
      %s242 = scalar_select %p241, %s17, 1
      %s243 = scalar_lea.vmem %s2, %s242
      // Predicated region
      $region33: #{_lambda_.15} parent=27 // pred_check
        %p244 = pneg %p101
      $region34: #{_lambda_.15} parent=27 // pred_check_branch
        %246 = sbr.rel (%p244) target = $region36
      $region35: #{_lambda_.15} parent=27 // pred_region
        _
      $region36: #{_lambda_.15} parent=27 // pred_fallthru
        _
    $region28: #{_lambda_.15} parent=5 // pred_fallthru
      _
    %p247 = scmp.le.s32.totalorder 2, %s8
    // Predicated region
    $region37: #{_lambda_.15} parent=5 // pred_check
      %p248 = pneg %p247
    $region38: #{_lambda_.15} parent=5 // pred_check_branch
      %250 = sbr.rel (%p248) target = $region40
    $region39: #{_lambda_.15} parent=5 // pred_region
      %s251 = ssub.s32 %s8, 2
      // Predicated region
      $region41: #{_lambda_.15} parent=39 // pred_check
        %p252 = pneg %p107
      $region42: #{_lambda_.15} parent=39 // pred_check_branch
        %254 = sbr.rel (%p252) target = $region44
      $region43: #{_lambda_.15} parent=39 // pred_region
        %p255 = scmp.lt.s32.totalorder %s19, 1
        %s256 = scalar_select %p255, %s19, 1
        %s257 = scalar_lea.vmem %s2, %s256
      $region44: #{_lambda_.15} parent=39 // pred_fallthru
        _
    $region40: #{_lambda_.15} parent=5 // pred_fallthru
      _
  $region6: #{_lambda_.15} parent=0 // loop_footer
    %s12 = sadd.s32 1, %s8
  $region7: #{_lambda_.15} parent=0 // loop_footer_branch
    %7 = sbr.rel target = $region3
  $region8: #{_lambda_.15} parent=0 // loop_exit
    _

// kernel: _lambda_.12
$region0: #{_lambda_.12}
  #allocation0 [shape = 'u32[]', space=smem, size = 0x4, offset = 0x4, fixed_abs, tag = 'smem constant byte address 0x4 - core index']
  #allocation1 [shape = 'u32[72,128]{1,0:T(1,128)}', space=vmem, size = 0x9000, scoped, tag = 'internal scratch']
  %s0 = inlined_call_operand.vmem [shape: bf16[4,256,8], index: 0, kind: input, shape index: {}]
  %s1 = inlined_call_operand.vmem [shape: f32[4,8,8], index: 1, kind: output, shape index: {}]
  %s2 = sld [smem:[#allocation0]]
  $region41: #{_lambda_.12} parent=0
    _
  %s4 = ssub.s32 1, %s2
  %s5 = scalar_select 0, %s4, %s2
  loop: start=0, step=1, limit=6
  $region2: #{_lambda_.12} parent=0 // loop_pre_header
    _
  $region3: #{_lambda_.12} parent=0 // loop_header
    %s7 = sphi 0, %s11
    %p8 = scmp.ge.s32.totalorder %s7, 6
    %s14 = sphi 0, %s26
    %s15 = sphi 0, %s22
    %s16 = sphi 0, %s14
    %s17 = sphi 0, %s15
    %s18 = sphi 0, %s16
    %s19 = sphi 0, %s17
    %s31 = sphi 0, %s33
    %s34 = sphi 0, %s31
    %s35 = sphi 0, %s34
    %s51 = sphi 0, %s35
    %s57 = sphi 0, %s59
    %s60 = sphi 0, %s57
    %s61 = sphi 0, %s60
    %s77 = sphi 0, %s61
  $region4: #{_lambda_.12} parent=0 // loop_header_branch
    %10 = sbr.rel (%p8) target = $region8
  $region5: #{_lambda_.12} parent=0 // loop_body
    %s12 = ssub.s32 %s7, 1
    %s13 = ssub.s32 %s7, 2
    %s20 = sadd.s32 1, %s15
    %p21 = scmp.ge.s32.totalorder %s20, 1
    %s22 = scalar_select %p21, 0, %s20
    %s23 = sadd.s32 1, %s14
    %s24 = scalar_select %p21, %s23, %s14
    %p25 = scmp.ge.s32.totalorder %s24, 4
    %s26 = scalar_select %p25, 0, %s24
    %s27 = ssub.s32 %s14, %s26
    %s28 = ssub.s32 %s15, %s22
    %s29 = sor.u32 %s27, %s28
    %p30 = scmp.eq.s32.totalorder %s29, 0
    %s32 = sadd.s32 %s31, 1
    %s33 = scalar_select %p30, %s31, %s32
    %p36 = pneg %p30
    %p37 = scmp.eq.s32.totalorder %s7, 3
    %p38 = por %p36, %p37
    %p39 = scmp.ne.s32.totalorder %s31, %s34
    %p40 = scmp.eq.s32.totalorder %s7, 0
    %p41 = por %p39, %p40
    %p42 = scmp.ne.s32.totalorder %s31, %s34
    %p43 = scmp.eq.s32.totalorder %s12, 3
    %p44 = por %p42, %p43
    %p45 = scmp.ne.s32.totalorder %s34, %s35
    %p46 = scmp.eq.s32.totalorder %s12, 0
    %p47 = por %p45, %p46
    %p48 = scmp.ne.s32.totalorder %s34, %s35
    %p49 = scmp.eq.s32.totalorder %s13, 3
    %p50 = por %p48, %p49
    %p52 = scmp.ne.s32.totalorder %s35, %s51
    %p53 = scmp.eq.s32.totalorder %s13, 0
    %p54 = por %p52, %p53
    %s55 = ssub.s32 %s14, %s26
    %p56 = scmp.eq.s32.totalorder %s55, 0
    %s58 = sadd.s32 %s57, 1
    %s59 = scalar_select %p56, %s57, %s58
    %p62 = pneg %p56
    %p63 = scmp.eq.s32.totalorder %s7, 3
    %p64 = por %p62, %p63
    %p65 = scmp.ne.s32.totalorder %s57, %s60
    %p66 = scmp.eq.s32.totalorder %s7, 0
    %p67 = por %p65, %p66
    %p68 = scmp.ne.s32.totalorder %s57, %s60
    %p69 = scmp.eq.s32.totalorder %s12, 3
    %p70 = por %p68, %p69
    %p71 = scmp.ne.s32.totalorder %s60, %s61
    %p72 = scmp.eq.s32.totalorder %s12, 0
    %p73 = por %p71, %p72
    %p74 = scmp.ne.s32.totalorder %s60, %s61
    %p75 = scmp.eq.s32.totalorder %s13, 3
    %p76 = por %p74, %p75
    %p78 = scmp.ne.s32.totalorder %s61, %s77
    %p79 = scmp.eq.s32.totalorder %s13, 0
    %p80 = por %p78, %p79
    %p81 = scmp.le.s32.totalorder 1, %s7
    %p82 = scmp.lt.s32.totalorder %s7, 5
    %p83 = pnand %p81, %p82
    %p84 = pneg %p83
    // Predicated region
    $region9: #{_lambda_.12} parent=5 // pred_check
      _
    $region10: #{_lambda_.12} parent=5 // pred_check_branch
      %86 = sbr.rel (%p83) target = $region12
    $region11: #{_lambda_.12} parent=5 // pred_region
      %s87 = ssub.s32 %s7, 1
    $region12: #{_lambda_.12} parent=5 // pred_fallthru
      _
    %p88 = scmp.lt.s32.totalorder %s7, 4
    // Predicated region
    $region13: #{_lambda_.12} parent=5 // pred_check
      %p89 = pneg %p88
    $region14: #{_lambda_.12} parent=5 // pred_check_branch
      %91 = sbr.rel (%p89) target = $region16
    $region15: #{_lambda_.12} parent=5 // pred_region
      // Predicated region
      $region17: #{_lambda_.12} parent=15 // pred_check
        %p92 = pneg %p41
      $region18: #{_lambda_.12} parent=15 // pred_check_branch
        %94 = sbr.rel (%p92) target = $region20
      $region19: #{_lambda_.12} parent=15 // pred_region
        %s95 = smul.u32 32, %s15
        %p96 = scmp.lt.s32.totalorder %s14, 3
        %s97 = scalar_select %p96, %s14, 3
        %p98 = scmp.lt.s32.totalorder %s95, 31
        %s99 = scalar_select %p98, %s95, 31
        %s100 = smul.addr %s97, 32
        %s101 = sadd.s32 %s99, %s100
        %s102 = smul.addr %s101, 4
        %s103 = scalar_lea.vmem %s0, %s102
        %s104 = smul.u32 32, %s15
      $region20: #{_lambda_.12} parent=15 // pred_fallthru
        _
    $region16: #{_lambda_.12} parent=5 // pred_fallthru
      _
    %p105 = scmp.le.s32.totalorder 1, %s7
    %p106 = scmp.lt.s32.totalorder %s7, 5
    %p107 = pnand %p105, %p106
    %p108 = pneg %p107
    // Predicated region
    $region21: #{_lambda_.12} parent=5 // pred_check
      _
    $region22: #{_lambda_.12} parent=5 // pred_check_branch
      %110 = sbr.rel (%p107) target = $region24
    $region23: #{_lambda_.12} parent=5 // pred_region
      %s111 = ssub.s32 %s7, 1
      %s112 = smul.u32 32, %s17
      %p113 = scmp.lt.s32.totalorder %s16, 3
      %s114 = scalar_select %p113, %s16, 3
      %p115 = scmp.lt.s32.totalorder %s112, 31
      %s116 = scalar_select %p115, %s112, 31
      %s117 = smul.addr %s114, 32
      %s118 = sadd.s32 %s116, %s117
      %s119 = smul.addr %s118, 4
      %s120 = scalar_lea.vmem %s0, %s119
      %p121 = pneg %p47
      %p122 = pneg %p44
      %p123 = pneg %p73
      %p124 = pneg %p70
      %p125 = scmp.lt.s32.totalorder %s16, 3
      %s126 = scalar_select %p125, %s16, 3
      %s127 = smul.addr %s126, 8
      %s128 = scalar_lea.vmem %s1, %s127
      %s129 = smul.u32 32, %s17
      %p130 = scmp.lt.s32.totalorder %s16, 3
      %s131 = scalar_select %p130, %s16, 3
      %p132 = scmp.lt.s32.totalorder %s129, 31
      %s133 = scalar_select %p132, %s129, 31
      %s134 = smul.addr %s131, 32
      %s135 = sadd.s32 %s133, %s134
      %s136 = smul.addr %s135, 4
      %s137 = scalar_lea.vmem %s0, %s136
      %s138 = smul.u32 32, %s17
      %p139 = scmp.lt.s32.totalorder %s16, 3
      %s140 = scalar_select %p139, %s16, 3
      %s141 = smul.addr %s140, 8
      %s142 = scalar_lea.vmem %s1, %s141
      %p143 = scmp.eq.s32.totalorder %s17, 0
      // Predicated region
      $region25: #{_lambda_.12} parent=23 // pred_check
        %p144 = pneg %p143
      $region26: #{_lambda_.12} parent=23 // pred_check_branch
        %146 = sbr.rel (%p144) target = $region28
      $region27: #{_lambda_.12} parent=23 // pred_region
        %vm147 = vcmask 64512
        %148 = vst.msk [vmem:[%s142] sm:$0xff] %vm147, 0.0
      $region28: #{_lambda_.12} parent=23 // pred_fallthru
        _
      %v149 = vld [vmem:[%s137] sm:$0xf]
      %v150 = vld [vmem:[%s137 + $0x4] sm:$0xf]
      %v151 = vld [vmem:[%s137 + $0x8] sm:$0xf]
      %v152 = vld [vmem:[%s137 + $0xc] sm:$0xf]
      %v153 = vld [vmem:[%s137 + $0x10] sm:$0xf]
      %v154 = vld [vmem:[%s137 + $0x14] sm:$0xf]
      %v155 = vld [vmem:[%s137 + $0x18] sm:$0xf]
      %v156 = vld [vmem:[%s137 + $0x1c] sm:$0xf]
      %v157 = vld [vmem:[%s137 + $0x20] sm:$0xf]
      %v158 = vld [vmem:[%s137 + $0x24] sm:$0xf]
      %v159 = vld [vmem:[%s137 + $0x28] sm:$0xf]
      %v160 = vld [vmem:[%s137 + $0x2c] sm:$0xf]
      %v161 = vld [vmem:[%s137 + $0x30] sm:$0xf]
      %v162 = vld [vmem:[%s137 + $0x34] sm:$0xf]
      %v163 = vld [vmem:[%s137 + $0x38] sm:$0xf]
      %v164 = vld [vmem:[%s137 + $0x3c] sm:$0xf]
      %v165 = vld [vmem:[%s137 + $0x40] sm:$0xf]
      %v166 = vld [vmem:[%s137 + $0x44] sm:$0xf]
      %v167 = vld [vmem:[%s137 + $0x48] sm:$0xf]
      %v168 = vld [vmem:[%s137 + $0x4c] sm:$0xf]
      %v169 = vld [vmem:[%s137 + $0x50] sm:$0xf]
      %v170 = vld [vmem:[%s137 + $0x54] sm:$0xf]
      %v171 = vld [vmem:[%s137 + $0x58] sm:$0xf]
      %v172 = vld [vmem:[%s137 + $0x5c] sm:$0xf]
      %v173 = vld [vmem:[%s137 + $0x60] sm:$0xf]
      %v174 = vld [vmem:[%s137 + $0x64] sm:$0xf]
      %v175 = vld [vmem:[%s137 + $0x68] sm:$0xf]
      %v176 = vld [vmem:[%s137 + $0x6c] sm:$0xf]
      %v177 = vld [vmem:[%s137 + $0x70] sm:$0xf]
      %v178 = vld [vmem:[%s137 + $0x74] sm:$0xf]
      %v179 = vld [vmem:[%s137 + $0x78] sm:$0xf]
      %v180 = vld [vmem:[%s137 + $0x7c] sm:$0xf]
      %v213 = vunpack.c.l.b16 %v149
      %v214 = vunpack.c.l.b16 %v150
      %v215 = vunpack.c.l.b16 %v151
      %v216 = vunpack.c.l.b16 %v152
      %v217 = vunpack.c.l.b16 %v153
      %v218 = vunpack.c.l.b16 %v154
      %v219 = vunpack.c.l.b16 %v155
      %v220 = vunpack.c.l.b16 %v156
      %v221 = vunpack.c.l.b16 %v157
      %v222 = vunpack.c.l.b16 %v158
      %v223 = vunpack.c.l.b16 %v159
      %v224 = vunpack.c.l.b16 %v160
      %v225 = vunpack.c.l.b16 %v161
      %v226 = vunpack.c.l.b16 %v162
      %v227 = vunpack.c.l.b16 %v163
      %v228 = vunpack.c.l.b16 %v164
      %v229 = vunpack.c.l.b16 %v165
      %v230 = vunpack.c.l.b16 %v166
      %v231 = vunpack.c.l.b16 %v167
      %v232 = vunpack.c.l.b16 %v168
      %v233 = vunpack.c.l.b16 %v169
      %v234 = vunpack.c.l.b16 %v170
      %v235 = vunpack.c.l.b16 %v171
      %v236 = vunpack.c.l.b16 %v172
      %v237 = vunpack.c.l.b16 %v173
      %v238 = vunpack.c.l.b16 %v174
      %v239 = vunpack.c.l.b16 %v175
      %v240 = vunpack.c.l.b16 %v176
      %v241 = vunpack.c.l.b16 %v177
      %v242 = vunpack.c.l.b16 %v178
      %v243 = vunpack.c.l.b16 %v179
      %v244 = vunpack.c.l.b16 %v180
      %v245 = vpack.c.b16 %v214, %v213
      %v246 = vpack.c.b16 %v216, %v215
      %v247 = vpack.c.b16 %v218, %v217
      %v248 = vpack.c.b16 %v220, %v219
      %v249 = vpack.c.b16 %v222, %v221
      %v250 = vpack.c.b16 %v224, %v223
      %v251 = vpack.c.b16 %v226, %v225
      %v252 = vpack.c.b16 %v228, %v227
      %v253 = vpack.c.b16 %v230, %v229
      %v254 = vpack.c.b16 %v232, %v231
      %v255 = vpack.c.b16 %v234, %v233
      %v256 = vpack.c.b16 %v236, %v235
      %v257 = vpack.c.b16 %v238, %v237
      %v258 = vpack.c.b16 %v240, %v239
      %v259 = vpack.c.b16 %v242, %v241
      %v260 = vpack.c.b16 %v244, %v243
      %277 = vxpose.xlu0.c.b16.start [1/8] %v245, 128
      %278 = vxpose.xlu0.c.b16.cont [2/8] %v246, 128
      %279 = vxpose.xlu0.c.b16.cont [3/8] %v247, 128
      %280 = vxpose.xlu0.c.b16.cont [4/8] %v248, 128
      %281 = vxpose.xlu0.c.b16.cont [5/8] %v249, 128
      %282 = vxpose.xlu0.c.b16.cont [6/8] %v250, 128
      %283 = vxpose.xlu0.c.b16.cont [7/8] %v251, 128
      %284 = vxpose.xlu0.c.b16.end [8/8] %v252, 128
      %v285 = vpop.trf.xlu0
      %v286 = vpop.trf.xlu0
      %v287 = vpop.trf.xlu0
      %v288 = vpop.trf.xlu0
      %v289 = vpop.trf.xlu0
      %v290 = vpop.trf.xlu0
      %v291 = vpop.trf.xlu0
      %v292 = vpop.trf.xlu0
      %293 = vxpose.xlu0.c.b16.start [1/8] %v253, 128
      %294 = vxpose.xlu0.c.b16.cont [2/8] %v254, 128
      %295 = vxpose.xlu0.c.b16.cont [3/8] %v255, 128
      %296 = vxpose.xlu0.c.b16.cont [4/8] %v256, 128
      %297 = vxpose.xlu0.c.b16.cont [5/8] %v257, 128
      %298 = vxpose.xlu0.c.b16.cont [6/8] %v258, 128
      %299 = vxpose.xlu0.c.b16.cont [7/8] %v259, 128
      %300 = vxpose.xlu0.c.b16.end [8/8] %v260, 128
      %v301 = vpop.trf.xlu0
      %v302 = vpop.trf.xlu0
      %v303 = vpop.trf.xlu0
      %v304 = vpop.trf.xlu0
      %v305 = vpop.trf.xlu0
      %v306 = vpop.trf.xlu0
      %v307 = vpop.trf.xlu0
      %v308 = vpop.trf.xlu0
      %309 = vmatpush.bf16.msra.mxu0 %v252
      %310 = vmatpush.bf16.msra.mxu0 %v251
      %311 = vmatpush.bf16.msra.mxu0 %v250
      %312 = vmatpush.bf16.msra.mxu0 %v249
      %313 = vmatpush.bf16.msra.mxu0 %v248
      %314 = vmatpush.bf16.msra.mxu0 %v247
      %315 = vmatpush.bf16.msra.mxu0 %v246
      %316 = vmatpush.bf16.msra.mxu0 %v245
      %317 = vmatmul.bf16.gmra.mxu0 %v285
      %v318 = vpop.f32.mrf.mxu0
      %v319 = vadd.f32 0.0, %v318
      %v320 = vpop.f32.mrf.mxu0
      %321 = vdwg.mxu0
      %322 = vmatpush.bf16.msra.mxu0 %v260
      %323 = vmatpush.bf16.msra.mxu0 %v259
      %324 = vmatpush.bf16.msra.mxu0 %v258
      %325 = vmatpush.bf16.msra.mxu0 %v257
      %326 = vmatpush.bf16.msra.mxu0 %v256
      %327 = vmatpush.bf16.msra.mxu0 %v255
      %328 = vmatpush.bf16.msra.mxu0 %v254
      %329 = vmatpush.bf16.msra.mxu0 %v253
      %330 = vmatmul.bf16.gmra.mxu0 %v301
      %v331 = vpop.f32.mrf.mxu0
      %v332 = vadd.f32 %v319, %v331
      %v333 = vpop.f32.mrf.mxu0
      %334 = vdwg.mxu0
      %v335 = vld [vmem:[%s142] sm:$0xff]
      %v336 = vadd.f32 %v335, %v332
      %vm337 = vcmask 64512
      %338 = vst.msk [vmem:[%s142] sm:$0xff] %vm337, %v336
      %p339 = scmp.lt.s32.totalorder %s16, 3
      %s340 = scalar_select %p339, %s16, 3
      %s341 = smul.addr %s340, 8
      %s342 = scalar_lea.vmem %s1, %s341
      // Predicated region
      $region29: #{_lambda_.12} parent=23 // pred_check
        %p343 = pneg %p70
      $region30: #{_lambda_.12} parent=23 // pred_check_branch
        %345 = sbr.rel (%p343) target = $region32
      $region31: #{_lambda_.12} parent=23 // pred_region
        _
      $region32: #{_lambda_.12} parent=23 // pred_fallthru
        _
    $region24: #{_lambda_.12} parent=5 // pred_fallthru
      _
    %p346 = scmp.le.s32.totalorder 2, %s7
    // Predicated region
    $region33: #{_lambda_.12} parent=5 // pred_check
      %p347 = pneg %p346
    $region34: #{_lambda_.12} parent=5 // pred_check_branch
      %349 = sbr.rel (%p347) target = $region36
    $region35: #{_lambda_.12} parent=5 // pred_region
      %s350 = ssub.s32 %s7, 2
      // Predicated region
      $region37: #{_lambda_.12} parent=35 // pred_check
        %p351 = pneg %p76
      $region38: #{_lambda_.12} parent=35 // pred_check_branch
        %353 = sbr.rel (%p351) target = $region40
      $region39: #{_lambda_.12} parent=35 // pred_region
        %p354 = scmp.lt.s32.totalorder %s18, 3
        %s355 = scalar_select %p354, %s18, 3
        %s356 = smul.addr %s355, 8
        %s357 = scalar_lea.vmem %s1, %s356
      $region40: #{_lambda_.12} parent=35 // pred_fallthru
        _
    $region36: #{_lambda_.12} parent=5 // pred_fallthru
      _
  $region6: #{_lambda_.12} parent=0 // loop_footer
    %s11 = sadd.s32 1, %s7
  $region7: #{_lambda_.12} parent=0 // loop_footer_branch
    %6 = sbr.rel target = $region3
  $region8: #{_lambda_.12} parent=0 // loop_exit
    _

// kernel: _lambda_.11
$region0: #{_lambda_.11}
  #allocation0 [shape = 'u32[]', space=smem, size = 0x4, offset = 0x4, fixed_abs, tag = 'smem constant byte address 0x4 - core index']
  #allocation1 [shape = 'u32[72,128]{1,0:T(1,128)}', space=vmem, size = 0x9000, scoped, tag = 'internal scratch']
  %s0 = inlined_call_operand.vmem [shape: bf16[4,8,128], index: 0, kind: input, shape index: {}, may-alias: {0,1}]
  %s1 = inlined_call_operand.vmem [shape: bf16[4,8,128], index: 1, kind: input, shape index: {}, may-alias: {0,1}]
  %s2 = inlined_call_operand.vmem [shape: f32[2,1,128], index: 2, kind: output, shape index: {}]
  %s3 = sld [smem:[#allocation0]]
  $region45: #{_lambda_.11} parent=0
    _
  %s5 = ssub.s32 1, %s3
  %s6 = scalar_select 0, %s5, %s3
  loop: start=0, step=1, limit=4
  $region2: #{_lambda_.11} parent=0 // loop_pre_header
    _
  $region3: #{_lambda_.11} parent=0 // loop_header
    %s8 = sphi 0, %s12
    %p9 = scmp.ge.s32.totalorder %s8, 4
    %s15 = sphi 0, %s27
    %s16 = sphi 0, %s23
    %s17 = sphi 0, %s15
    %s18 = sphi 0, %s16
    %s19 = sphi 0, %s17
    %s20 = sphi 0, %s18
    %s32 = sphi 0, %s34
    %s35 = sphi 0, %s32
    %s36 = sphi 0, %s35
    %s52 = sphi 0, %s36
    %s62 = sphi 0, %s64
    %s65 = sphi 0, %s62
    %s66 = sphi 0, %s65
    %s82 = sphi 0, %s66
    %s88 = sphi 0, %s90
    %s91 = sphi 0, %s88
    %s92 = sphi 0, %s91
    %s108 = sphi 0, %s92
  $region4: #{_lambda_.11} parent=0 // loop_header_branch
    %11 = sbr.rel (%p9) target = $region8
  $region5: #{_lambda_.11} parent=0 // loop_body
    %s13 = ssub.s32 %s8, 1
    %s14 = ssub.s32 %s8, 2
    %s21 = sadd.s32 1, %s16
    %p22 = scmp.ge.s32.totalorder %s21, 1
    %s23 = scalar_select %p22, 0, %s21
    %s24 = sadd.s32 1, %s15
    %s25 = scalar_select %p22, %s24, %s15
    %p26 = scmp.ge.s32.totalorder %s25, 2
    %s27 = scalar_select %p26, 0, %s25
    %s28 = ssub.s32 %s15, %s27
    %s29 = ssub.s32 %s16, %s23
    %s30 = sor.u32 %s28, %s29
    %p31 = scmp.eq.s32.totalorder %s30, 0
    %s33 = sadd.s32 %s32, 1
    %s34 = scalar_select %p31, %s32, %s33
    %p37 = pneg %p31
    %p38 = scmp.eq.s32.totalorder %s8, 1
    %p39 = por %p37, %p38
    %p40 = scmp.ne.s32.totalorder %s32, %s35
    %p41 = scmp.eq.s32.totalorder %s8, 0
    %p42 = por %p40, %p41
    %p43 = scmp.ne.s32.totalorder %s32, %s35
    %p44 = scmp.eq.s32.totalorder %s13, 1
    %p45 = por %p43, %p44
    %p46 = scmp.ne.s32.totalorder %s35, %s36
    %p47 = scmp.eq.s32.totalorder %s13, 0
    %p48 = por %p46, %p47
    %p49 = scmp.ne.s32.totalorder %s35, %s36
    %p50 = scmp.eq.s32.totalorder %s14, 1
    %p51 = por %p49, %p50
    %p53 = scmp.ne.s32.totalorder %s36, %s52
    %p54 = scmp.eq.s32.totalorder %s14, 0
    %p55 = por %p53, %p54
    %s56 = sadd.s32 %s15, 2
    %s57 = sadd.s32 %s27, 2
    %s58 = ssub.s32 %s56, %s57
    %s59 = ssub.s32 %s16, %s23
    %s60 = sor.u32 %s58, %s59
    %p61 = scmp.eq.s32.totalorder %s60, 0
    %s63 = sadd.s32 %s62, 1
    %s64 = scalar_select %p61, %s62, %s63
    %p67 = pneg %p61
    %p68 = scmp.eq.s32.totalorder %s8, 1
    %p69 = por %p67, %p68
    %p70 = scmp.ne.s32.totalorder %s62, %s65
    %p71 = scmp.eq.s32.totalorder %s8, 0
    %p72 = por %p70, %p71
    %p73 = scmp.ne.s32.totalorder %s62, %s65
    %p74 = scmp.eq.s32.totalorder %s13, 1
    %p75 = por %p73, %p74
    %p76 = scmp.ne.s32.totalorder %s65, %s66
    %p77 = scmp.eq.s32.totalorder %s13, 0
    %p78 = por %p76, %p77
    %p79 = scmp.ne.s32.totalorder %s65, %s66
    %p80 = scmp.eq.s32.totalorder %s14, 1
    %p81 = por %p79, %p80
    %p83 = scmp.ne.s32.totalorder %s66, %s82
    %p84 = scmp.eq.s32.totalorder %s14, 0
    %p85 = por %p83, %p84
    %s86 = ssub.s32 %s15, %s27
    %p87 = scmp.eq.s32.totalorder %s86, 0
    %s89 = sadd.s32 %s88, 1
    %s90 = scalar_select %p87, %s88, %s89
    %p93 = pneg %p87
    %p94 = scmp.eq.s32.totalorder %s8, 1
    %p95 = por %p93, %p94
    %p96 = scmp.ne.s32.totalorder %s88, %s91
    %p97 = scmp.eq.s32.totalorder %s8, 0
    %p98 = por %p96, %p97
    %p99 = scmp.ne.s32.totalorder %s88, %s91
    %p100 = scmp.eq.s32.totalorder %s13, 1
    %p101 = por %p99, %p100
    %p102 = scmp.ne.s32.totalorder %s91, %s92
    %p103 = scmp.eq.s32.totalorder %s13, 0
    %p104 = por %p102, %p103
    %p105 = scmp.ne.s32.totalorder %s91, %s92
    %p106 = scmp.eq.s32.totalorder %s14, 1
    %p107 = por %p105, %p106
    %p109 = scmp.ne.s32.totalorder %s92, %s108
    %p110 = scmp.eq.s32.totalorder %s14, 0
    %p111 = por %p109, %p110
    %p112 = scmp.le.s32.totalorder 1, %s8
    %p113 = scmp.lt.s32.totalorder %s8, 3
    %p114 = pnand %p112, %p113
    %p115 = pneg %p114
    // Predicated region
    $region9: #{_lambda_.11} parent=5 // pred_check
      _
    $region10: #{_lambda_.11} parent=5 // pred_check_branch
      %117 = sbr.rel (%p114) target = $region12
    $region11: #{_lambda_.11} parent=5 // pred_region
      %s118 = ssub.s32 %s8, 1
    $region12: #{_lambda_.11} parent=5 // pred_fallthru
      _
    %p119 = scmp.lt.s32.totalorder %s8, 2
    // Predicated region
    $region13: #{_lambda_.11} parent=5 // pred_check
      %p120 = pneg %p119
    $region14: #{_lambda_.11} parent=5 // pred_check_branch
      %122 = sbr.rel (%p120) target = $region16
    $region15: #{_lambda_.11} parent=5 // pred_region
      // Predicated region
      $region17: #{_lambda_.11} parent=15 // pred_check
        %p123 = pneg %p42
      $region18: #{_lambda_.11} parent=15 // pred_check_branch
        %125 = sbr.rel (%p123) target = $region20
      $region19: #{_lambda_.11} parent=15 // pred_region
        %p126 = scmp.lt.s32.totalorder %s15, 3
        %s127 = scalar_select %p126, %s15, 3
        %p128 = scmp.lt.s32.totalorder %s16, 0
        %s129 = scalar_select %p128, %s16, 0
        %s130 = sadd.s32 %s129, %s127
        %s131 = smul.addr %s130, 4
        %s132 = scalar_lea.vmem %s0, %s131
      $region20: #{_lambda_.11} parent=15 // pred_fallthru
        _
      // Predicated region
      $region21: #{_lambda_.11} parent=15 // pred_check
        %p133 = pneg %p72
      $region22: #{_lambda_.11} parent=15 // pred_check_branch
        %135 = sbr.rel (%p133) target = $region24
      $region23: #{_lambda_.11} parent=15 // pred_region
        %s136 = sadd.s32 %s15, 2
        %p137 = scmp.lt.s32.totalorder %s136, 3
        %s138 = scalar_select %p137, %s136, 3
        %p139 = scmp.lt.s32.totalorder %s16, 0
        %s140 = scalar_select %p139, %s16, 0
        %s141 = sadd.s32 %s140, %s138
        %s142 = smul.addr %s141, 4
        %s143 = scalar_lea.vmem %s1, %s142
        %s144 = sadd.s32 %s15, 2
      $region24: #{_lambda_.11} parent=15 // pred_fallthru
        _
    $region16: #{_lambda_.11} parent=5 // pred_fallthru
      _
    %p145 = scmp.le.s32.totalorder 1, %s8
    %p146 = scmp.lt.s32.totalorder %s8, 3
    %p147 = pnand %p145, %p146
    %p148 = pneg %p147
    // Predicated region
    $region25: #{_lambda_.11} parent=5 // pred_check
      _
    $region26: #{_lambda_.11} parent=5 // pred_check_branch
      %150 = sbr.rel (%p147) target = $region28
    $region27: #{_lambda_.11} parent=5 // pred_region
      %s151 = ssub.s32 %s8, 1
      %p152 = scmp.lt.s32.totalorder %s17, 3
      %s153 = scalar_select %p152, %s17, 3
      %p154 = scmp.lt.s32.totalorder %s18, 0
      %s155 = scalar_select %p154, %s18, 0
      %s156 = sadd.s32 %s155, %s153
      %s157 = smul.addr %s156, 4
      %s158 = scalar_lea.vmem %s0, %s157
      %p159 = pneg %p48
      %p160 = pneg %p45
      %s161 = sadd.s32 %s17, 2
      %p162 = scmp.lt.s32.totalorder %s161, 3
      %s163 = scalar_select %p162, %s161, 3
      %p164 = scmp.lt.s32.totalorder %s18, 0
      %s165 = scalar_select %p164, %s18, 0
      %s166 = sadd.s32 %s165, %s163
      %s167 = smul.addr %s166, 4
      %s168 = scalar_lea.vmem %s1, %s167
      %p169 = pneg %p78
      %p170 = pneg %p75
      %p171 = pneg %p104
      %p172 = pneg %p101
      %p173 = scmp.lt.s32.totalorder %s17, 1
      %s174 = scalar_select %p173, %s17, 1
      %s175 = scalar_lea.vmem %s2, %s174
      %p176 = scmp.lt.s32.totalorder %s17, 3
      %s177 = scalar_select %p176, %s17, 3
      %p178 = scmp.lt.s32.totalorder %s18, 0
      %s179 = scalar_select %p178, %s18, 0
      %s180 = sadd.s32 %s179, %s177
      %s181 = smul.addr %s180, 4
      %s182 = scalar_lea.vmem %s0, %s181
      %s183 = sadd.s32 %s17, 2
      %p184 = scmp.lt.s32.totalorder %s183, 3
      %s185 = scalar_select %p184, %s183, 3
      %p186 = scmp.lt.s32.totalorder %s18, 0
      %s187 = scalar_select %p186, %s18, 0
      %s188 = sadd.s32 %s187, %s185
      %s189 = smul.addr %s188, 4
      %s190 = scalar_lea.vmem %s1, %s189
      %s191 = sadd.s32 %s17, 2
      %p192 = scmp.lt.s32.totalorder %s17, 1
      %s193 = scalar_select %p192, %s17, 1
      %s194 = scalar_lea.vmem %s2, %s193
      %p195 = scmp.eq.s32.totalorder %s18, 0
      // Predicated region
      $region29: #{_lambda_.11} parent=27 // pred_check
        %p196 = pneg %p195
      $region30: #{_lambda_.11} parent=27 // pred_check_branch
        %198 = sbr.rel (%p196) target = $region32
      $region31: #{_lambda_.11} parent=27 // pred_region
        %199 = vst [vmem:[%s194] sm:$0x1] 0.0
      $region32: #{_lambda_.11} parent=27 // pred_fallthru
        _
      %v200 = vld [vmem:[%s182] sm:$0xf]
      %v201 = vunpack.c.l.bf16 %v200
      %v202 = vld [vmem:[%s190] sm:$0xf]
      %v203 = vunpack.c.l.bf16 %v202
      %v204 = vsub.f32 %v201, %v203
      %v205 = vand.u32 2147483647, %v204
      %206 = vadd.xlane.f32.xlu0 %v205
      %v207 = vpop.xlane.xlu0 %206
      %v208 = vrot.slane %v207, 4
      %v209 = vadd.f32 %v207, %v208
      %v210 = vrot.slane %v209, 2
      %v211 = vadd.f32 %v209, %v210
      %v212 = vrot.slane %v211, 1
      %v213 = vadd.f32 %v211, %v212
      %s214 = vtos %v213
      %v215 = vld [vmem:[%s194] sm:$0x1]
      %v216 = vstv %s214
      %v217 = vadd.f32 %v215, %v216
      %218 = vst [vmem:[%s194] sm:$0x1] %v217
      %p219 = scmp.lt.s32.totalorder %s17, 1
      %s220 = scalar_select %p219, %s17, 1
      %s221 = scalar_lea.vmem %s2, %s220
      // Predicated region
      $region33: #{_lambda_.11} parent=27 // pred_check
        %p222 = pneg %p101
      $region34: #{_lambda_.11} parent=27 // pred_check_branch
        %224 = sbr.rel (%p222) target = $region36
      $region35: #{_lambda_.11} parent=27 // pred_region
        _
      $region36: #{_lambda_.11} parent=27 // pred_fallthru
        _
    $region28: #{_lambda_.11} parent=5 // pred_fallthru
      _
    %p225 = scmp.le.s32.totalorder 2, %s8
    // Predicated region
    $region37: #{_lambda_.11} parent=5 // pred_check
      %p226 = pneg %p225
    $region38: #{_lambda_.11} parent=5 // pred_check_branch
      %228 = sbr.rel (%p226) target = $region40
    $region39: #{_lambda_.11} parent=5 // pred_region
      %s229 = ssub.s32 %s8, 2
      // Predicated region
      $region41: #{_lambda_.11} parent=39 // pred_check
        %p230 = pneg %p107
      $region42: #{_lambda_.11} parent=39 // pred_check_branch
        %232 = sbr.rel (%p230) target = $region44
      $region43: #{_lambda_.11} parent=39 // pred_region
        %p233 = scmp.lt.s32.totalorder %s19, 1
        %s234 = scalar_select %p233, %s19, 1
        %s235 = scalar_lea.vmem %s2, %s234
      $region44: #{_lambda_.11} parent=39 // pred_fallthru
        _
    $region40: #{_lambda_.11} parent=5 // pred_fallthru
      _
  $region6: #{_lambda_.11} parent=0 // loop_footer
    %s12 = sadd.s32 1, %s8
  $region7: #{_lambda_.11} parent=0 // loop_footer_branch
    %7 = sbr.rel target = $region3
  $region8: #{_lambda_.11} parent=0 // loop_exit
    _

// kernel: _lambda_.13
$region0: #{_lambda_.13}
  #allocation0 [shape = 'u32[]', space=smem, size = 0x4, offset = 0x4, fixed_abs, tag = 'smem constant byte address 0x4 - core index']
  #allocation1 [shape = 'u32[72,128]{1,0:T(1,128)}', space=vmem, size = 0x9000, scoped, tag = 'internal scratch']
  %s0 = inlined_call_operand.vmem [shape: f32[4,8,8], index: 0, kind: input, shape index: {}, may-alias: {0,1}]
  %s1 = inlined_call_operand.vmem [shape: f32[4,8,8], index: 1, kind: input, shape index: {}, may-alias: {0,1}]
  %s2 = inlined_call_operand.vmem [shape: f32[2,1,128], index: 2, kind: output, shape index: {}]
  %s3 = sld [smem:[#allocation0]]
  $region45: #{_lambda_.13} parent=0
    _
  %s5 = ssub.s32 1, %s3
  %s6 = scalar_select 0, %s5, %s3
  loop: start=0, step=1, limit=4
  $region2: #{_lambda_.13} parent=0 // loop_pre_header
    _
  $region3: #{_lambda_.13} parent=0 // loop_header
    %s8 = sphi 0, %s12
    %p9 = scmp.ge.s32.totalorder %s8, 4
    %s15 = sphi 0, %s27
    %s16 = sphi 0, %s23
    %s17 = sphi 0, %s15
    %s18 = sphi 0, %s16
    %s19 = sphi 0, %s17
    %s20 = sphi 0, %s18
    %s32 = sphi 0, %s34
    %s35 = sphi 0, %s32
    %s36 = sphi 0, %s35
    %s52 = sphi 0, %s36
    %s62 = sphi 0, %s64
    %s65 = sphi 0, %s62
    %s66 = sphi 0, %s65
    %s82 = sphi 0, %s66
    %s88 = sphi 0, %s90
    %s91 = sphi 0, %s88
    %s92 = sphi 0, %s91
    %s108 = sphi 0, %s92
  $region4: #{_lambda_.13} parent=0 // loop_header_branch
    %11 = sbr.rel (%p9) target = $region8
  $region5: #{_lambda_.13} parent=0 // loop_body
    %s13 = ssub.s32 %s8, 1
    %s14 = ssub.s32 %s8, 2
    %s21 = sadd.s32 1, %s16
    %p22 = scmp.ge.s32.totalorder %s21, 1
    %s23 = scalar_select %p22, 0, %s21
    %s24 = sadd.s32 1, %s15
    %s25 = scalar_select %p22, %s24, %s15
    %p26 = scmp.ge.s32.totalorder %s25, 2
    %s27 = scalar_select %p26, 0, %s25
    %s28 = ssub.s32 %s15, %s27
    %s29 = ssub.s32 %s16, %s23
    %s30 = sor.u32 %s28, %s29
    %p31 = scmp.eq.s32.totalorder %s30, 0
    %s33 = sadd.s32 %s32, 1
    %s34 = scalar_select %p31, %s32, %s33
    %p37 = pneg %p31
    %p38 = scmp.eq.s32.totalorder %s8, 1
    %p39 = por %p37, %p38
    %p40 = scmp.ne.s32.totalorder %s32, %s35
    %p41 = scmp.eq.s32.totalorder %s8, 0
    %p42 = por %p40, %p41
    %p43 = scmp.ne.s32.totalorder %s32, %s35
    %p44 = scmp.eq.s32.totalorder %s13, 1
    %p45 = por %p43, %p44
    %p46 = scmp.ne.s32.totalorder %s35, %s36
    %p47 = scmp.eq.s32.totalorder %s13, 0
    %p48 = por %p46, %p47
    %p49 = scmp.ne.s32.totalorder %s35, %s36
    %p50 = scmp.eq.s32.totalorder %s14, 1
    %p51 = por %p49, %p50
    %p53 = scmp.ne.s32.totalorder %s36, %s52
    %p54 = scmp.eq.s32.totalorder %s14, 0
    %p55 = por %p53, %p54
    %s56 = sadd.s32 %s15, 2
    %s57 = sadd.s32 %s27, 2
    %s58 = ssub.s32 %s56, %s57
    %s59 = ssub.s32 %s16, %s23
    %s60 = sor.u32 %s58, %s59
    %p61 = scmp.eq.s32.totalorder %s60, 0
    %s63 = sadd.s32 %s62, 1
    %s64 = scalar_select %p61, %s62, %s63
    %p67 = pneg %p61
    %p68 = scmp.eq.s32.totalorder %s8, 1
    %p69 = por %p67, %p68
    %p70 = scmp.ne.s32.totalorder %s62, %s65
    %p71 = scmp.eq.s32.totalorder %s8, 0
    %p72 = por %p70, %p71
    %p73 = scmp.ne.s32.totalorder %s62, %s65
    %p74 = scmp.eq.s32.totalorder %s13, 1
    %p75 = por %p73, %p74
    %p76 = scmp.ne.s32.totalorder %s65, %s66
    %p77 = scmp.eq.s32.totalorder %s13, 0
    %p78 = por %p76, %p77
    %p79 = scmp.ne.s32.totalorder %s65, %s66
    %p80 = scmp.eq.s32.totalorder %s14, 1
    %p81 = por %p79, %p80
    %p83 = scmp.ne.s32.totalorder %s66, %s82
    %p84 = scmp.eq.s32.totalorder %s14, 0
    %p85 = por %p83, %p84
    %s86 = ssub.s32 %s15, %s27
    %p87 = scmp.eq.s32.totalorder %s86, 0
    %s89 = sadd.s32 %s88, 1
    %s90 = scalar_select %p87, %s88, %s89
    %p93 = pneg %p87
    %p94 = scmp.eq.s32.totalorder %s8, 1
    %p95 = por %p93, %p94
    %p96 = scmp.ne.s32.totalorder %s88, %s91
    %p97 = scmp.eq.s32.totalorder %s8, 0
    %p98 = por %p96, %p97
    %p99 = scmp.ne.s32.totalorder %s88, %s91
    %p100 = scmp.eq.s32.totalorder %s13, 1
    %p101 = por %p99, %p100
    %p102 = scmp.ne.s32.totalorder %s91, %s92
    %p103 = scmp.eq.s32.totalorder %s13, 0
    %p104 = por %p102, %p103
    %p105 = scmp.ne.s32.totalorder %s91, %s92
    %p106 = scmp.eq.s32.totalorder %s14, 1
    %p107 = por %p105, %p106
    %p109 = scmp.ne.s32.totalorder %s92, %s108
    %p110 = scmp.eq.s32.totalorder %s14, 0
    %p111 = por %p109, %p110
    %p112 = scmp.le.s32.totalorder 1, %s8
    %p113 = scmp.lt.s32.totalorder %s8, 3
    %p114 = pnand %p112, %p113
    %p115 = pneg %p114
    // Predicated region
    $region9: #{_lambda_.13} parent=5 // pred_check
      _
    $region10: #{_lambda_.13} parent=5 // pred_check_branch
      %117 = sbr.rel (%p114) target = $region12
    $region11: #{_lambda_.13} parent=5 // pred_region
      %s118 = ssub.s32 %s8, 1
    $region12: #{_lambda_.13} parent=5 // pred_fallthru
      _
    %p119 = scmp.lt.s32.totalorder %s8, 2
    // Predicated region
    $region13: #{_lambda_.13} parent=5 // pred_check
      %p120 = pneg %p119
    $region14: #{_lambda_.13} parent=5 // pred_check_branch
      %122 = sbr.rel (%p120) target = $region16
    $region15: #{_lambda_.13} parent=5 // pred_region
      // Predicated region
      $region17: #{_lambda_.13} parent=15 // pred_check
        %p123 = pneg %p42
      $region18: #{_lambda_.13} parent=15 // pred_check_branch
        %125 = sbr.rel (%p123) target = $region20
      $region19: #{_lambda_.13} parent=15 // pred_region
        %p126 = scmp.lt.s32.totalorder %s15, 3
        %s127 = scalar_select %p126, %s15, 3
        %p128 = scmp.lt.s32.totalorder %s16, 0
        %s129 = scalar_select %p128, %s16, 0
        %s130 = sadd.s32 %s129, %s127
        %s131 = smul.addr %s130, 8
        %s132 = scalar_lea.vmem %s0, %s131
      $region20: #{_lambda_.13} parent=15 // pred_fallthru
        _
      // Predicated region
      $region21: #{_lambda_.13} parent=15 // pred_check
        %p133 = pneg %p72
      $region22: #{_lambda_.13} parent=15 // pred_check_branch
        %135 = sbr.rel (%p133) target = $region24
      $region23: #{_lambda_.13} parent=15 // pred_region
        %s136 = sadd.s32 %s15, 2
        %p137 = scmp.lt.s32.totalorder %s136, 3
        %s138 = scalar_select %p137, %s136, 3
        %p139 = scmp.lt.s32.totalorder %s16, 0
        %s140 = scalar_select %p139, %s16, 0
        %s141 = sadd.s32 %s140, %s138
        %s142 = smul.addr %s141, 8
        %s143 = scalar_lea.vmem %s1, %s142
        %s144 = sadd.s32 %s15, 2
      $region24: #{_lambda_.13} parent=15 // pred_fallthru
        _
    $region16: #{_lambda_.13} parent=5 // pred_fallthru
      _
    %p145 = scmp.le.s32.totalorder 1, %s8
    %p146 = scmp.lt.s32.totalorder %s8, 3
    %p147 = pnand %p145, %p146
    %p148 = pneg %p147
    // Predicated region
    $region25: #{_lambda_.13} parent=5 // pred_check
      _
    $region26: #{_lambda_.13} parent=5 // pred_check_branch
      %150 = sbr.rel (%p147) target = $region28
    $region27: #{_lambda_.13} parent=5 // pred_region
      %s151 = ssub.s32 %s8, 1
      %p152 = scmp.lt.s32.totalorder %s17, 3
      %s153 = scalar_select %p152, %s17, 3
      %p154 = scmp.lt.s32.totalorder %s18, 0
      %s155 = scalar_select %p154, %s18, 0
      %s156 = sadd.s32 %s155, %s153
      %s157 = smul.addr %s156, 8
      %s158 = scalar_lea.vmem %s0, %s157
      %p159 = pneg %p48
      %p160 = pneg %p45
      %s161 = sadd.s32 %s17, 2
      %p162 = scmp.lt.s32.totalorder %s161, 3
      %s163 = scalar_select %p162, %s161, 3
      %p164 = scmp.lt.s32.totalorder %s18, 0
      %s165 = scalar_select %p164, %s18, 0
      %s166 = sadd.s32 %s165, %s163
      %s167 = smul.addr %s166, 8
      %s168 = scalar_lea.vmem %s1, %s167
      %p169 = pneg %p78
      %p170 = pneg %p75
      %p171 = pneg %p104
      %p172 = pneg %p101
      %p173 = scmp.lt.s32.totalorder %s17, 1
      %s174 = scalar_select %p173, %s17, 1
      %s175 = scalar_lea.vmem %s2, %s174
      %p176 = scmp.lt.s32.totalorder %s17, 3
      %s177 = scalar_select %p176, %s17, 3
      %p178 = scmp.lt.s32.totalorder %s18, 0
      %s179 = scalar_select %p178, %s18, 0
      %s180 = sadd.s32 %s179, %s177
      %s181 = smul.addr %s180, 8
      %s182 = scalar_lea.vmem %s0, %s181
      %s183 = sadd.s32 %s17, 2
      %p184 = scmp.lt.s32.totalorder %s183, 3
      %s185 = scalar_select %p184, %s183, 3
      %p186 = scmp.lt.s32.totalorder %s18, 0
      %s187 = scalar_select %p186, %s18, 0
      %s188 = sadd.s32 %s187, %s185
      %s189 = smul.addr %s188, 8
      %s190 = scalar_lea.vmem %s1, %s189
      %s191 = sadd.s32 %s17, 2
      %p192 = scmp.lt.s32.totalorder %s17, 1
      %s193 = scalar_select %p192, %s17, 1
      %s194 = scalar_lea.vmem %s2, %s193
      %p195 = scmp.eq.s32.totalorder %s18, 0
      // Predicated region
      $region29: #{_lambda_.13} parent=27 // pred_check
        %p196 = pneg %p195
      $region30: #{_lambda_.13} parent=27 // pred_check_branch
        %198 = sbr.rel (%p196) target = $region32
      $region31: #{_lambda_.13} parent=27 // pred_region
        %199 = vst [vmem:[%s194] sm:$0x1] 0.0
      $region32: #{_lambda_.13} parent=27 // pred_fallthru
        _
      %v200 = vld [vmem:[%s182] sm:$0xff]
      %v201 = vld [vmem:[%s190] sm:$0xff]
      %v202 = vsub.f32 %v200, %v201
      %v203 = vand.u32 2147483647, %v202
      %vm204 = vcmask 64512
      %v205 = vsel %vm204, %v203, 0.0
      %206 = vadd.xlane.f32.xlu0 %v205
      %v207 = vpop.xlane.xlu0 %206
      %v208 = vrot.slane %v207, 4
      %v209 = vadd.f32 %v207, %v208
      %v210 = vrot.slane %v209, 2
      %v211 = vadd.f32 %v209, %v210
      %v212 = vrot.slane %v211, 1
      %v213 = vadd.f32 %v211, %v212
      %s214 = vtos %v213
      %v215 = vld [vmem:[%s194] sm:$0x1]
      %v216 = vstv %s214
      %v217 = vadd.f32 %v215, %v216
      %218 = vst [vmem:[%s194] sm:$0x1] %v217
      %p219 = scmp.lt.s32.totalorder %s17, 1
      %s220 = scalar_select %p219, %s17, 1
      %s221 = scalar_lea.vmem %s2, %s220
      // Predicated region
      $region33: #{_lambda_.13} parent=27 // pred_check
        %p222 = pneg %p101
      $region34: #{_lambda_.13} parent=27 // pred_check_branch
        %224 = sbr.rel (%p222) target = $region36
      $region35: #{_lambda_.13} parent=27 // pred_region
        _
      $region36: #{_lambda_.13} parent=27 // pred_fallthru
        _
    $region28: #{_lambda_.13} parent=5 // pred_fallthru
      _
    %p225 = scmp.le.s32.totalorder 2, %s8
    // Predicated region
    $region37: #{_lambda_.13} parent=5 // pred_check
      %p226 = pneg %p225
    $region38: #{_lambda_.13} parent=5 // pred_check_branch
      %228 = sbr.rel (%p226) target = $region40
    $region39: #{_lambda_.13} parent=5 // pred_region
      %s229 = ssub.s32 %s8, 2
      // Predicated region
      $region41: #{_lambda_.13} parent=39 // pred_check
        %p230 = pneg %p107
      $region42: #{_lambda_.13} parent=39 // pred_check_branch
        %232 = sbr.rel (%p230) target = $region44
      $region43: #{_lambda_.13} parent=39 // pred_region
        %p233 = scmp.lt.s32.totalorder %s19, 1
        %s234 = scalar_select %p233, %s19, 1
        %s235 = scalar_lea.vmem %s2, %s234
      $region44: #{_lambda_.13} parent=39 // pred_fallthru
        _
    $region40: #{_lambda_.13} parent=5 // pred_fallthru
      _
  $region6: #{_lambda_.13} parent=0 // loop_footer
    %s12 = sadd.s32 1, %s8
  $region7: #{_lambda_.13} parent=0 // loop_footer_branch
    %7 = sbr.rel target = $region3
  $region8: #{_lambda_.13} parent=0 // loop_exit
    _

// kernel: _lambda_.10
$region0: #{_lambda_.10}
  #allocation0 [shape = 'u32[]', space=smem, size = 0x4, offset = 0x4, fixed_abs, tag = 'smem constant byte address 0x4 - core index']
  #allocation1 [shape = 'u32[72,128]{1,0:T(1,128)}', space=vmem, size = 0x9000, scoped, tag = 'internal scratch']
  %s0 = inlined_call_operand.vmem [shape: bf16[4,16,128], index: 0, kind: input, shape index: {}, may-alias: {0,1}]
  %s1 = inlined_call_operand.vmem [shape: bf16[4,16,128], index: 1, kind: input, shape index: {}, may-alias: {0,1}]
  %s2 = inlined_call_operand.vmem [shape: f32[2,1,128], index: 2, kind: output, shape index: {}]
  %s3 = sld [smem:[#allocation0]]
  $region45: #{_lambda_.10} parent=0
    _
  %s5 = ssub.s32 1, %s3
  %s6 = scalar_select 0, %s5, %s3
  loop: start=0, step=1, limit=4
  $region2: #{_lambda_.10} parent=0 // loop_pre_header
    _
  $region3: #{_lambda_.10} parent=0 // loop_header
    %s8 = sphi 0, %s12
    %p9 = scmp.ge.s32.totalorder %s8, 4
    %s15 = sphi 0, %s27
    %s16 = sphi 0, %s23
    %s17 = sphi 0, %s15
    %s18 = sphi 0, %s16
    %s19 = sphi 0, %s17
    %s20 = sphi 0, %s18
    %s32 = sphi 0, %s34
    %s35 = sphi 0, %s32
    %s36 = sphi 0, %s35
    %s52 = sphi 0, %s36
    %s62 = sphi 0, %s64
    %s65 = sphi 0, %s62
    %s66 = sphi 0, %s65
    %s82 = sphi 0, %s66
    %s88 = sphi 0, %s90
    %s91 = sphi 0, %s88
    %s92 = sphi 0, %s91
    %s108 = sphi 0, %s92
  $region4: #{_lambda_.10} parent=0 // loop_header_branch
    %11 = sbr.rel (%p9) target = $region8
  $region5: #{_lambda_.10} parent=0 // loop_body
    %s13 = ssub.s32 %s8, 1
    %s14 = ssub.s32 %s8, 2
    %s21 = sadd.s32 1, %s16
    %p22 = scmp.ge.s32.totalorder %s21, 1
    %s23 = scalar_select %p22, 0, %s21
    %s24 = sadd.s32 1, %s15
    %s25 = scalar_select %p22, %s24, %s15
    %p26 = scmp.ge.s32.totalorder %s25, 2
    %s27 = scalar_select %p26, 0, %s25
    %s28 = ssub.s32 %s15, %s27
    %s29 = ssub.s32 %s16, %s23
    %s30 = sor.u32 %s28, %s29
    %p31 = scmp.eq.s32.totalorder %s30, 0
    %s33 = sadd.s32 %s32, 1
    %s34 = scalar_select %p31, %s32, %s33
    %p37 = pneg %p31
    %p38 = scmp.eq.s32.totalorder %s8, 1
    %p39 = por %p37, %p38
    %p40 = scmp.ne.s32.totalorder %s32, %s35
    %p41 = scmp.eq.s32.totalorder %s8, 0
    %p42 = por %p40, %p41
    %p43 = scmp.ne.s32.totalorder %s32, %s35
    %p44 = scmp.eq.s32.totalorder %s13, 1
    %p45 = por %p43, %p44
    %p46 = scmp.ne.s32.totalorder %s35, %s36
    %p47 = scmp.eq.s32.totalorder %s13, 0
    %p48 = por %p46, %p47
    %p49 = scmp.ne.s32.totalorder %s35, %s36
    %p50 = scmp.eq.s32.totalorder %s14, 1
    %p51 = por %p49, %p50
    %p53 = scmp.ne.s32.totalorder %s36, %s52
    %p54 = scmp.eq.s32.totalorder %s14, 0
    %p55 = por %p53, %p54
    %s56 = sadd.s32 %s15, 2
    %s57 = sadd.s32 %s27, 2
    %s58 = ssub.s32 %s56, %s57
    %s59 = ssub.s32 %s16, %s23
    %s60 = sor.u32 %s58, %s59
    %p61 = scmp.eq.s32.totalorder %s60, 0
    %s63 = sadd.s32 %s62, 1
    %s64 = scalar_select %p61, %s62, %s63
    %p67 = pneg %p61
    %p68 = scmp.eq.s32.totalorder %s8, 1
    %p69 = por %p67, %p68
    %p70 = scmp.ne.s32.totalorder %s62, %s65
    %p71 = scmp.eq.s32.totalorder %s8, 0
    %p72 = por %p70, %p71
    %p73 = scmp.ne.s32.totalorder %s62, %s65
    %p74 = scmp.eq.s32.totalorder %s13, 1
    %p75 = por %p73, %p74
    %p76 = scmp.ne.s32.totalorder %s65, %s66
    %p77 = scmp.eq.s32.totalorder %s13, 0
    %p78 = por %p76, %p77
    %p79 = scmp.ne.s32.totalorder %s65, %s66
    %p80 = scmp.eq.s32.totalorder %s14, 1
    %p81 = por %p79, %p80
    %p83 = scmp.ne.s32.totalorder %s66, %s82
    %p84 = scmp.eq.s32.totalorder %s14, 0
    %p85 = por %p83, %p84
    %s86 = ssub.s32 %s15, %s27
    %p87 = scmp.eq.s32.totalorder %s86, 0
    %s89 = sadd.s32 %s88, 1
    %s90 = scalar_select %p87, %s88, %s89
    %p93 = pneg %p87
    %p94 = scmp.eq.s32.totalorder %s8, 1
    %p95 = por %p93, %p94
    %p96 = scmp.ne.s32.totalorder %s88, %s91
    %p97 = scmp.eq.s32.totalorder %s8, 0
    %p98 = por %p96, %p97
    %p99 = scmp.ne.s32.totalorder %s88, %s91
    %p100 = scmp.eq.s32.totalorder %s13, 1
    %p101 = por %p99, %p100
    %p102 = scmp.ne.s32.totalorder %s91, %s92
    %p103 = scmp.eq.s32.totalorder %s13, 0
    %p104 = por %p102, %p103
    %p105 = scmp.ne.s32.totalorder %s91, %s92
    %p106 = scmp.eq.s32.totalorder %s14, 1
    %p107 = por %p105, %p106
    %p109 = scmp.ne.s32.totalorder %s92, %s108
    %p110 = scmp.eq.s32.totalorder %s14, 0
    %p111 = por %p109, %p110
    %p112 = scmp.le.s32.totalorder 1, %s8
    %p113 = scmp.lt.s32.totalorder %s8, 3
    %p114 = pnand %p112, %p113
    %p115 = pneg %p114
    // Predicated region
    $region9: #{_lambda_.10} parent=5 // pred_check
      _
    $region10: #{_lambda_.10} parent=5 // pred_check_branch
      %117 = sbr.rel (%p114) target = $region12
    $region11: #{_lambda_.10} parent=5 // pred_region
      %s118 = ssub.s32 %s8, 1
    $region12: #{_lambda_.10} parent=5 // pred_fallthru
      _
    %p119 = scmp.lt.s32.totalorder %s8, 2
    // Predicated region
    $region13: #{_lambda_.10} parent=5 // pred_check
      %p120 = pneg %p119
    $region14: #{_lambda_.10} parent=5 // pred_check_branch
      %122 = sbr.rel (%p120) target = $region16
    $region15: #{_lambda_.10} parent=5 // pred_region
      // Predicated region
      $region17: #{_lambda_.10} parent=15 // pred_check
        %p123 = pneg %p42
      $region18: #{_lambda_.10} parent=15 // pred_check_branch
        %125 = sbr.rel (%p123) target = $region20
      $region19: #{_lambda_.10} parent=15 // pred_region
        %s126 = smul.u32 2, %s16
        %p127 = scmp.lt.s32.totalorder %s15, 3
        %s128 = scalar_select %p127, %s15, 3
        %p129 = scmp.lt.s32.totalorder %s126, 1
        %s130 = scalar_select %p129, %s126, 1
        %s131 = smul.addr %s128, 2
        %s132 = sadd.s32 %s130, %s131
        %s133 = smul.addr %s132, 4
        %s134 = scalar_lea.vmem %s0, %s133
        %s135 = smul.u32 2, %s16
      $region20: #{_lambda_.10} parent=15 // pred_fallthru
        _
      // Predicated region
      $region21: #{_lambda_.10} parent=15 // pred_check
        %p136 = pneg %p72
      $region22: #{_lambda_.10} parent=15 // pred_check_branch
        %138 = sbr.rel (%p136) target = $region24
      $region23: #{_lambda_.10} parent=15 // pred_region
        %s139 = sadd.s32 %s15, 2
        %s140 = smul.u32 2, %s16
        %p141 = scmp.lt.s32.totalorder %s139, 3
        %s142 = scalar_select %p141, %s139, 3
        %p143 = scmp.lt.s32.totalorder %s140, 1
        %s144 = scalar_select %p143, %s140, 1
        %s145 = smul.addr %s142, 2
        %s146 = sadd.s32 %s144, %s145
        %s147 = smul.addr %s146, 4
        %s148 = scalar_lea.vmem %s1, %s147
        %s149 = sadd.s32 %s15, 2
        %s150 = smul.u32 2, %s16
      $region24: #{_lambda_.10} parent=15 // pred_fallthru
        _
    $region16: #{_lambda_.10} parent=5 // pred_fallthru
      _
    %p151 = scmp.le.s32.totalorder 1, %s8
    %p152 = scmp.lt.s32.totalorder %s8, 3
    %p153 = pnand %p151, %p152
    %p154 = pneg %p153
    // Predicated region
    $region25: #{_lambda_.10} parent=5 // pred_check
      _
    $region26: #{_lambda_.10} parent=5 // pred_check_branch
      %156 = sbr.rel (%p153) target = $region28
    $region27: #{_lambda_.10} parent=5 // pred_region
      %s157 = ssub.s32 %s8, 1
      %s158 = smul.u32 2, %s18
      %p159 = scmp.lt.s32.totalorder %s17, 3
      %s160 = scalar_select %p159, %s17, 3
      %p161 = scmp.lt.s32.totalorder %s158, 1
      %s162 = scalar_select %p161, %s158, 1
      %s163 = smul.addr %s160, 2
      %s164 = sadd.s32 %s162, %s163
      %s165 = smul.addr %s164, 4
      %s166 = scalar_lea.vmem %s0, %s165
      %p167 = pneg %p48
      %p168 = pneg %p45
      %s169 = sadd.s32 %s17, 2
      %s170 = smul.u32 2, %s18
      %p171 = scmp.lt.s32.totalorder %s169, 3
      %s172 = scalar_select %p171, %s169, 3
      %p173 = scmp.lt.s32.totalorder %s170, 1
      %s174 = scalar_select %p173, %s170, 1
      %s175 = smul.addr %s172, 2
      %s176 = sadd.s32 %s174, %s175
      %s177 = smul.addr %s176, 4
      %s178 = scalar_lea.vmem %s1, %s177
      %p179 = pneg %p78
      %p180 = pneg %p75
      %p181 = pneg %p104
      %p182 = pneg %p101
      %p183 = scmp.lt.s32.totalorder %s17, 1
      %s184 = scalar_select %p183, %s17, 1
      %s185 = scalar_lea.vmem %s2, %s184
      %s186 = smul.u32 2, %s18
      %p187 = scmp.lt.s32.totalorder %s17, 3
      %s188 = scalar_select %p187, %s17, 3
      %p189 = scmp.lt.s32.totalorder %s186, 1
      %s190 = scalar_select %p189, %s186, 1
      %s191 = smul.addr %s188, 2
      %s192 = sadd.s32 %s190, %s191
      %s193 = smul.addr %s192, 4
      %s194 = scalar_lea.vmem %s0, %s193
      %s195 = smul.u32 2, %s18
      %s196 = sadd.s32 %s17, 2
      %s197 = smul.u32 2, %s18
      %p198 = scmp.lt.s32.totalorder %s196, 3
      %s199 = scalar_select %p198, %s196, 3
      %p200 = scmp.lt.s32.totalorder %s197, 1
      %s201 = scalar_select %p200, %s197, 1
      %s202 = smul.addr %s199, 2
      %s203 = sadd.s32 %s201, %s202
      %s204 = smul.addr %s203, 4
      %s205 = scalar_lea.vmem %s1, %s204
      %s206 = sadd.s32 %s17, 2
      %s207 = smul.u32 2, %s18
      %p208 = scmp.lt.s32.totalorder %s17, 1
      %s209 = scalar_select %p208, %s17, 1
      %s210 = scalar_lea.vmem %s2, %s209
      %p211 = scmp.eq.s32.totalorder %s18, 0
      // Predicated region
      $region29: #{_lambda_.10} parent=27 // pred_check
        %p212 = pneg %p211
      $region30: #{_lambda_.10} parent=27 // pred_check_branch
        %214 = sbr.rel (%p212) target = $region32
      $region31: #{_lambda_.10} parent=27 // pred_region
        %215 = vst [vmem:[%s210] sm:$0x1] 0.0
      $region32: #{_lambda_.10} parent=27 // pred_fallthru
        _
      %v216 = vld [vmem:[%s194] sm:$0xf]
      %v217 = vld [vmem:[%s194 + $0x4] sm:$0xf]
      %v218 = vunpack.c.l.bf16 %v216
      %v219 = vunpack.c.l.bf16 %v217
      %v220 = vld [vmem:[%s205] sm:$0xf]
      %v221 = vld [vmem:[%s205 + $0x4] sm:$0xf]
      %v222 = vunpack.c.l.bf16 %v220
      %v223 = vunpack.c.l.bf16 %v221
      %v224 = vsub.f32 %v218, %v222
      %v225 = vsub.f32 %v219, %v223
      %v226 = vand.u32 2147483647, %v224
      %v227 = vand.u32 2147483647, %v225
      %v228 = vadd.f32 %v226, %v227
      %229 = vadd.xlane.f32.xlu0 %v228
      %v230 = vpop.xlane.xlu0 %229
      %v231 = vrot.slane %v230, 4
      %v232 = vadd.f32 %v230, %v231
      %v233 = vrot.slane %v232, 2
      %v234 = vadd.f32 %v232, %v233
      %v235 = vrot.slane %v234, 1
      %v236 = vadd.f32 %v234, %v235
      %s237 = vtos %v236
      %v238 = vld [vmem:[%s210] sm:$0x1]
      %v239 = vstv %s237
      %v240 = vadd.f32 %v238, %v239
      %241 = vst [vmem:[%s210] sm:$0x1] %v240
      %p242 = scmp.lt.s32.totalorder %s17, 1
      %s243 = scalar_select %p242, %s17, 1
      %s244 = scalar_lea.vmem %s2, %s243
      // Predicated region
      $region33: #{_lambda_.10} parent=27 // pred_check
        %p245 = pneg %p101
      $region34: #{_lambda_.10} parent=27 // pred_check_branch
        %247 = sbr.rel (%p245) target = $region36
      $region35: #{_lambda_.10} parent=27 // pred_region
        _
      $region36: #{_lambda_.10} parent=27 // pred_fallthru
        _
    $region28: #{_lambda_.10} parent=5 // pred_fallthru
      _
    %p248 = scmp.le.s32.totalorder 2, %s8
    // Predicated region
    $region37: #{_lambda_.10} parent=5 // pred_check
      %p249 = pneg %p248
    $region38: #{_lambda_.10} parent=5 // pred_check_branch
      %251 = sbr.rel (%p249) target = $region40
    $region39: #{_lambda_.10} parent=5 // pred_region
      %s252 = ssub.s32 %s8, 2
      // Predicated region
      $region41: #{_lambda_.10} parent=39 // pred_check
        %p253 = pneg %p107
      $region42: #{_lambda_.10} parent=39 // pred_check_branch
        %255 = sbr.rel (%p253) target = $region44
      $region43: #{_lambda_.10} parent=39 // pred_region
        %p256 = scmp.lt.s32.totalorder %s19, 1
        %s257 = scalar_select %p256, %s19, 1
        %s258 = scalar_lea.vmem %s2, %s257
      $region44: #{_lambda_.10} parent=39 // pred_fallthru
        _
    $region40: #{_lambda_.10} parent=5 // pred_fallthru
      _
  $region6: #{_lambda_.10} parent=0 // loop_footer
    %s12 = sadd.s32 1, %s8
  $region7: #{_lambda_.10} parent=0 // loop_footer_branch
    %7 = sbr.rel target = $region3
  $region8: #{_lambda_.10} parent=0 // loop_exit
    _

</llo_original>
